<compile_context>
chip_gen: v7x
topology: tpu7x:2x2x1
jax: 0.10.0
libtpu: 0.0.40
codegen_flags: <defaults>
</compile_context>

<pallas_src>
import functools

import jax
import jax.numpy as jnp
from jax import lax
from jax.experimental import pallas as pl
from jax.experimental.pallas import tpu as pltpu  # noqa: F401  (kept for TPU-specific extensions)


# ----------------------------------------------------------------------------
# In-kernel building blocks (activations are values, weights are Refs)
# ----------------------------------------------------------------------------
def _mamba_block(x2d, w_in_xz, conv_slab, w_bcd, w_dt, a_log_row, w_out, Bsz, L):
    """Selective-SSM (Mamba) block. x2d: (L*B, D) time-major -> (L*B, D)."""
    LB = Bsz * L
    d_inner = conv_slab.shape[1]
    K = conv_slab.shape[0] - 3
    SDin = a_log_row.shape[1]                 # d_state * d_inner
    d_state = SDin // d_inner

    conv_w = conv_slab[0:K, :]                # (K, d_inner)
    conv_b = conv_slab[K:K + 1, :]            # (1, d_inner)
    b_dt = conv_slab[K + 1:K + 2, :]          # (1, d_inner)
    d_param = conv_slab[K + 2:K + 3, :]       # (1, d_inner)

    # Fused x/z input projection: one MXU matmul with a 128-lane output.
    xz = jnp.dot(x2d, w_in_xz[...], preferred_element_type=jnp.float32)
    xi = xz[:, :d_inner]                      # (LB, d_inner)
    z = xz[:, d_inner:]                       # (LB, d_inner)

    # Causal depthwise conv over the whole batch at once.  Rows are time-major,
    # so a shift of one timestep is a shift of Bsz rows.
    pad = jnp.concatenate(
        [jnp.zeros(((K - 1) * Bsz, d_inner), jnp.float32), xi], axis=0)
    acc = conv_b
    for k in range(K):
        acc = acc + pad[k * Bsz:k * Bsz + LB, :] * conv_w[k:k + 1, :]
    u2d = jax.nn.silu(acc)                    # (LB, d_inner)

    # Fused SSM-parameter projection: columns = [B(t) | C(t) | delta_lowrank].
    proj = jnp.dot(u2d, w_bcd[...], preferred_element_type=jnp.float32)
    Bm = proj[:, :d_state]                    # (LB, d_state)
    Cm = proj[:, d_state:2 * d_state]         # (LB, d_state)
    dlr = proj[:, 2 * d_state:]               # (LB, dt_rank)

    dt = jax.nn.softplus(
        jnp.dot(dlr, w_dt[...], preferred_element_type=jnp.float32) + b_dt)

    # Hoisted scan coefficients: exp() and the B*dt*u outer product leave the
    # serial chain entirely.  Lane index = s*d_inner + d, row = t*Bsz + b.
    a_neg = -jnp.exp(a_log_row[...])                               # (1, S*Din)
    dA = jnp.exp(a_neg * jnp.tile(dt, (1, d_state)))               # (LB, S*Din)
    du = dt * u2d
    dBu = jnp.concatenate(
        [Bm[:, s:s + 1] * du for s in range(d_state)], axis=1)     # (LB, S*Din)

    # Selective scan: L sequential steps, whole batch per step, state carried
    # in vector registers (no VMEM round-trip on the dependency chain).
    h = jnp.zeros((Bsz, SDin), jnp.float32)
    hs = []
    for t in range(L):                         # static unroll; L is small here
        h = dA[t * Bsz:(t + 1) * Bsz, :] * h + dBu[t * Bsz:(t + 1) * Bsz, :]
        hs.append(h)
    H2d = jnp.concatenate(hs, axis=0)          # (LB, S*Din), rows time-major

    # y[r, d] = sum_s C[r, s] * h[r, s*Din + d] + D[d] * u[r, d]
    # (batched contraction after the scan; no per-step tiny MXU dots)
    y2d = d_param * u2d
    for s in range(d_state):
        y2d = y2d + Cm[:, s:s + 1] * H2d[:, s * d_inner:(s + 1) * d_inner]

    y2d = y2d * jax.nn.silu(z)
    return jnp.dot(y2d, w_out[...], preferred_element_type=jnp.float32)  # (LB, D)


def _af_gate(h2d, w_h, ws_b, snr, Bsz, L):
    """SNR-adaptive gate: h * sigmoid(W_h * mean_L(h) + snr * W_s + b), per sequence."""
    LB = Bsz * L
    w_s = ws_b[0:1, :]
    b = ws_b[1:2, :]
    # Per-sequence mean over L and the per-row gate broadcast are expressed as
    # tiny 0/1-matrix MXU matmuls (rows are time-major: r = t*B + b).
    prow = lax.broadcasted_iota(jnp.int32, (Bsz, LB), 0)
    pcol = lax.broadcasted_iota(jnp.int32, (Bsz, LB), 1)
    pool = jnp.where(pcol % Bsz == prow, 1.0 / L, 0.0)              # (B, LB)
    ctx = jnp.dot(pool, h2d, preferred_element_type=jnp.float32)    # (B, D)
    gate = jax.nn.sigmoid(
        jnp.dot(ctx, w_h[...], preferred_element_type=jnp.float32)
        + snr * w_s + b)                                            # (B, D)
    erow = lax.broadcasted_iota(jnp.int32, (LB, Bsz), 0)
    ecol = lax.broadcasted_iota(jnp.int32, (LB, Bsz), 1)
    expand = (erow % Bsz == ecol).astype(jnp.float32)               # (LB, B)
    gate_rows = jnp.dot(expand, gate, preferred_element_type=jnp.float32)
    return h2d * gate_rows


# ----------------------------------------------------------------------------
# Fully fused forward kernel (single pallas_call, whole batch, no grid)
# ----------------------------------------------------------------------------
def fused_net_kernel(x_ref,
                     e_in_xz, e_slab, e_bcd, e_wdt, e_alog, e_wout,
                     e_af_wh, e_af_wsb, e_pw, e_pb,
                     d_win, d_bin,
                     m_in_xz, m_slab, m_bcd, m_wdt, m_alog, m_wout,
                     d_af_wh, d_af_wsb, d_pw, d_pb,
                     o_ref, *, Bsz, L):
    snr_feat = 20.0 / 20.0          # SNR = 20 hard-coded in forward; normalized
    x2d = x_ref[...]                # (L*B, D) time-major

    # encoder: Mamba block (+residual) -> SNR-adaptive gate -> latent projection
    h = x2d + _mamba_block(x2d, e_in_xz, e_slab, e_bcd, e_wdt, e_alog, e_wout,
                           Bsz, L)
    h = _af_gate(h, e_af_wh, e_af_wsb, snr_feat, Bsz, L)
    zlat = jnp.dot(h, e_pw[...], preferred_element_type=jnp.float32) + e_pb[...]

    # TODO(synk): no explicit AWGN channel between encoder and decoder (not in given source).

    # decoder: up-projection -> Mamba block (+residual) -> SNR gate -> output proj
    g = jnp.dot(zlat, d_win[...], preferred_element_type=jnp.float32) + d_bin[...]
    g = g + _mamba_block(g, m_in_xz, m_slab, m_bcd, m_wdt, m_alog, m_wout,
                         Bsz, L)
    g = _af_gate(g, d_af_wh, d_af_wsb, snr_feat, Bsz, L)
    y = jnp.dot(g, d_pw[...], preferred_element_type=jnp.float32) + d_pb[...]
    o_ref[...] = y                  # (L*B, D)


# ----------------------------------------------------------------------------
# Wrapper: weight packing / fusion and layout plumbing (time-major rows)
# ----------------------------------------------------------------------------
def _pack_mamba(m):
    w_in_xz = jnp.concatenate([m["w_inx"], m["w_inz"]], axis=1)          # (D, 2*Din)
    slab = jnp.concatenate(
        [m["conv_w"], m["conv_b"], m["b_dt"], m["d_param"]], axis=0)     # (K+3, Din)
    w_bcd = jnp.concatenate([m["w_B"], m["w_C"], m["w_delta"]], axis=1)  # (Din, 2S+R)
    # a_log pre-arranged so lane s*d_inner + d holds a_log[d, s].
    a_log_row = jnp.reshape(m["a_log"].T, (1, -1))                       # (1, S*Din)
    return [w_in_xz, slab, w_bcd, m["w_dt"], a_log_row, m["w_out"]]


def _pack_af(a):
    return [a["w_h"], jnp.concatenate([a["w_s"], a["b"]], axis=0)]       # (D,D), (2,D)


def net_forward(x, params):
    B, L, D = x.shape
    enc, dec = params["encoder"], params["decoder"]
    em, dm = enc["mamba"], dec["mamba"]
    assert dm["w_inx"].shape[1] == em["w_inx"].shape[1]
    assert dm["w_B"].shape[1] == em["w_B"].shape[1]

    flat_w = (_pack_mamba(em) + _pack_af(enc["af"]) + [enc["w_out"], enc["b_out"]]
              + [dec["w_in"], dec["b_in"]]
              + _pack_mamba(dm) + _pack_af(dec["af"])
              + [dec["w_out"], dec["b_out"]])

    # Time-major layout (row = t*B + b): the scan walks contiguous row blocks.
    x_tm = jnp.transpose(x, (1, 0, 2)).reshape(L * B, D)

    y_tm = pl.pallas_call(
        functools.partial(fused_net_kernel, Bsz=B, L=L),
        out_shape=jax.ShapeDtypeStruct((L * B, D), jnp.float32),
    )(x_tm, *flat_w)

    return jnp.transpose(y_tm.reshape(L, B, D), (1, 0, 2))


# ----------------------------------------------------------------------------
# Parameter initialization (deterministic, in-script)
# ----------------------------------------------------------------------------
def init_mamba_params(key, d_model, d_inner, d_state, dt_rank, d_conv):
    ks = jax.random.split(key, 8)
    s = 0.02
    return dict(
        w_inx=jax.random.normal(ks[0], (d_model, d_inner), jnp.float32) * s,
        w_inz=jax.random.normal(ks[1], (d_model, d_inner), jnp.float32) * s,
        conv_w=jax.random.normal(ks[2], (d_conv, d_inner), jnp.float32) * s,
        conv_b=jnp.zeros((1, d_inner), jnp.float32),
        w_delta=jax.random.normal(ks[3], (d_inner, dt_rank), jnp.float32) * s,
        w_B=jax.random.normal(ks[4], (d_inner, d_state), jnp.float32) * s,
        w_C=jax.random.normal(ks[5], (d_inner, d_state), jnp.float32) * s,
        w_dt=jax.random.normal(ks[6], (dt_rank, d_inner), jnp.float32) * s,
        b_dt=jnp.full((1, d_inner), -2.0, jnp.float32),
        a_log=jnp.log(jnp.broadcast_to(
            jnp.arange(1, d_state + 1, dtype=jnp.float32), (d_inner, d_state))),
        d_param=jnp.ones((1, d_inner), jnp.float32),
        w_out=jax.random.normal(ks[7], (d_inner, d_model), jnp.float32) * s,
    )


def init_af_params(key, d_model):
    k1, k2 = jax.random.split(key)
    s = 0.02
    return dict(
        w_h=jax.random.normal(k1, (d_model, d_model), jnp.float32) * s,
        w_s=jax.random.normal(k2, (1, d_model), jnp.float32) * s,
        b=jnp.zeros((1, d_model), jnp.float32),
    )


def init_params(key, d_model, d_latent, d_inner, d_state, dt_rank, d_conv):
    k_enc, k_dec = jax.random.split(key)
    ke = jax.random.split(k_enc, 3)
    kd = jax.random.split(k_dec, 4)
    s = 0.02
    encoder = dict(
        mamba=init_mamba_params(ke[0], d_model, d_inner, d_state, dt_rank, d_conv),
        af=init_af_params(ke[1], d_model),
        w_out=jax.random.normal(ke[2], (d_model, d_latent), jnp.float32) * s,
        b_out=jnp.zeros((1, d_latent), jnp.float32),
    )
    decoder = dict(
        w_in=jax.random.normal(kd[0], (d_latent, d_model), jnp.float32) * s,
        b_in=jnp.zeros((1, d_model), jnp.float32),
        mamba=init_mamba_params(kd[1], d_model, d_inner, d_state, dt_rank, d_conv),
        af=init_af_params(kd[2], d_model),
        w_out=jax.random.normal(kd[3], (d_model, d_model), jnp.float32) * s,
        b_out=jnp.zeros((1, d_model), jnp.float32),
    )
    return dict(encoder=encoder, decoder=decoder)


if __name__ == "__main__":
    B, L, D = 2, 8, 32                           # batch, seq len, model dim
    d_inner, d_state, dt_rank, d_conv, d_latent = 64, 16, 2, 4, 16

    x = jax.random.normal(jax.random.PRNGKey(0), (B, L, D), jnp.float32)
    params = init_params(jax.random.PRNGKey(42), d_model=D, d_latent=d_latent,
                         d_inner=d_inner, d_state=d_state, dt_rank=dt_rank,
                         d_conv=d_conv)

    y = jax.jit(net_forward)(x, params)
    jax.block_until_ready(y)
    assert y.shape == (B, L, D) and y.dtype == jnp.float32
    assert bool(jnp.all(jnp.isfinite(y)))
    print("KERNEL_OK")
</pallas_src>

<mosaic_0001>
module attributes {stable_mosaic.version = 11 : i64} {
  func.func @fused_net_kernel(%arg0: memref<16x32xf32, #tpu.memory_space<vmem>>, %arg1: memref<32x128xf32, #tpu.memory_space<vmem>>, %arg2: memref<7x64xf32, #tpu.memory_space<vmem>>, %arg3: memref<64x34xf32, #tpu.memory_space<vmem>>, %arg4: memref<2x64xf32, #tpu.memory_space<vmem>>, %arg5: memref<1x1024xf32, #tpu.memory_space<vmem>>, %arg6: memref<64x32xf32, #tpu.memory_space<vmem>>, %arg7: memref<32x32xf32, #tpu.memory_space<vmem>>, %arg8: memref<2x32xf32, #tpu.memory_space<vmem>>, %arg9: memref<32x16xf32, #tpu.memory_space<vmem>>, %arg10: memref<1x16xf32, #tpu.memory_space<vmem>>, %arg11: memref<16x32xf32, #tpu.memory_space<vmem>>, %arg12: memref<1x32xf32, #tpu.memory_space<vmem>>, %arg13: memref<32x128xf32, #tpu.memory_space<vmem>>, %arg14: memref<7x64xf32, #tpu.memory_space<vmem>>, %arg15: memref<64x34xf32, #tpu.memory_space<vmem>>, %arg16: memref<2x64xf32, #tpu.memory_space<vmem>>, %arg17: memref<1x1024xf32, #tpu.memory_space<vmem>>, %arg18: memref<64x32xf32, #tpu.memory_space<vmem>>, %arg19: memref<32x32xf32, #tpu.memory_space<vmem>>, %arg20: memref<2x32xf32, #tpu.memory_space<vmem>>, %arg21: memref<32x32xf32, #tpu.memory_space<vmem>>, %arg22: memref<1x32xf32, #tpu.memory_space<vmem>>, %arg23: memref<16x32xf32, #tpu.memory_space<vmem>>) attributes {dimension_semantics = [], scalar_prefetch = 0 : i64, scratch_operands = 0 : i64, tpu.core_type = #tpu.core_type<tc>} {
    %c0 = arith.constant 0 : index
    %c0_0 = arith.constant 0 : index
    %0 = vector.load %arg0[%c0, %c0_0] : memref<16x32xf32, #tpu.memory_space<vmem>>, vector<16x32xf32>
    %c0_1 = arith.constant 0 : index
    %c0_2 = arith.constant 0 : index
    %1 = vector.load %arg2[%c0_1, %c0_2] : memref<7x64xf32, #tpu.memory_space<vmem>>, vector<4x64xf32>
    %c4 = arith.constant 4 : index
    %c0_3 = arith.constant 0 : index
    %2 = vector.load %arg2[%c4, %c0_3] : memref<7x64xf32, #tpu.memory_space<vmem>>, vector<1x64xf32>
    %c5 = arith.constant 5 : index
    %c0_4 = arith.constant 0 : index
    %3 = vector.load %arg2[%c5, %c0_4] : memref<7x64xf32, #tpu.memory_space<vmem>>, vector<1x64xf32>
    %c6 = arith.constant 6 : index
    %c0_5 = arith.constant 0 : index
    %4 = vector.load %arg2[%c6, %c0_5] : memref<7x64xf32, #tpu.memory_space<vmem>>, vector<1x64xf32>
    %c0_6 = arith.constant 0 : index
    %c0_7 = arith.constant 0 : index
    %5 = vector.load %arg1[%c0_6, %c0_7] : memref<32x128xf32, #tpu.memory_space<vmem>>, vector<32x128xf32>
    %cst = arith.constant dense<0.000000e+00> : vector<16x128xf32>
    %6 = tpu.matmul %0, %5, %cst {dimension_numbers = #tpu.dot_dimension_numbers<[1], [0], [0], [1], [0, 0, 1, 1], [], []>} : vector<16x32xf32>, vector<32x128xf32>, vector<16x128xf32> -> vector<16x128xf32>
    %7 = vector.extract_strided_slice %6 {offsets = [0, 0], sizes = [16, 64], strides = [1, 1]} : vector<16x128xf32> to vector<16x64xf32>
    %8 = vector.extract_strided_slice %6 {offsets = [0, 64], sizes = [16, 64], strides = [1, 1]} : vector<16x128xf32> to vector<16x64xf32>
    %cst_8 = arith.constant 0.000000e+00 : f32
    %9 = vector.broadcast %cst_8 : f32 to vector<6x64xf32>
    %10 = tpu.concatenate %9, %7 in 0 : vector<6x64xf32>, vector<16x64xf32> -> vector<22x64xf32>
    %11 = vector.extract_strided_slice %10 {offsets = [0, 0], sizes = [16, 64], strides = [1, 1]} : vector<22x64xf32> to vector<16x64xf32>
    %12 = vector.extract_strided_slice %1 {offsets = [0, 0], sizes = [1, 64], strides = [1, 1]} : vector<4x64xf32> to vector<1x64xf32>
    %13 = vector.broadcast %12 : vector<1x64xf32> to vector<16x64xf32>
    %14 = arith.mulf %11, %13 : vector<16x64xf32>
    %15 = vector.broadcast %2 : vector<1x64xf32> to vector<16x64xf32>
    %16 = arith.addf %15, %14 : vector<16x64xf32>
    %17 = vector.extract_strided_slice %10 {offsets = [2, 0], sizes = [16, 64], strides = [1, 1]} : vector<22x64xf32> to vector<16x64xf32>
    %18 = vector.extract_strided_slice %1 {offsets = [1, 0], sizes = [1, 64], strides = [1, 1]} : vector<4x64xf32> to vector<1x64xf32>
    %19 = vector.broadcast %18 : vector<1x64xf32> to vector<16x64xf32>
    %20 = arith.mulf %17, %19 : vector<16x64xf32>
    %21 = arith.addf %16, %20 : vector<16x64xf32>
    %22 = vector.extract_strided_slice %10 {offsets = [4, 0], sizes = [16, 64], strides = [1, 1]} : vector<22x64xf32> to vector<16x64xf32>
    %23 = vector.extract_strided_slice %1 {offsets = [2, 0], sizes = [1, 64], strides = [1, 1]} : vector<4x64xf32> to vector<1x64xf32>
    %24 = vector.broadcast %23 : vector<1x64xf32> to vector<16x64xf32>
    %25 = arith.mulf %22, %24 : vector<16x64xf32>
    %26 = arith.addf %21, %25 : vector<16x64xf32>
    %27 = vector.extract_strided_slice %10 {offsets = [6, 0], sizes = [16, 64], strides = [1, 1]} : vector<22x64xf32> to vector<16x64xf32>
    %28 = vector.extract_strided_slice %1 {offsets = [3, 0], sizes = [1, 64], strides = [1, 1]} : vector<4x64xf32> to vector<1x64xf32>
    %29 = vector.broadcast %28 : vector<1x64xf32> to vector<16x64xf32>
    %30 = arith.mulf %27, %29 : vector<16x64xf32>
    %31 = arith.addf %26, %30 : vector<16x64xf32>
    %32 = arith.negf %31 : vector<16x64xf32>
    %33 = math.exp %32 : vector<16x64xf32>
    %cst_9 = arith.constant 1.000000e+00 : f32
    %34 = vector.broadcast %cst_9 : f32 to vector<16x64xf32>
    %35 = arith.addf %34, %33 : vector<16x64xf32>
    %36 = arith.divf %34, %35 : vector<16x64xf32>
    %37 = arith.mulf %31, %36 : vector<16x64xf32>
    %c0_10 = arith.constant 0 : index
    %c0_11 = arith.constant 0 : index
    %38 = vector.load %arg3[%c0_10, %c0_11] : memref<64x34xf32, #tpu.memory_space<vmem>>, vector<64x34xf32>
    %cst_12 = arith.constant dense<0.000000e+00> : vector<16x34xf32>
    %39 = tpu.matmul %37, %38, %cst_12 {dimension_numbers = #tpu.dot_dimension_numbers<[1], [0], [0], [1], [0, 0, 1, 1], [], []>} : vector<16x64xf32>, vector<64x34xf32>, vector<16x34xf32> -> vector<16x34xf32>
    %40 = vector.extract_strided_slice %39 {offsets = [0, 0], sizes = [16, 16], strides = [1, 1]} : vector<16x34xf32> to vector<16x16xf32>
    %41 = vector.extract_strided_slice %39 {offsets = [0, 16], sizes = [16, 16], strides = [1, 1]} : vector<16x34xf32> to vector<16x16xf32>
    %42 = vector.extract_strided_slice %39 {offsets = [0, 32], sizes = [16, 2], strides = [1, 1]} : vector<16x34xf32> to vector<16x2xf32>
    %c0_13 = arith.constant 0 : index
    %c0_14 = arith.constant 0 : index
    %43 = vector.load %arg4[%c0_13, %c0_14] : memref<2x64xf32, #tpu.memory_space<vmem>>, vector<2x64xf32>
    %cst_15 = arith.constant dense<0.000000e+00> : vector<16x64xf32>
    %44 = tpu.matmul %42, %43, %cst_15 {dimension_numbers = #tpu.dot_dimension_numbers<[1], [0], [0], [1], [0, 0, 1, 1], [], []>} : vector<16x2xf32>, vector<2x64xf32>, vector<16x64xf32> -> vector<16x64xf32>
    %45 = vector.broadcast %3 : vector<1x64xf32> to vector<16x64xf32>
    %46 = arith.addf %44, %45 : vector<16x64xf32>
    %cst_16 = arith.constant 0.000000e+00 : f32
    %47 = vector.broadcast %cst_16 : f32 to vector<16x64xf32>
    %48 = arith.maximumf %46, %47 : vector<16x64xf32>
    %49 = vector.broadcast %cst_16 : f32 to vector<16x64xf32>
    %50 = arith.subf %46, %49 : vector<16x64xf32>
    %51 = arith.cmpf one, %50, %50 : vector<16x64xf32>
    %52 = vector.broadcast %cst_16 : f32 to vector<16x64xf32>
    %53 = arith.addf %46, %52 : vector<16x64xf32>
    %54 = math.absf %50 : vector<16x64xf32>
    %cst_17 = arith.constant 0.000000e+00 : f32
    %55 = vector.broadcast %cst_17 : f32 to vector<16x64xf32>
    %56 = arith.subf %55, %54 : vector<16x64xf32>
    %57 = math.exp %56 : vector<16x64xf32>
    %58 = math.log1p %57 : vector<16x64xf32>
    %59 = arith.addf %48, %58 : vector<16x64xf32>
    %60 = arith.select %51, %53, %59 : vector<16x64xi1>, vector<16x64xf32>
    %c0_18 = arith.constant 0 : index
    %c0_19 = arith.constant 0 : index
    %61 = vector.load %arg5[%c0_18, %c0_19] : memref<1x1024xf32, #tpu.memory_space<vmem>>, vector<1x1024xf32>
    %62 = math.exp %61 : vector<1x1024xf32>
    %cst_20 = arith.constant 0.000000e+00 : f32
    %63 = vector.broadcast %cst_20 : f32 to vector<1x1024xf32>
    %64 = arith.subf %63, %62 : vector<1x1024xf32>
    %65 = tpu.concatenate %60, %60, %60, %60, %60, %60, %60, %60, %60, %60, %60, %60, %60, %60, %60, %60 in 1 : vector<16x64xf32>, vector<16x64xf32>, vector<16x64xf32>, vector<16x64xf32>, vector<16x64xf32>, vector<16x64xf32>, vector<16x64xf32>, vector<16x64xf32>, vector<16x64xf32>, vector<16x64xf32>, vector<16x64xf32>, vector<16x64xf32>, vector<16x64xf32>, vector<16x64xf32>, vector<16x64xf32>, vector<16x64xf32> -> vector<16x1024xf32>
    %66 = vector.broadcast %64 : vector<1x1024xf32> to vector<16x1024xf32>
    %67 = arith.mulf %66, %65 : vector<16x1024xf32>
    %68 = math.exp %67 : vector<16x1024xf32>
    %69 = arith.mulf %60, %37 : vector<16x64xf32>
    %70 = vector.extract_strided_slice %40 {offsets = [0, 0], sizes = [16, 1], strides = [1, 1]} : vector<16x16xf32> to vector<16x1xf32>
    %71 = vector.broadcast %70 : vector<16x1xf32> to vector<16x64xf32>
    %72 = arith.mulf %71, %69 : vector<16x64xf32>
    %73 = vector.extract_strided_slice %40 {offsets = [0, 1], sizes = [16, 1], strides = [1, 1]} : vector<16x16xf32> to vector<16x1xf32>
    %74 = vector.broadcast %73 : vector<16x1xf32> to vector<16x64xf32>
    %75 = arith.mulf %74, %69 : vector<16x64xf32>
    %76 = vector.extract_strided_slice %40 {offsets = [0, 2], sizes = [16, 1], strides = [1, 1]} : vector<16x16xf32> to vector<16x1xf32>
    %77 = vector.broadcast %76 : vector<16x1xf32> to vector<16x64xf32>
    %78 = arith.mulf %77, %69 : vector<16x64xf32>
    %79 = vector.extract_strided_slice %40 {offsets = [0, 3], sizes = [16, 1], strides = [1, 1]} : vector<16x16xf32> to vector<16x1xf32>
    %80 = vector.broadcast %79 : vector<16x1xf32> to vector<16x64xf32>
    %81 = arith.mulf %80, %69 : vector<16x64xf32>
    %82 = vector.extract_strided_slice %40 {offsets = [0, 4], sizes = [16, 1], strides = [1, 1]} : vector<16x16xf32> to vector<16x1xf32>
    %83 = vector.broadcast %82 : vector<16x1xf32> to vector<16x64xf32>
    %84 = arith.mulf %83, %69 : vector<16x64xf32>
    %85 = vector.extract_strided_slice %40 {offsets = [0, 5], sizes = [16, 1], strides = [1, 1]} : vector<16x16xf32> to vector<16x1xf32>
    %86 = vector.broadcast %85 : vector<16x1xf32> to vector<16x64xf32>
    %87 = arith.mulf %86, %69 : vector<16x64xf32>
    %88 = vector.extract_strided_slice %40 {offsets = [0, 6], sizes = [16, 1], strides = [1, 1]} : vector<16x16xf32> to vector<16x1xf32>
    %89 = vector.broadcast %88 : vector<16x1xf32> to vector<16x64xf32>
    %90 = arith.mulf %89, %69 : vector<16x64xf32>
    %91 = vector.extract_strided_slice %40 {offsets = [0, 7], sizes = [16, 1], strides = [1, 1]} : vector<16x16xf32> to vector<16x1xf32>
    %92 = vector.broadcast %91 : vector<16x1xf32> to vector<16x64xf32>
    %93 = arith.mulf %92, %69 : vector<16x64xf32>
    %94 = vector.extract_strided_slice %40 {offsets = [0, 8], sizes = [16, 1], strides = [1, 1]} : vector<16x16xf32> to vector<16x1xf32>
    %95 = vector.broadcast %94 : vector<16x1xf32> to vector<16x64xf32>
    %96 = arith.mulf %95, %69 : vector<16x64xf32>
    %97 = vector.extract_strided_slice %40 {offsets = [0, 9], sizes = [16, 1], strides = [1, 1]} : vector<16x16xf32> to vector<16x1xf32>
    %98 = vector.broadcast %97 : vector<16x1xf32> to vector<16x64xf32>
    %99 = arith.mulf %98, %69 : vector<16x64xf32>
    %100 = vector.extract_strided_slice %40 {offsets = [0, 10], sizes = [16, 1], strides = [1, 1]} : vector<16x16xf32> to vector<16x1xf32>
    %101 = vector.broadcast %100 : vector<16x1xf32> to vector<16x64xf32>
    %102 = arith.mulf %101, %69 : vector<16x64xf32>
    %103 = vector.extract_strided_slice %40 {offsets = [0, 11], sizes = [16, 1], strides = [1, 1]} : vector<16x16xf32> to vector<16x1xf32>
    %104 = vector.broadcast %103 : vector<16x1xf32> to vector<16x64xf32>
    %105 = arith.mulf %104, %69 : vector<16x64xf32>
    %106 = vector.extract_strided_slice %40 {offsets = [0, 12], sizes = [16, 1], strides = [1, 1]} : vector<16x16xf32> to vector<16x1xf32>
    %107 = vector.broadcast %106 : vector<16x1xf32> to vector<16x64xf32>
    %108 = arith.mulf %107, %69 : vector<16x64xf32>
    %109 = vector.extract_strided_slice %40 {offsets = [0, 13], sizes = [16, 1], strides = [1, 1]} : vector<16x16xf32> to vector<16x1xf32>
    %110 = vector.broadcast %109 : vector<16x1xf32> to vector<16x64xf32>
    %111 = arith.mulf %110, %69 : vector<16x64xf32>
    %112 = vector.extract_strided_slice %40 {offsets = [0, 14], sizes = [16, 1], strides = [1, 1]} : vector<16x16xf32> to vector<16x1xf32>
    %113 = vector.broadcast %112 : vector<16x1xf32> to vector<16x64xf32>
    %114 = arith.mulf %113, %69 : vector<16x64xf32>
    %115 = vector.extract_strided_slice %40 {offsets = [0, 15], sizes = [16, 1], strides = [1, 1]} : vector<16x16xf32> to vector<16x1xf32>
    %116 = vector.broadcast %115 : vector<16x1xf32> to vector<16x64xf32>
    %117 = arith.mulf %116, %69 : vector<16x64xf32>
    %118 = tpu.concatenate %72, %75, %78, %81, %84, %87, %90, %93, %96, %99, %102, %105, %108, %111, %114, %117 in 1 : vector<16x64xf32>, vector<16x64xf32>, vector<16x64xf32>, vector<16x64xf32>, vector<16x64xf32>, vector<16x64xf32>, vector<16x64xf32>, vector<16x64xf32>, vector<16x64xf32>, vector<16x64xf32>, vector<16x64xf32>, vector<16x64xf32>, vector<16x64xf32>, vector<16x64xf32>, vector<16x64xf32>, vector<16x64xf32> -> vector<16x1024xf32>
    %cst_21 = arith.constant 0.000000e+00 : f32
    %119 = vector.broadcast %cst_21 : f32 to vector<2x1024xf32>
    %120 = vector.extract_strided_slice %68 {offsets = [0, 0], sizes = [2, 1024], strides = [1, 1]} : vector<16x1024xf32> to vector<2x1024xf32>
    %121 = arith.mulf %120, %119 : vector<2x1024xf32>
    %122 = vector.extract_strided_slice %118 {offsets = [0, 0], sizes = [2, 1024], strides = [1, 1]} : vector<16x1024xf32> to vector<2x1024xf32>
    %123 = arith.addf %121, %122 : vector<2x1024xf32>
    %124 = vector.extract_strided_slice %68 {offsets = [2, 0], sizes = [2, 1024], strides = [1, 1]} : vector<16x1024xf32> to vector<2x1024xf32>
    %125 = arith.mulf %124, %123 : vector<2x1024xf32>
    %126 = vector.extract_strided_slice %118 {offsets = [2, 0], sizes = [2, 1024], strides = [1, 1]} : vector<16x1024xf32> to vector<2x1024xf32>
    %127 = arith.addf %125, %126 : vector<2x1024xf32>
    %128 = vector.extract_strided_slice %68 {offsets = [4, 0], sizes = [2, 1024], strides = [1, 1]} : vector<16x1024xf32> to vector<2x1024xf32>
    %129 = arith.mulf %128, %127 : vector<2x1024xf32>
    %130 = vector.extract_strided_slice %118 {offsets = [4, 0], sizes = [2, 1024], strides = [1, 1]} : vector<16x1024xf32> to vector<2x1024xf32>
    %131 = arith.addf %129, %130 : vector<2x1024xf32>
    %132 = vector.extract_strided_slice %68 {offsets = [6, 0], sizes = [2, 1024], strides = [1, 1]} : vector<16x1024xf32> to vector<2x1024xf32>
    %133 = arith.mulf %132, %131 : vector<2x1024xf32>
    %134 = vector.extract_strided_slice %118 {offsets = [6, 0], sizes = [2, 1024], strides = [1, 1]} : vector<16x1024xf32> to vector<2x1024xf32>
    %135 = arith.addf %133, %134 : vector<2x1024xf32>
    %136 = vector.extract_strided_slice %68 {offsets = [8, 0], sizes = [2, 1024], strides = [1, 1]} : vector<16x1024xf32> to vector<2x1024xf32>
    %137 = arith.mulf %136, %135 : vector<2x1024xf32>
    %138 = vector.extract_strided_slice %118 {offsets = [8, 0], sizes = [2, 1024], strides = [1, 1]} : vector<16x1024xf32> to vector<2x1024xf32>
    %139 = arith.addf %137, %138 : vector<2x1024xf32>
    %140 = vector.extract_strided_slice %68 {offsets = [10, 0], sizes = [2, 1024], strides = [1, 1]} : vector<16x1024xf32> to vector<2x1024xf32>
    %141 = arith.mulf %140, %139 : vector<2x1024xf32>
    %142 = vector.extract_strided_slice %118 {offsets = [10, 0], sizes = [2, 1024], strides = [1, 1]} : vector<16x1024xf32> to vector<2x1024xf32>
    %143 = arith.addf %141, %142 : vector<2x1024xf32>
    %144 = vector.extract_strided_slice %68 {offsets = [12, 0], sizes = [2, 1024], strides = [1, 1]} : vector<16x1024xf32> to vector<2x1024xf32>
    %145 = arith.mulf %144, %143 : vector<2x1024xf32>
    %146 = vector.extract_strided_slice %118 {offsets = [12, 0], sizes = [2, 1024], strides = [1, 1]} : vector<16x1024xf32> to vector<2x1024xf32>
    %147 = arith.addf %145, %146 : vector<2x1024xf32>
    %148 = vector.extract_strided_slice %68 {offsets = [14, 0], sizes = [2, 1024], strides = [1, 1]} : vector<16x1024xf32> to vector<2x1024xf32>
    %149 = arith.mulf %148, %147 : vector<2x1024xf32>
    %150 = vector.extract_strided_slice %118 {offsets = [14, 0], sizes = [2, 1024], strides = [1, 1]} : vector<16x1024xf32> to vector<2x1024xf32>
    %151 = arith.addf %149, %150 : vector<2x1024xf32>
    %152 = tpu.concatenate %123, %127, %131, %135, %139, %143, %147, %151 in 0 : vector<2x1024xf32>, vector<2x1024xf32>, vector<2x1024xf32>, vector<2x1024xf32>, vector<2x1024xf32>, vector<2x1024xf32>, vector<2x1024xf32>, vector<2x1024xf32> -> vector<16x1024xf32>
    %153 = vector.broadcast %4 : vector<1x64xf32> to vector<16x64xf32>
    %154 = arith.mulf %153, %37 : vector<16x64xf32>
    %155 = vector.extract_strided_slice %41 {offsets = [0, 0], sizes = [16, 1], strides = [1, 1]} : vector<16x16xf32> to vector<16x1xf32>
    %156 = vector.extract_strided_slice %152 {offsets = [0, 0], sizes = [16, 64], strides = [1, 1]} : vector<16x1024xf32> to vector<16x64xf32>
    %157 = vector.broadcast %155 : vector<16x1xf32> to vector<16x64xf32>
    %158 = arith.mulf %157, %156 : vector<16x64xf32>
    %159 = arith.addf %154, %158 : vector<16x64xf32>
    %160 = vector.extract_strided_slice %41 {offsets = [0, 1], sizes = [16, 1], strides = [1, 1]} : vector<16x16xf32> to vector<16x1xf32>
    %161 = vector.extract_strided_slice %152 {offsets = [0, 64], sizes = [16, 64], strides = [1, 1]} : vector<16x1024xf32> to vector<16x64xf32>
    %162 = vector.broadcast %160 : vector<16x1xf32> to vector<16x64xf32>
    %163 = arith.mulf %162, %161 : vector<16x64xf32>
    %164 = arith.addf %159, %163 : vector<16x64xf32>
    %165 = vector.extract_strided_slice %41 {offsets = [0, 2], sizes = [16, 1], strides = [1, 1]} : vector<16x16xf32> to vector<16x1xf32>
    %166 = vector.extract_strided_slice %152 {offsets = [0, 128], sizes = [16, 64], strides = [1, 1]} : vector<16x1024xf32> to vector<16x64xf32>
    %167 = vector.broadcast %165 : vector<16x1xf32> to vector<16x64xf32>
    %168 = arith.mulf %167, %166 : vector<16x64xf32>
    %169 = arith.addf %164, %168 : vector<16x64xf32>
    %170 = vector.extract_strided_slice %41 {offsets = [0, 3], sizes = [16, 1], strides = [1, 1]} : vector<16x16xf32> to vector<16x1xf32>
    %171 = vector.extract_strided_slice %152 {offsets = [0, 192], sizes = [16, 64], strides = [1, 1]} : vector<16x1024xf32> to vector<16x64xf32>
    %172 = vector.broadcast %170 : vector<16x1xf32> to vector<16x64xf32>
    %173 = arith.mulf %172, %171 : vector<16x64xf32>
    %174 = arith.addf %169, %173 : vector<16x64xf32>
    %175 = vector.extract_strided_slice %41 {offsets = [0, 4], sizes = [16, 1], strides = [1, 1]} : vector<16x16xf32> to vector<16x1xf32>
    %176 = vector.extract_strided_slice %152 {offsets = [0, 256], sizes = [16, 64], strides = [1, 1]} : vector<16x1024xf32> to vector<16x64xf32>
    %177 = vector.broadcast %175 : vector<16x1xf32> to vector<16x64xf32>
    %178 = arith.mulf %177, %176 : vector<16x64xf32>
    %179 = arith.addf %174, %178 : vector<16x64xf32>
    %180 = vector.extract_strided_slice %41 {offsets = [0, 5], sizes = [16, 1], strides = [1, 1]} : vector<16x16xf32> to vector<16x1xf32>
    %181 = vector.extract_strided_slice %152 {offsets = [0, 320], sizes = [16, 64], strides = [1, 1]} : vector<16x1024xf32> to vector<16x64xf32>
    %182 = vector.broadcast %180 : vector<16x1xf32> to vector<16x64xf32>
    %183 = arith.mulf %182, %181 : vector<16x64xf32>
    %184 = arith.addf %179, %183 : vector<16x64xf32>
    %185 = vector.extract_strided_slice %41 {offsets = [0, 6], sizes = [16, 1], strides = [1, 1]} : vector<16x16xf32> to vector<16x1xf32>
    %186 = vector.extract_strided_slice %152 {offsets = [0, 384], sizes = [16, 64], strides = [1, 1]} : vector<16x1024xf32> to vector<16x64xf32>
    %187 = vector.broadcast %185 : vector<16x1xf32> to vector<16x64xf32>
    %188 = arith.mulf %187, %186 : vector<16x64xf32>
    %189 = arith.addf %184, %188 : vector<16x64xf32>
    %190 = vector.extract_strided_slice %41 {offsets = [0, 7], sizes = [16, 1], strides = [1, 1]} : vector<16x16xf32> to vector<16x1xf32>
    %191 = vector.extract_strided_slice %152 {offsets = [0, 448], sizes = [16, 64], strides = [1, 1]} : vector<16x1024xf32> to vector<16x64xf32>
    %192 = vector.broadcast %190 : vector<16x1xf32> to vector<16x64xf32>
    %193 = arith.mulf %192, %191 : vector<16x64xf32>
    %194 = arith.addf %189, %193 : vector<16x64xf32>
    %195 = vector.extract_strided_slice %41 {offsets = [0, 8], sizes = [16, 1], strides = [1, 1]} : vector<16x16xf32> to vector<16x1xf32>
    %196 = vector.extract_strided_slice %152 {offsets = [0, 512], sizes = [16, 64], strides = [1, 1]} : vector<16x1024xf32> to vector<16x64xf32>
    %197 = vector.broadcast %195 : vector<16x1xf32> to vector<16x64xf32>
    %198 = arith.mulf %197, %196 : vector<16x64xf32>
    %199 = arith.addf %194, %198 : vector<16x64xf32>
    %200 = vector.extract_strided_slice %41 {offsets = [0, 9], sizes = [16, 1], strides = [1, 1]} : vector<16x16xf32> to vector<16x1xf32>
    %201 = vector.extract_strided_slice %152 {offsets = [0, 576], sizes = [16, 64], strides = [1, 1]} : vector<16x1024xf32> to vector<16x64xf32>
    %202 = vector.broadcast %200 : vector<16x1xf32> to vector<16x64xf32>
    %203 = arith.mulf %202, %201 : vector<16x64xf32>
    %204 = arith.addf %199, %203 : vector<16x64xf32>
    %205 = vector.extract_strided_slice %41 {offsets = [0, 10], sizes = [16, 1], strides = [1, 1]} : vector<16x16xf32> to vector<16x1xf32>
    %206 = vector.extract_strided_slice %152 {offsets = [0, 640], sizes = [16, 64], strides = [1, 1]} : vector<16x1024xf32> to vector<16x64xf32>
    %207 = vector.broadcast %205 : vector<16x1xf32> to vector<16x64xf32>
    %208 = arith.mulf %207, %206 : vector<16x64xf32>
    %209 = arith.addf %204, %208 : vector<16x64xf32>
    %210 = vector.extract_strided_slice %41 {offsets = [0, 11], sizes = [16, 1], strides = [1, 1]} : vector<16x16xf32> to vector<16x1xf32>
    %211 = vector.extract_strided_slice %152 {offsets = [0, 704], sizes = [16, 64], strides = [1, 1]} : vector<16x1024xf32> to vector<16x64xf32>
    %212 = vector.broadcast %210 : vector<16x1xf32> to vector<16x64xf32>
    %213 = arith.mulf %212, %211 : vector<16x64xf32>
    %214 = arith.addf %209, %213 : vector<16x64xf32>
    %215 = vector.extract_strided_slice %41 {offsets = [0, 12], sizes = [16, 1], strides = [1, 1]} : vector<16x16xf32> to vector<16x1xf32>
    %216 = vector.extract_strided_slice %152 {offsets = [0, 768], sizes = [16, 64], strides = [1, 1]} : vector<16x1024xf32> to vector<16x64xf32>
    %217 = vector.broadcast %215 : vector<16x1xf32> to vector<16x64xf32>
    %218 = arith.mulf %217, %216 : vector<16x64xf32>
    %219 = arith.addf %214, %218 : vector<16x64xf32>
    %220 = vector.extract_strided_slice %41 {offsets = [0, 13], sizes = [16, 1], strides = [1, 1]} : vector<16x16xf32> to vector<16x1xf32>
    %221 = vector.extract_strided_slice %152 {offsets = [0, 832], sizes = [16, 64], strides = [1, 1]} : vector<16x1024xf32> to vector<16x64xf32>
    %222 = vector.broadcast %220 : vector<16x1xf32> to vector<16x64xf32>
    %223 = arith.mulf %222, %221 : vector<16x64xf32>
    %224 = arith.addf %219, %223 : vector<16x64xf32>
    %225 = vector.extract_strided_slice %41 {offsets = [0, 14], sizes = [16, 1], strides = [1, 1]} : vector<16x16xf32> to vector<16x1xf32>
    %226 = vector.extract_strided_slice %152 {offsets = [0, 896], sizes = [16, 64], strides = [1, 1]} : vector<16x1024xf32> to vector<16x64xf32>
    %227 = vector.broadcast %225 : vector<16x1xf32> to vector<16x64xf32>
    %228 = arith.mulf %227, %226 : vector<16x64xf32>
    %229 = arith.addf %224, %228 : vector<16x64xf32>
    %230 = vector.extract_strided_slice %41 {offsets = [0, 15], sizes = [16, 1], strides = [1, 1]} : vector<16x16xf32> to vector<16x1xf32>
    %231 = vector.extract_strided_slice %152 {offsets = [0, 960], sizes = [16, 64], strides = [1, 1]} : vector<16x1024xf32> to vector<16x64xf32>
    %232 = vector.broadcast %230 : vector<16x1xf32> to vector<16x64xf32>
    %233 = arith.mulf %232, %231 : vector<16x64xf32>
    %234 = arith.addf %229, %233 : vector<16x64xf32>
    %235 = arith.negf %8 : vector<16x64xf32>
    %236 = math.exp %235 : vector<16x64xf32>
    %cst_22 = arith.constant 1.000000e+00 : f32
    %237 = vector.broadcast %cst_22 : f32 to vector<16x64xf32>
    %238 = arith.addf %237, %236 : vector<16x64xf32>
    %239 = arith.divf %237, %238 : vector<16x64xf32>
    %240 = arith.mulf %8, %239 : vector<16x64xf32>
    %241 = arith.mulf %234, %240 : vector<16x64xf32>
    %c0_23 = arith.constant 0 : index
    %c0_24 = arith.constant 0 : index
    %242 = vector.load %arg6[%c0_23, %c0_24] : memref<64x32xf32, #tpu.memory_space<vmem>>, vector<64x32xf32>
    %cst_25 = arith.constant dense<0.000000e+00> : vector<16x32xf32>
    %243 = tpu.matmul %241, %242, %cst_25 {dimension_numbers = #tpu.dot_dimension_numbers<[1], [0], [0], [1], [0, 0, 1, 1], [], []>} : vector<16x64xf32>, vector<64x32xf32>, vector<16x32xf32> -> vector<16x32xf32>
    %244 = arith.addf %0, %243 : vector<16x32xf32>
    %c0_26 = arith.constant 0 : index
    %c0_27 = arith.constant 0 : index
    %245 = vector.load %arg8[%c0_26, %c0_27] : memref<2x32xf32, #tpu.memory_space<vmem>>, vector<1x32xf32>
    %c1 = arith.constant 1 : index
    %c0_28 = arith.constant 0 : index
    %246 = vector.load %arg8[%c1, %c0_28] : memref<2x32xf32, #tpu.memory_space<vmem>>, vector<1x32xf32>
    %247 = tpu.iota {dimensions = array<i32: 0>} : vector<2x16xi32>
    %248 = tpu.iota {dimensions = array<i32: 1>} : vector<2x16xi32>
    %c2_i32 = arith.constant 2 : i32
    %c0_i32 = arith.constant 0 : i32
    %249 = arith.cmpi eq, %c2_i32, %c0_i32 : i32
    %c1_i32 = arith.constant 1 : i32
    %250 = arith.select %249, %c1_i32, %c2_i32 : i32
    %251 = vector.broadcast %250 : i32 to vector<2x16xi32>
    %252 = arith.remsi %248, %251 : vector<2x16xi32>
    %c0_i32_29 = arith.constant 0 : i32
    %253 = vector.broadcast %c0_i32_29 : i32 to vector<2x16xi32>
    %254 = arith.cmpi ne, %252, %253 : vector<2x16xi32>
    %c0_i32_30 = arith.constant 0 : i32
    %255 = vector.broadcast %c0_i32_30 : i32 to vector<2x16xi32>
    %256 = arith.cmpi slt, %252, %255 : vector<2x16xi32>
    %c0_i32_31 = arith.constant 0 : i32
    %257 = arith.cmpi slt, %250, %c0_i32_31 : i32
    %258 = vector.broadcast %257 : i1 to vector<2x16xi1>
    %259 = vector.broadcast %258 : vector<2x16xi1> to vector<2x16xi1>
    %260 = arith.xori %256, %259 : vector<2x16xi1>
    %261 = arith.andi %260, %254 : vector<2x16xi1>
    %262 = vector.broadcast %250 : i32 to vector<2x16xi32>
    %263 = arith.addi %252, %262 : vector<2x16xi32>
    %264 = arith.select %261, %263, %252 : vector<2x16xi1>, vector<2x16xi32>
    %265 = arith.cmpi eq, %264, %247 : vector<2x16xi32>
    %cst_32 = arith.constant 1.250000e-01 : f32
    %cst_33 = arith.constant 0.000000e+00 : f32
    %266 = vector.broadcast %cst_32 : f32 to vector<2x16xf32>
    %267 = vector.broadcast %cst_33 : f32 to vector<2x16xf32>
    %268 = arith.select %265, %266, %267 : vector<2x16xi1>, vector<2x16xf32>
    %cst_34 = arith.constant dense<0.000000e+00> : vector<2x32xf32>
    %269 = tpu.matmul %268, %244, %cst_34 {dimension_numbers = #tpu.dot_dimension_numbers<[1], [0], [0], [1], [0, 0, 1, 1], [], []>} : vector<2x16xf32>, vector<16x32xf32>, vector<2x32xf32> -> vector<2x32xf32>
    %c0_35 = arith.constant 0 : index
    %c0_36 = arith.constant 0 : index
    %270 = vector.load %arg7[%c0_35, %c0_36] : memref<32x32xf32, #tpu.memory_space<vmem>>, vector<32x32xf32>
    %cst_37 = arith.constant dense<0.000000e+00> : vector<2x32xf32>
    %271 = tpu.matmul %269, %270, %cst_37 {dimension_numbers = #tpu.dot_dimension_numbers<[1], [0], [0], [1], [0, 0, 1, 1], [], []>} : vector<2x32xf32>, vector<32x32xf32>, vector<2x32xf32> -> vector<2x32xf32>
    %cst_38 = arith.constant 1.000000e+00 : f32
    %272 = vector.broadcast %cst_38 : f32 to vector<1x32xf32>
    %273 = arith.mulf %272, %245 : vector<1x32xf32>
    %274 = vector.broadcast %273 : vector<1x32xf32> to vector<2x32xf32>
    %275 = arith.addf %271, %274 : vector<2x32xf32>
    %276 = vector.broadcast %246 : vector<1x32xf32> to vector<2x32xf32>
    %277 = arith.addf %275, %276 : vector<2x32xf32>
    %278 = arith.negf %277 : vector<2x32xf32>
    %279 = math.exp %278 : vector<2x32xf32>
    %cst_39 = arith.constant 1.000000e+00 : f32
    %280 = vector.broadcast %cst_39 : f32 to vector<2x32xf32>
    %281 = arith.addf %280, %279 : vector<2x32xf32>
    %282 = arith.divf %280, %281 : vector<2x32xf32>
    %283 = tpu.iota {dimensions = array<i32: 0>} : vector<16x2xi32>
    %284 = tpu.iota {dimensions = array<i32: 1>} : vector<16x2xi32>
    %c2_i32_40 = arith.constant 2 : i32
    %c0_i32_41 = arith.constant 0 : i32
    %285 = arith.cmpi eq, %c2_i32_40, %c0_i32_41 : i32
    %c1_i32_42 = arith.constant 1 : i32
    %286 = arith.select %285, %c1_i32_42, %c2_i32_40 : i32
    %287 = vector.broadcast %286 : i32 to vector<16x2xi32>
    %288 = arith.remsi %283, %287 : vector<16x2xi32>
    %c0_i32_43 = arith.constant 0 : i32
    %289 = vector.broadcast %c0_i32_43 : i32 to vector<16x2xi32>
    %290 = arith.cmpi ne, %288, %289 : vector<16x2xi32>
    %c0_i32_44 = arith.constant 0 : i32
    %291 = vector.broadcast %c0_i32_44 : i32 to vector<16x2xi32>
    %292 = arith.cmpi slt, %288, %291 : vector<16x2xi32>
    %c0_i32_45 = arith.constant 0 : i32
    %293 = arith.cmpi slt, %286, %c0_i32_45 : i32
    %294 = vector.broadcast %293 : i1 to vector<16x2xi1>
    %295 = vector.broadcast %294 : vector<16x2xi1> to vector<16x2xi1>
    %296 = arith.xori %292, %295 : vector<16x2xi1>
    %297 = arith.andi %296, %290 : vector<16x2xi1>
    %298 = vector.broadcast %286 : i32 to vector<16x2xi32>
    %299 = arith.addi %288, %298 : vector<16x2xi32>
    %300 = arith.select %297, %299, %288 : vector<16x2xi1>, vector<16x2xi32>
    %301 = arith.cmpi eq, %300, %284 : vector<16x2xi32>
    %302 = arith.extui %301 : vector<16x2xi1> to vector<16x2xi32>
    %303 = arith.sitofp %302 : vector<16x2xi32> to vector<16x2xf32>
    %cst_46 = arith.constant dense<0.000000e+00> : vector<16x32xf32>
    %304 = tpu.matmul %303, %282, %cst_46 {dimension_numbers = #tpu.dot_dimension_numbers<[1], [0], [0], [1], [0, 0, 1, 1], [], []>} : vector<16x2xf32>, vector<2x32xf32>, vector<16x32xf32> -> vector<16x32xf32>
    %305 = arith.mulf %244, %304 : vector<16x32xf32>
    %c0_47 = arith.constant 0 : index
    %c0_48 = arith.constant 0 : index
    %306 = vector.load %arg9[%c0_47, %c0_48] : memref<32x16xf32, #tpu.memory_space<vmem>>, vector<32x16xf32>
    %cst_49 = arith.constant dense<0.000000e+00> : vector<16x16xf32>
    %307 = tpu.matmul %305, %306, %cst_49 {dimension_numbers = #tpu.dot_dimension_numbers<[1], [0], [0], [1], [0, 0, 1, 1], [], []>} : vector<16x32xf32>, vector<32x16xf32>, vector<16x16xf32> -> vector<16x16xf32>
    %c0_50 = arith.constant 0 : index
    %c0_51 = arith.constant 0 : index
    %308 = vector.load %arg10[%c0_50, %c0_51] : memref<1x16xf32, #tpu.memory_space<vmem>>, vector<1x16xf32>
    %309 = vector.broadcast %308 : vector<1x16xf32> to vector<16x16xf32>
    %310 = arith.addf %307, %309 : vector<16x16xf32>
    %c0_52 = arith.constant 0 : index
    %c0_53 = arith.constant 0 : index
    %311 = vector.load %arg11[%c0_52, %c0_53] : memref<16x32xf32, #tpu.memory_space<vmem>>, vector<16x32xf32>
    %cst_54 = arith.constant dense<0.000000e+00> : vector<16x32xf32>
    %312 = tpu.matmul %310, %311, %cst_54 {dimension_numbers = #tpu.dot_dimension_numbers<[1], [0], [0], [1], [0, 0, 1, 1], [], []>} : vector<16x16xf32>, vector<16x32xf32>, vector<16x32xf32> -> vector<16x32xf32>
    %c0_55 = arith.constant 0 : index
    %c0_56 = arith.constant 0 : index
    %313 = vector.load %arg12[%c0_55, %c0_56] : memref<1x32xf32, #tpu.memory_space<vmem>>, vector<1x32xf32>
    %314 = vector.broadcast %313 : vector<1x32xf32> to vector<16x32xf32>
    %315 = arith.addf %312, %314 : vector<16x32xf32>
    %c0_57 = arith.constant 0 : index
    %c0_58 = arith.constant 0 : index
    %316 = vector.load %arg14[%c0_57, %c0_58] : memref<7x64xf32, #tpu.memory_space<vmem>>, vector<4x64xf32>
    %c4_59 = arith.constant 4 : index
    %c0_60 = arith.constant 0 : index
    %317 = vector.load %arg14[%c4_59, %c0_60] : memref<7x64xf32, #tpu.memory_space<vmem>>, vector<1x64xf32>
    %c5_61 = arith.constant 5 : index
    %c0_62 = arith.constant 0 : index
    %318 = vector.load %arg14[%c5_61, %c0_62] : memref<7x64xf32, #tpu.memory_space<vmem>>, vector<1x64xf32>
    %c6_63 = arith.constant 6 : index
    %c0_64 = arith.constant 0 : index
    %319 = vector.load %arg14[%c6_63, %c0_64] : memref<7x64xf32, #tpu.memory_space<vmem>>, vector<1x64xf32>
    %c0_65 = arith.constant 0 : index
    %c0_66 = arith.constant 0 : index
    %320 = vector.load %arg13[%c0_65, %c0_66] : memref<32x128xf32, #tpu.memory_space<vmem>>, vector<32x128xf32>
    %cst_67 = arith.constant dense<0.000000e+00> : vector<16x128xf32>
    %321 = tpu.matmul %315, %320, %cst_67 {dimension_numbers = #tpu.dot_dimension_numbers<[1], [0], [0], [1], [0, 0, 1, 1], [], []>} : vector<16x32xf32>, vector<32x128xf32>, vector<16x128xf32> -> vector<16x128xf32>
    %322 = vector.extract_strided_slice %321 {offsets = [0, 0], sizes = [16, 64], strides = [1, 1]} : vector<16x128xf32> to vector<16x64xf32>
    %323 = vector.extract_strided_slice %321 {offsets = [0, 64], sizes = [16, 64], strides = [1, 1]} : vector<16x128xf32> to vector<16x64xf32>
    %cst_68 = arith.constant 0.000000e+00 : f32
    %324 = vector.broadcast %cst_68 : f32 to vector<6x64xf32>
    %325 = tpu.concatenate %324, %322 in 0 : vector<6x64xf32>, vector<16x64xf32> -> vector<22x64xf32>
    %326 = vector.extract_strided_slice %325 {offsets = [0, 0], sizes = [16, 64], strides = [1, 1]} : vector<22x64xf32> to vector<16x64xf32>
    %327 = vector.extract_strided_slice %316 {offsets = [0, 0], sizes = [1, 64], strides = [1, 1]} : vector<4x64xf32> to vector<1x64xf32>
    %328 = vector.broadcast %327 : vector<1x64xf32> to vector<16x64xf32>
    %329 = arith.mulf %326, %328 : vector<16x64xf32>
    %330 = vector.broadcast %317 : vector<1x64xf32> to vector<16x64xf32>
    %331 = arith.addf %330, %329 : vector<16x64xf32>
    %332 = vector.extract_strided_slice %325 {offsets = [2, 0], sizes = [16, 64], strides = [1, 1]} : vector<22x64xf32> to vector<16x64xf32>
    %333 = vector.extract_strided_slice %316 {offsets = [1, 0], sizes = [1, 64], strides = [1, 1]} : vector<4x64xf32> to vector<1x64xf32>
    %334 = vector.broadcast %333 : vector<1x64xf32> to vector<16x64xf32>
    %335 = arith.mulf %332, %334 : vector<16x64xf32>
    %336 = arith.addf %331, %335 : vector<16x64xf32>
    %337 = vector.extract_strided_slice %325 {offsets = [4, 0], sizes = [16, 64], strides = [1, 1]} : vector<22x64xf32> to vector<16x64xf32>
    %338 = vector.extract_strided_slice %316 {offsets = [2, 0], sizes = [1, 64], strides = [1, 1]} : vector<4x64xf32> to vector<1x64xf32>
    %339 = vector.broadcast %338 : vector<1x64xf32> to vector<16x64xf32>
    %340 = arith.mulf %337, %339 : vector<16x64xf32>
    %341 = arith.addf %336, %340 : vector<16x64xf32>
    %342 = vector.extract_strided_slice %325 {offsets = [6, 0], sizes = [16, 64], strides = [1, 1]} : vector<22x64xf32> to vector<16x64xf32>
    %343 = vector.extract_strided_slice %316 {offsets = [3, 0], sizes = [1, 64], strides = [1, 1]} : vector<4x64xf32> to vector<1x64xf32>
    %344 = vector.broadcast %343 : vector<1x64xf32> to vector<16x64xf32>
    %345 = arith.mulf %342, %344 : vector<16x64xf32>
    %346 = arith.addf %341, %345 : vector<16x64xf32>
    %347 = arith.negf %346 : vector<16x64xf32>
    %348 = math.exp %347 : vector<16x64xf32>
    %cst_69 = arith.constant 1.000000e+00 : f32
    %349 = vector.broadcast %cst_69 : f32 to vector<16x64xf32>
    %350 = arith.addf %349, %348 : vector<16x64xf32>
    %351 = arith.divf %349, %350 : vector<16x64xf32>
    %352 = arith.mulf %346, %351 : vector<16x64xf32>
    %c0_70 = arith.constant 0 : index
    %c0_71 = arith.constant 0 : index
    %353 = vector.load %arg15[%c0_70, %c0_71] : memref<64x34xf32, #tpu.memory_space<vmem>>, vector<64x34xf32>
    %cst_72 = arith.constant dense<0.000000e+00> : vector<16x34xf32>
    %354 = tpu.matmul %352, %353, %cst_72 {dimension_numbers = #tpu.dot_dimension_numbers<[1], [0], [0], [1], [0, 0, 1, 1], [], []>} : vector<16x64xf32>, vector<64x34xf32>, vector<16x34xf32> -> vector<16x34xf32>
    %355 = vector.extract_strided_slice %354 {offsets = [0, 0], sizes = [16, 16], strides = [1, 1]} : vector<16x34xf32> to vector<16x16xf32>
    %356 = vector.extract_strided_slice %354 {offsets = [0, 16], sizes = [16, 16], strides = [1, 1]} : vector<16x34xf32> to vector<16x16xf32>
    %357 = vector.extract_strided_slice %354 {offsets = [0, 32], sizes = [16, 2], strides = [1, 1]} : vector<16x34xf32> to vector<16x2xf32>
    %c0_73 = arith.constant 0 : index
    %c0_74 = arith.constant 0 : index
    %358 = vector.load %arg16[%c0_73, %c0_74] : memref<2x64xf32, #tpu.memory_space<vmem>>, vector<2x64xf32>
    %cst_75 = arith.constant dense<0.000000e+00> : vector<16x64xf32>
    %359 = tpu.matmul %357, %358, %cst_75 {dimension_numbers = #tpu.dot_dimension_numbers<[1], [0], [0], [1], [0, 0, 1, 1], [], []>} : vector<16x2xf32>, vector<2x64xf32>, vector<16x64xf32> -> vector<16x64xf32>
    %360 = vector.broadcast %318 : vector<1x64xf32> to vector<16x64xf32>
    %361 = arith.addf %359, %360 : vector<16x64xf32>
    %cst_76 = arith.constant 0.000000e+00 : f32
    %362 = vector.broadcast %cst_76 : f32 to vector<16x64xf32>
    %363 = arith.maximumf %361, %362 : vector<16x64xf32>
    %364 = vector.broadcast %cst_76 : f32 to vector<16x64xf32>
    %365 = arith.subf %361, %364 : vector<16x64xf32>
    %366 = arith.cmpf one, %365, %365 : vector<16x64xf32>
    %367 = vector.broadcast %cst_76 : f32 to vector<16x64xf32>
    %368 = arith.addf %361, %367 : vector<16x64xf32>
    %369 = math.absf %365 : vector<16x64xf32>
    %cst_77 = arith.constant 0.000000e+00 : f32
    %370 = vector.broadcast %cst_77 : f32 to vector<16x64xf32>
    %371 = arith.subf %370, %369 : vector<16x64xf32>
    %372 = math.exp %371 : vector<16x64xf32>
    %373 = math.log1p %372 : vector<16x64xf32>
    %374 = arith.addf %363, %373 : vector<16x64xf32>
    %375 = arith.select %366, %368, %374 : vector<16x64xi1>, vector<16x64xf32>
    %c0_78 = arith.constant 0 : index
    %c0_79 = arith.constant 0 : index
    %376 = vector.load %arg17[%c0_78, %c0_79] : memref<1x1024xf32, #tpu.memory_space<vmem>>, vector<1x1024xf32>
    %377 = math.exp %376 : vector<1x1024xf32>
    %cst_80 = arith.constant 0.000000e+00 : f32
    %378 = vector.broadcast %cst_80 : f32 to vector<1x1024xf32>
    %379 = arith.subf %378, %377 : vector<1x1024xf32>
    %380 = tpu.concatenate %375, %375, %375, %375, %375, %375, %375, %375, %375, %375, %375, %375, %375, %375, %375, %375 in 1 : vector<16x64xf32>, vector<16x64xf32>, vector<16x64xf32>, vector<16x64xf32>, vector<16x64xf32>, vector<16x64xf32>, vector<16x64xf32>, vector<16x64xf32>, vector<16x64xf32>, vector<16x64xf32>, vector<16x64xf32>, vector<16x64xf32>, vector<16x64xf32>, vector<16x64xf32>, vector<16x64xf32>, vector<16x64xf32> -> vector<16x1024xf32>
    %381 = vector.broadcast %379 : vector<1x1024xf32> to vector<16x1024xf32>
    %382 = arith.mulf %381, %380 : vector<16x1024xf32>
    %383 = math.exp %382 : vector<16x1024xf32>
    %384 = arith.mulf %375, %352 : vector<16x64xf32>
    %385 = vector.extract_strided_slice %355 {offsets = [0, 0], sizes = [16, 1], strides = [1, 1]} : vector<16x16xf32> to vector<16x1xf32>
    %386 = vector.broadcast %385 : vector<16x1xf32> to vector<16x64xf32>
    %387 = arith.mulf %386, %384 : vector<16x64xf32>
    %388 = vector.extract_strided_slice %355 {offsets = [0, 1], sizes = [16, 1], strides = [1, 1]} : vector<16x16xf32> to vector<16x1xf32>
    %389 = vector.broadcast %388 : vector<16x1xf32> to vector<16x64xf32>
    %390 = arith.mulf %389, %384 : vector<16x64xf32>
    %391 = vector.extract_strided_slice %355 {offsets = [0, 2], sizes = [16, 1], strides = [1, 1]} : vector<16x16xf32> to vector<16x1xf32>
    %392 = vector.broadcast %391 : vector<16x1xf32> to vector<16x64xf32>
    %393 = arith.mulf %392, %384 : vector<16x64xf32>
    %394 = vector.extract_strided_slice %355 {offsets = [0, 3], sizes = [16, 1], strides = [1, 1]} : vector<16x16xf32> to vector<16x1xf32>
    %395 = vector.broadcast %394 : vector<16x1xf32> to vector<16x64xf32>
    %396 = arith.mulf %395, %384 : vector<16x64xf32>
    %397 = vector.extract_strided_slice %355 {offsets = [0, 4], sizes = [16, 1], strides = [1, 1]} : vector<16x16xf32> to vector<16x1xf32>
    %398 = vector.broadcast %397 : vector<16x1xf32> to vector<16x64xf32>
    %399 = arith.mulf %398, %384 : vector<16x64xf32>
    %400 = vector.extract_strided_slice %355 {offsets = [0, 5], sizes = [16, 1], strides = [1, 1]} : vector<16x16xf32> to vector<16x1xf32>
    %401 = vector.broadcast %400 : vector<16x1xf32> to vector<16x64xf32>
    %402 = arith.mulf %401, %384 : vector<16x64xf32>
    %403 = vector.extract_strided_slice %355 {offsets = [0, 6], sizes = [16, 1], strides = [1, 1]} : vector<16x16xf32> to vector<16x1xf32>
    %404 = vector.broadcast %403 : vector<16x1xf32> to vector<16x64xf32>
    %405 = arith.mulf %404, %384 : vector<16x64xf32>
    %406 = vector.extract_strided_slice %355 {offsets = [0, 7], sizes = [16, 1], strides = [1, 1]} : vector<16x16xf32> to vector<16x1xf32>
    %407 = vector.broadcast %406 : vector<16x1xf32> to vector<16x64xf32>
    %408 = arith.mulf %407, %384 : vector<16x64xf32>
    %409 = vector.extract_strided_slice %355 {offsets = [0, 8], sizes = [16, 1], strides = [1, 1]} : vector<16x16xf32> to vector<16x1xf32>
    %410 = vector.broadcast %409 : vector<16x1xf32> to vector<16x64xf32>
    %411 = arith.mulf %410, %384 : vector<16x64xf32>
    %412 = vector.extract_strided_slice %355 {offsets = [0, 9], sizes = [16, 1], strides = [1, 1]} : vector<16x16xf32> to vector<16x1xf32>
    %413 = vector.broadcast %412 : vector<16x1xf32> to vector<16x64xf32>
    %414 = arith.mulf %413, %384 : vector<16x64xf32>
    %415 = vector.extract_strided_slice %355 {offsets = [0, 10], sizes = [16, 1], strides = [1, 1]} : vector<16x16xf32> to vector<16x1xf32>
    %416 = vector.broadcast %415 : vector<16x1xf32> to vector<16x64xf32>
    %417 = arith.mulf %416, %384 : vector<16x64xf32>
    %418 = vector.extract_strided_slice %355 {offsets = [0, 11], sizes = [16, 1], strides = [1, 1]} : vector<16x16xf32> to vector<16x1xf32>
    %419 = vector.broadcast %418 : vector<16x1xf32> to vector<16x64xf32>
    %420 = arith.mulf %419, %384 : vector<16x64xf32>
    %421 = vector.extract_strided_slice %355 {offsets = [0, 12], sizes = [16, 1], strides = [1, 1]} : vector<16x16xf32> to vector<16x1xf32>
    %422 = vector.broadcast %421 : vector<16x1xf32> to vector<16x64xf32>
    %423 = arith.mulf %422, %384 : vector<16x64xf32>
    %424 = vector.extract_strided_slice %355 {offsets = [0, 13], sizes = [16, 1], strides = [1, 1]} : vector<16x16xf32> to vector<16x1xf32>
    %425 = vector.broadcast %424 : vector<16x1xf32> to vector<16x64xf32>
    %426 = arith.mulf %425, %384 : vector<16x64xf32>
    %427 = vector.extract_strided_slice %355 {offsets = [0, 14], sizes = [16, 1], strides = [1, 1]} : vector<16x16xf32> to vector<16x1xf32>
    %428 = vector.broadcast %427 : vector<16x1xf32> to vector<16x64xf32>
    %429 = arith.mulf %428, %384 : vector<16x64xf32>
    %430 = vector.extract_strided_slice %355 {offsets = [0, 15], sizes = [16, 1], strides = [1, 1]} : vector<16x16xf32> to vector<16x1xf32>
    %431 = vector.broadcast %430 : vector<16x1xf32> to vector<16x64xf32>
    %432 = arith.mulf %431, %384 : vector<16x64xf32>
    %433 = tpu.concatenate %387, %390, %393, %396, %399, %402, %405, %408, %411, %414, %417, %420, %423, %426, %429, %432 in 1 : vector<16x64xf32>, vector<16x64xf32>, vector<16x64xf32>, vector<16x64xf32>, vector<16x64xf32>, vector<16x64xf32>, vector<16x64xf32>, vector<16x64xf32>, vector<16x64xf32>, vector<16x64xf32>, vector<16x64xf32>, vector<16x64xf32>, vector<16x64xf32>, vector<16x64xf32>, vector<16x64xf32>, vector<16x64xf32> -> vector<16x1024xf32>
    %cst_81 = arith.constant 0.000000e+00 : f32
    %434 = vector.broadcast %cst_81 : f32 to vector<2x1024xf32>
    %435 = vector.extract_strided_slice %383 {offsets = [0, 0], sizes = [2, 1024], strides = [1, 1]} : vector<16x1024xf32> to vector<2x1024xf32>
    %436 = arith.mulf %435, %434 : vector<2x1024xf32>
    %437 = vector.extract_strided_slice %433 {offsets = [0, 0], sizes = [2, 1024], strides = [1, 1]} : vector<16x1024xf32> to vector<2x1024xf32>
    %438 = arith.addf %436, %437 : vector<2x1024xf32>
    %439 = vector.extract_strided_slice %383 {offsets = [2, 0], sizes = [2, 1024], strides = [1, 1]} : vector<16x1024xf32> to vector<2x1024xf32>
    %440 = arith.mulf %439, %438 : vector<2x1024xf32>
    %441 = vector.extract_strided_slice %433 {offsets = [2, 0], sizes = [2, 1024], strides = [1, 1]} : vector<16x1024xf32> to vector<2x1024xf32>
    %442 = arith.addf %440, %441 : vector<2x1024xf32>
    %443 = vector.extract_strided_slice %383 {offsets = [4, 0], sizes = [2, 1024], strides = [1, 1]} : vector<16x1024xf32> to vector<2x1024xf32>
    %444 = arith.mulf %443, %442 : vector<2x1024xf32>
    %445 = vector.extract_strided_slice %433 {offsets = [4, 0], sizes = [2, 1024], strides = [1, 1]} : vector<16x1024xf32> to vector<2x1024xf32>
    %446 = arith.addf %444, %445 : vector<2x1024xf32>
    %447 = vector.extract_strided_slice %383 {offsets = [6, 0], sizes = [2, 1024], strides = [1, 1]} : vector<16x1024xf32> to vector<2x1024xf32>
    %448 = arith.mulf %447, %446 : vector<2x1024xf32>
    %449 = vector.extract_strided_slice %433 {offsets = [6, 0], sizes = [2, 1024], strides = [1, 1]} : vector<16x1024xf32> to vector<2x1024xf32>
    %450 = arith.addf %448, %449 : vector<2x1024xf32>
    %451 = vector.extract_strided_slice %383 {offsets = [8, 0], sizes = [2, 1024], strides = [1, 1]} : vector<16x1024xf32> to vector<2x1024xf32>
    %452 = arith.mulf %451, %450 : vector<2x1024xf32>
    %453 = vector.extract_strided_slice %433 {offsets = [8, 0], sizes = [2, 1024], strides = [1, 1]} : vector<16x1024xf32> to vector<2x1024xf32>
    %454 = arith.addf %452, %453 : vector<2x1024xf32>
    %455 = vector.extract_strided_slice %383 {offsets = [10, 0], sizes = [2, 1024], strides = [1, 1]} : vector<16x1024xf32> to vector<2x1024xf32>
    %456 = arith.mulf %455, %454 : vector<2x1024xf32>
    %457 = vector.extract_strided_slice %433 {offsets = [10, 0], sizes = [2, 1024], strides = [1, 1]} : vector<16x1024xf32> to vector<2x1024xf32>
    %458 = arith.addf %456, %457 : vector<2x1024xf32>
    %459 = vector.extract_strided_slice %383 {offsets = [12, 0], sizes = [2, 1024], strides = [1, 1]} : vector<16x1024xf32> to vector<2x1024xf32>
    %460 = arith.mulf %459, %458 : vector<2x1024xf32>
    %461 = vector.extract_strided_slice %433 {offsets = [12, 0], sizes = [2, 1024], strides = [1, 1]} : vector<16x1024xf32> to vector<2x1024xf32>
    %462 = arith.addf %460, %461 : vector<2x1024xf32>
    %463 = vector.extract_strided_slice %383 {offsets = [14, 0], sizes = [2, 1024], strides = [1, 1]} : vector<16x1024xf32> to vector<2x1024xf32>
    %464 = arith.mulf %463, %462 : vector<2x1024xf32>
    %465 = vector.extract_strided_slice %433 {offsets = [14, 0], sizes = [2, 1024], strides = [1, 1]} : vector<16x1024xf32> to vector<2x1024xf32>
    %466 = arith.addf %464, %465 : vector<2x1024xf32>
    %467 = tpu.concatenate %438, %442, %446, %450, %454, %458, %462, %466 in 0 : vector<2x1024xf32>, vector<2x1024xf32>, vector<2x1024xf32>, vector<2x1024xf32>, vector<2x1024xf32>, vector<2x1024xf32>, vector<2x1024xf32>, vector<2x1024xf32> -> vector<16x1024xf32>
    %468 = vector.broadcast %319 : vector<1x64xf32> to vector<16x64xf32>
    %469 = arith.mulf %468, %352 : vector<16x64xf32>
    %470 = vector.extract_strided_slice %356 {offsets = [0, 0], sizes = [16, 1], strides = [1, 1]} : vector<16x16xf32> to vector<16x1xf32>
    %471 = vector.extract_strided_slice %467 {offsets = [0, 0], sizes = [16, 64], strides = [1, 1]} : vector<16x1024xf32> to vector<16x64xf32>
    %472 = vector.broadcast %470 : vector<16x1xf32> to vector<16x64xf32>
    %473 = arith.mulf %472, %471 : vector<16x64xf32>
    %474 = arith.addf %469, %473 : vector<16x64xf32>
    %475 = vector.extract_strided_slice %356 {offsets = [0, 1], sizes = [16, 1], strides = [1, 1]} : vector<16x16xf32> to vector<16x1xf32>
    %476 = vector.extract_strided_slice %467 {offsets = [0, 64], sizes = [16, 64], strides = [1, 1]} : vector<16x1024xf32> to vector<16x64xf32>
    %477 = vector.broadcast %475 : vector<16x1xf32> to vector<16x64xf32>
    %478 = arith.mulf %477, %476 : vector<16x64xf32>
    %479 = arith.addf %474, %478 : vector<16x64xf32>
    %480 = vector.extract_strided_slice %356 {offsets = [0, 2], sizes = [16, 1], strides = [1, 1]} : vector<16x16xf32> to vector<16x1xf32>
    %481 = vector.extract_strided_slice %467 {offsets = [0, 128], sizes = [16, 64], strides = [1, 1]} : vector<16x1024xf32> to vector<16x64xf32>
    %482 = vector.broadcast %480 : vector<16x1xf32> to vector<16x64xf32>
    %483 = arith.mulf %482, %481 : vector<16x64xf32>
    %484 = arith.addf %479, %483 : vector<16x64xf32>
    %485 = vector.extract_strided_slice %356 {offsets = [0, 3], sizes = [16, 1], strides = [1, 1]} : vector<16x16xf32> to vector<16x1xf32>
    %486 = vector.extract_strided_slice %467 {offsets = [0, 192], sizes = [16, 64], strides = [1, 1]} : vector<16x1024xf32> to vector<16x64xf32>
    %487 = vector.broadcast %485 : vector<16x1xf32> to vector<16x64xf32>
    %488 = arith.mulf %487, %486 : vector<16x64xf32>
    %489 = arith.addf %484, %488 : vector<16x64xf32>
    %490 = vector.extract_strided_slice %356 {offsets = [0, 4], sizes = [16, 1], strides = [1, 1]} : vector<16x16xf32> to vector<16x1xf32>
    %491 = vector.extract_strided_slice %467 {offsets = [0, 256], sizes = [16, 64], strides = [1, 1]} : vector<16x1024xf32> to vector<16x64xf32>
    %492 = vector.broadcast %490 : vector<16x1xf32> to vector<16x64xf32>
    %493 = arith.mulf %492, %491 : vector<16x64xf32>
    %494 = arith.addf %489, %493 : vector<16x64xf32>
    %495 = vector.extract_strided_slice %356 {offsets = [0, 5], sizes = [16, 1], strides = [1, 1]} : vector<16x16xf32> to vector<16x1xf32>
    %496 = vector.extract_strided_slice %467 {offsets = [0, 320], sizes = [16, 64], strides = [1, 1]} : vector<16x1024xf32> to vector<16x64xf32>
    %497 = vector.broadcast %495 : vector<16x1xf32> to vector<16x64xf32>
    %498 = arith.mulf %497, %496 : vector<16x64xf32>
    %499 = arith.addf %494, %498 : vector<16x64xf32>
    %500 = vector.extract_strided_slice %356 {offsets = [0, 6], sizes = [16, 1], strides = [1, 1]} : vector<16x16xf32> to vector<16x1xf32>
    %501 = vector.extract_strided_slice %467 {offsets = [0, 384], sizes = [16, 64], strides = [1, 1]} : vector<16x1024xf32> to vector<16x64xf32>
    %502 = vector.broadcast %500 : vector<16x1xf32> to vector<16x64xf32>
    %503 = arith.mulf %502, %501 : vector<16x64xf32>
    %504 = arith.addf %499, %503 : vector<16x64xf32>
    %505 = vector.extract_strided_slice %356 {offsets = [0, 7], sizes = [16, 1], strides = [1, 1]} : vector<16x16xf32> to vector<16x1xf32>
    %506 = vector.extract_strided_slice %467 {offsets = [0, 448], sizes = [16, 64], strides = [1, 1]} : vector<16x1024xf32> to vector<16x64xf32>
    %507 = vector.broadcast %505 : vector<16x1xf32> to vector<16x64xf32>
    %508 = arith.mulf %507, %506 : vector<16x64xf32>
    %509 = arith.addf %504, %508 : vector<16x64xf32>
    %510 = vector.extract_strided_slice %356 {offsets = [0, 8], sizes = [16, 1], strides = [1, 1]} : vector<16x16xf32> to vector<16x1xf32>
    %511 = vector.extract_strided_slice %467 {offsets = [0, 512], sizes = [16, 64], strides = [1, 1]} : vector<16x1024xf32> to vector<16x64xf32>
    %512 = vector.broadcast %510 : vector<16x1xf32> to vector<16x64xf32>
    %513 = arith.mulf %512, %511 : vector<16x64xf32>
    %514 = arith.addf %509, %513 : vector<16x64xf32>
    %515 = vector.extract_strided_slice %356 {offsets = [0, 9], sizes = [16, 1], strides = [1, 1]} : vector<16x16xf32> to vector<16x1xf32>
    %516 = vector.extract_strided_slice %467 {offsets = [0, 576], sizes = [16, 64], strides = [1, 1]} : vector<16x1024xf32> to vector<16x64xf32>
    %517 = vector.broadcast %515 : vector<16x1xf32> to vector<16x64xf32>
    %518 = arith.mulf %517, %516 : vector<16x64xf32>
    %519 = arith.addf %514, %518 : vector<16x64xf32>
    %520 = vector.extract_strided_slice %356 {offsets = [0, 10], sizes = [16, 1], strides = [1, 1]} : vector<16x16xf32> to vector<16x1xf32>
    %521 = vector.extract_strided_slice %467 {offsets = [0, 640], sizes = [16, 64], strides = [1, 1]} : vector<16x1024xf32> to vector<16x64xf32>
    %522 = vector.broadcast %520 : vector<16x1xf32> to vector<16x64xf32>
    %523 = arith.mulf %522, %521 : vector<16x64xf32>
    %524 = arith.addf %519, %523 : vector<16x64xf32>
    %525 = vector.extract_strided_slice %356 {offsets = [0, 11], sizes = [16, 1], strides = [1, 1]} : vector<16x16xf32> to vector<16x1xf32>
    %526 = vector.extract_strided_slice %467 {offsets = [0, 704], sizes = [16, 64], strides = [1, 1]} : vector<16x1024xf32> to vector<16x64xf32>
    %527 = vector.broadcast %525 : vector<16x1xf32> to vector<16x64xf32>
    %528 = arith.mulf %527, %526 : vector<16x64xf32>
    %529 = arith.addf %524, %528 : vector<16x64xf32>
    %530 = vector.extract_strided_slice %356 {offsets = [0, 12], sizes = [16, 1], strides = [1, 1]} : vector<16x16xf32> to vector<16x1xf32>
    %531 = vector.extract_strided_slice %467 {offsets = [0, 768], sizes = [16, 64], strides = [1, 1]} : vector<16x1024xf32> to vector<16x64xf32>
    %532 = vector.broadcast %530 : vector<16x1xf32> to vector<16x64xf32>
    %533 = arith.mulf %532, %531 : vector<16x64xf32>
    %534 = arith.addf %529, %533 : vector<16x64xf32>
    %535 = vector.extract_strided_slice %356 {offsets = [0, 13], sizes = [16, 1], strides = [1, 1]} : vector<16x16xf32> to vector<16x1xf32>
    %536 = vector.extract_strided_slice %467 {offsets = [0, 832], sizes = [16, 64], strides = [1, 1]} : vector<16x1024xf32> to vector<16x64xf32>
    %537 = vector.broadcast %535 : vector<16x1xf32> to vector<16x64xf32>
    %538 = arith.mulf %537, %536 : vector<16x64xf32>
    %539 = arith.addf %534, %538 : vector<16x64xf32>
    %540 = vector.extract_strided_slice %356 {offsets = [0, 14], sizes = [16, 1], strides = [1, 1]} : vector<16x16xf32> to vector<16x1xf32>
    %541 = vector.extract_strided_slice %467 {offsets = [0, 896], sizes = [16, 64], strides = [1, 1]} : vector<16x1024xf32> to vector<16x64xf32>
    %542 = vector.broadcast %540 : vector<16x1xf32> to vector<16x64xf32>
    %543 = arith.mulf %542, %541 : vector<16x64xf32>
    %544 = arith.addf %539, %543 : vector<16x64xf32>
    %545 = vector.extract_strided_slice %356 {offsets = [0, 15], sizes = [16, 1], strides = [1, 1]} : vector<16x16xf32> to vector<16x1xf32>
    %546 = vector.extract_strided_slice %467 {offsets = [0, 960], sizes = [16, 64], strides = [1, 1]} : vector<16x1024xf32> to vector<16x64xf32>
    %547 = vector.broadcast %545 : vector<16x1xf32> to vector<16x64xf32>
    %548 = arith.mulf %547, %546 : vector<16x64xf32>
    %549 = arith.addf %544, %548 : vector<16x64xf32>
    %550 = arith.negf %323 : vector<16x64xf32>
    %551 = math.exp %550 : vector<16x64xf32>
    %cst_82 = arith.constant 1.000000e+00 : f32
    %552 = vector.broadcast %cst_82 : f32 to vector<16x64xf32>
    %553 = arith.addf %552, %551 : vector<16x64xf32>
    %554 = arith.divf %552, %553 : vector<16x64xf32>
    %555 = arith.mulf %323, %554 : vector<16x64xf32>
    %556 = arith.mulf %549, %555 : vector<16x64xf32>
    %c0_83 = arith.constant 0 : index
    %c0_84 = arith.constant 0 : index
    %557 = vector.load %arg18[%c0_83, %c0_84] : memref<64x32xf32, #tpu.memory_space<vmem>>, vector<64x32xf32>
    %cst_85 = arith.constant dense<0.000000e+00> : vector<16x32xf32>
    %558 = tpu.matmul %556, %557, %cst_85 {dimension_numbers = #tpu.dot_dimension_numbers<[1], [0], [0], [1], [0, 0, 1, 1], [], []>} : vector<16x64xf32>, vector<64x32xf32>, vector<16x32xf32> -> vector<16x32xf32>
    %559 = arith.addf %315, %558 : vector<16x32xf32>
    %c0_86 = arith.constant 0 : index
    %c0_87 = arith.constant 0 : index
    %560 = vector.load %arg20[%c0_86, %c0_87] : memref<2x32xf32, #tpu.memory_space<vmem>>, vector<1x32xf32>
    %c1_88 = arith.constant 1 : index
    %c0_89 = arith.constant 0 : index
    %561 = vector.load %arg20[%c1_88, %c0_89] : memref<2x32xf32, #tpu.memory_space<vmem>>, vector<1x32xf32>
    %562 = tpu.iota {dimensions = array<i32: 0>} : vector<2x16xi32>
    %563 = tpu.iota {dimensions = array<i32: 1>} : vector<2x16xi32>
    %c2_i32_90 = arith.constant 2 : i32
    %c0_i32_91 = arith.constant 0 : i32
    %564 = arith.cmpi eq, %c2_i32_90, %c0_i32_91 : i32
    %c1_i32_92 = arith.constant 1 : i32
    %565 = arith.select %564, %c1_i32_92, %c2_i32_90 : i32
    %566 = vector.broadcast %565 : i32 to vector<2x16xi32>
    %567 = arith.remsi %563, %566 : vector<2x16xi32>
    %c0_i32_93 = arith.constant 0 : i32
    %568 = vector.broadcast %c0_i32_93 : i32 to vector<2x16xi32>
    %569 = arith.cmpi ne, %567, %568 : vector<2x16xi32>
    %c0_i32_94 = arith.constant 0 : i32
    %570 = vector.broadcast %c0_i32_94 : i32 to vector<2x16xi32>
    %571 = arith.cmpi slt, %567, %570 : vector<2x16xi32>
    %c0_i32_95 = arith.constant 0 : i32
    %572 = arith.cmpi slt, %565, %c0_i32_95 : i32
    %573 = vector.broadcast %572 : i1 to vector<2x16xi1>
    %574 = vector.broadcast %573 : vector<2x16xi1> to vector<2x16xi1>
    %575 = arith.xori %571, %574 : vector<2x16xi1>
    %576 = arith.andi %575, %569 : vector<2x16xi1>
    %577 = vector.broadcast %565 : i32 to vector<2x16xi32>
    %578 = arith.addi %567, %577 : vector<2x16xi32>
    %579 = arith.select %576, %578, %567 : vector<2x16xi1>, vector<2x16xi32>
    %580 = arith.cmpi eq, %579, %562 : vector<2x16xi32>
    %cst_96 = arith.constant 1.250000e-01 : f32
    %cst_97 = arith.constant 0.000000e+00 : f32
    %581 = vector.broadcast %cst_96 : f32 to vector<2x16xf32>
    %582 = vector.broadcast %cst_97 : f32 to vector<2x16xf32>
    %583 = arith.select %580, %581, %582 : vector<2x16xi1>, vector<2x16xf32>
    %cst_98 = arith.constant dense<0.000000e+00> : vector<2x32xf32>
    %584 = tpu.matmul %583, %559, %cst_98 {dimension_numbers = #tpu.dot_dimension_numbers<[1], [0], [0], [1], [0, 0, 1, 1], [], []>} : vector<2x16xf32>, vector<16x32xf32>, vector<2x32xf32> -> vector<2x32xf32>
    %c0_99 = arith.constant 0 : index
    %c0_100 = arith.constant 0 : index
    %585 = vector.load %arg19[%c0_99, %c0_100] : memref<32x32xf32, #tpu.memory_space<vmem>>, vector<32x32xf32>
    %cst_101 = arith.constant dense<0.000000e+00> : vector<2x32xf32>
    %586 = tpu.matmul %584, %585, %cst_101 {dimension_numbers = #tpu.dot_dimension_numbers<[1], [0], [0], [1], [0, 0, 1, 1], [], []>} : vector<2x32xf32>, vector<32x32xf32>, vector<2x32xf32> -> vector<2x32xf32>
    %cst_102 = arith.constant 1.000000e+00 : f32
    %587 = vector.broadcast %cst_102 : f32 to vector<1x32xf32>
    %588 = arith.mulf %587, %560 : vector<1x32xf32>
    %589 = vector.broadcast %588 : vector<1x32xf32> to vector<2x32xf32>
    %590 = arith.addf %586, %589 : vector<2x32xf32>
    %591 = vector.broadcast %561 : vector<1x32xf32> to vector<2x32xf32>
    %592 = arith.addf %590, %591 : vector<2x32xf32>
    %593 = arith.negf %592 : vector<2x32xf32>
    %594 = math.exp %593 : vector<2x32xf32>
    %cst_103 = arith.constant 1.000000e+00 : f32
    %595 = vector.broadcast %cst_103 : f32 to vector<2x32xf32>
    %596 = arith.addf %595, %594 : vector<2x32xf32>
    %597 = arith.divf %595, %596 : vector<2x32xf32>
    %598 = tpu.iota {dimensions = array<i32: 0>} : vector<16x2xi32>
    %599 = tpu.iota {dimensions = array<i32: 1>} : vector<16x2xi32>
    %c2_i32_104 = arith.constant 2 : i32
    %c0_i32_105 = arith.constant 0 : i32
    %600 = arith.cmpi eq, %c2_i32_104, %c0_i32_105 : i32
    %c1_i32_106 = arith.constant 1 : i32
    %601 = arith.select %600, %c1_i32_106, %c2_i32_104 : i32
    %602 = vector.broadcast %601 : i32 to vector<16x2xi32>
    %603 = arith.remsi %598, %602 : vector<16x2xi32>
    %c0_i32_107 = arith.constant 0 : i32
    %604 = vector.broadcast %c0_i32_107 : i32 to vector<16x2xi32>
    %605 = arith.cmpi ne, %603, %604 : vector<16x2xi32>
    %c0_i32_108 = arith.constant 0 : i32
    %606 = vector.broadcast %c0_i32_108 : i32 to vector<16x2xi32>
    %607 = arith.cmpi slt, %603, %606 : vector<16x2xi32>
    %c0_i32_109 = arith.constant 0 : i32
    %608 = arith.cmpi slt, %601, %c0_i32_109 : i32
    %609 = vector.broadcast %608 : i1 to vector<16x2xi1>
    %610 = vector.broadcast %609 : vector<16x2xi1> to vector<16x2xi1>
    %611 = arith.xori %607, %610 : vector<16x2xi1>
    %612 = arith.andi %611, %605 : vector<16x2xi1>
    %613 = vector.broadcast %601 : i32 to vector<16x2xi32>
    %614 = arith.addi %603, %613 : vector<16x2xi32>
    %615 = arith.select %612, %614, %603 : vector<16x2xi1>, vector<16x2xi32>
    %616 = arith.cmpi eq, %615, %599 : vector<16x2xi32>
    %617 = arith.extui %616 : vector<16x2xi1> to vector<16x2xi32>
    %618 = arith.sitofp %617 : vector<16x2xi32> to vector<16x2xf32>
    %cst_110 = arith.constant dense<0.000000e+00> : vector<16x32xf32>
    %619 = tpu.matmul %618, %597, %cst_110 {dimension_numbers = #tpu.dot_dimension_numbers<[1], [0], [0], [1], [0, 0, 1, 1], [], []>} : vector<16x2xf32>, vector<2x32xf32>, vector<16x32xf32> -> vector<16x32xf32>
    %620 = arith.mulf %559, %619 : vector<16x32xf32>
    %c0_111 = arith.constant 0 : index
    %c0_112 = arith.constant 0 : index
    %621 = vector.load %arg21[%c0_111, %c0_112] : memref<32x32xf32, #tpu.memory_space<vmem>>, vector<32x32xf32>
    %cst_113 = arith.constant dense<0.000000e+00> : vector<16x32xf32>
    %622 = tpu.matmul %620, %621, %cst_113 {dimension_numbers = #tpu.dot_dimension_numbers<[1], [0], [0], [1], [0, 0, 1, 1], [], []>} : vector<16x32xf32>, vector<32x32xf32>, vector<16x32xf32> -> vector<16x32xf32>
    %c0_114 = arith.constant 0 : index
    %c0_115 = arith.constant 0 : index
    %623 = vector.load %arg22[%c0_114, %c0_115] : memref<1x32xf32, #tpu.memory_space<vmem>>, vector<1x32xf32>
    %624 = vector.broadcast %623 : vector<1x32xf32> to vector<16x32xf32>
    %625 = arith.addf %622, %624 : vector<16x32xf32>
    %c0_116 = arith.constant 0 : index
    %c0_117 = arith.constant 0 : index
    %626 = vector.load %arg23[%c0_116, %c0_117] : memref<16x32xf32, #tpu.memory_space<vmem>>, vector<16x32xf32>
    tpu.vector_store %arg23[%c0_116, %c0_117], %625 {strides = array<i32>} : memref<16x32xf32, #tpu.memory_space<vmem>>, vector<16x32xf32>,
    return
  }
}

</mosaic_0001>

<llo_original>
// kernel: net_forward.1
$region0: #{net_forward.1}
  #allocation0 [shape = 'u32[]', space=smem, size = 0x4, offset = 0x4, fixed_abs, tag = 'smem constant byte address 0x4 - core index']
  #allocation1 [shape = 'u32[144,128]{1,0:T(1,128)}', space=vmem, size = 0x12000, scoped, tag = 'internal scratch']
  %s0 = inlined_call_operand.vmem [shape: f32[16,32], index: 0, kind: input, shape index: {}]
  %s1 = inlined_call_operand.vmem [shape: f32[32,128], index: 1, kind: input, shape index: {}]
  %s2 = inlined_call_operand.vmem [shape: f32[7,64], index: 2, kind: input, shape index: {}]
  %s3 = inlined_call_operand.vmem [shape: f32[64,34], index: 3, kind: input, shape index: {}]
  %s4 = inlined_call_operand.vmem [shape: f32[2,64], index: 4, kind: input, shape index: {}]
  %s5 = inlined_call_operand.vmem [shape: f32[1,1024], index: 5, kind: input, shape index: {}]
  %s6 = inlined_call_operand.vmem [shape: f32[64,32], index: 6, kind: input, shape index: {}]
  %s7 = inlined_call_operand.vmem [shape: f32[32,32], index: 7, kind: input, shape index: {}]
  %s8 = inlined_call_operand.vmem [shape: f32[2,32], index: 8, kind: input, shape index: {}]
  %s9 = inlined_call_operand.vmem [shape: f32[32,16], index: 9, kind: input, shape index: {}]
  %s10 = inlined_call_operand.vmem [shape: f32[1,16], index: 10, kind: input, shape index: {}]
  %s11 = inlined_call_operand.vmem [shape: f32[16,32], index: 11, kind: input, shape index: {}]
  %s12 = inlined_call_operand.vmem [shape: f32[1,32], index: 12, kind: input, shape index: {}]
  %s13 = inlined_call_operand.vmem [shape: f32[32,128], index: 13, kind: input, shape index: {}]
  %s14 = inlined_call_operand.vmem [shape: f32[7,64], index: 14, kind: input, shape index: {}]
  %s15 = inlined_call_operand.vmem [shape: f32[64,34], index: 15, kind: input, shape index: {}]
  %s16 = inlined_call_operand.vmem [shape: f32[2,64], index: 16, kind: input, shape index: {}]
  %s17 = inlined_call_operand.vmem [shape: f32[1,1024], index: 17, kind: input, shape index: {}]
  %s18 = inlined_call_operand.vmem [shape: f32[64,32], index: 18, kind: input, shape index: {}]
  %s19 = inlined_call_operand.vmem [shape: f32[32,32], index: 19, kind: input, shape index: {}]
  %s20 = inlined_call_operand.vmem [shape: f32[2,32], index: 20, kind: input, shape index: {}]
  %s21 = inlined_call_operand.vmem [shape: f32[32,32], index: 21, kind: input, shape index: {}]
  %s22 = inlined_call_operand.vmem [shape: f32[1,32], index: 22, kind: input, shape index: {}]
  %s23 = inlined_call_operand.vmem [shape: f32[16,32], index: 23, kind: output, shape index: {}]
  %s24 = sld [smem:[#allocation0]]
  $region102: #{net_forward.1} parent=0
    _
  %s26 = ssub.s32 1, %s24
  %s27 = scalar_select 0, %s26, %s24
  // Predicated region
  $region2: #{net_forward.1} parent=0 // pred_check
    _
  $region3: #{net_forward.1} parent=0 // pred_check_branch
    %29 = sbr.rel (0) target = $region5
  $region4: #{net_forward.1} parent=0 // pred_region
    _
  $region5: #{net_forward.1} parent=0 // pred_fallthru
    _
  // Predicated region
  $region6: #{net_forward.1} parent=0 // pred_check
    _
  $region7: #{net_forward.1} parent=0 // pred_check_branch
    %31 = sbr.rel (0) target = $region9
  $region8: #{net_forward.1} parent=0 // pred_region
    _
  $region9: #{net_forward.1} parent=0 // pred_fallthru
    _
  // Predicated region
  $region10: #{net_forward.1} parent=0 // pred_check
    _
  $region11: #{net_forward.1} parent=0 // pred_check_branch
    %33 = sbr.rel (0) target = $region13
  $region12: #{net_forward.1} parent=0 // pred_region
    _
  $region13: #{net_forward.1} parent=0 // pred_fallthru
    _
  // Predicated region
  $region14: #{net_forward.1} parent=0 // pred_check
    _
  $region15: #{net_forward.1} parent=0 // pred_check_branch
    %35 = sbr.rel (0) target = $region17
  $region16: #{net_forward.1} parent=0 // pred_region
    _
  $region17: #{net_forward.1} parent=0 // pred_fallthru
    _
  // Predicated region
  $region18: #{net_forward.1} parent=0 // pred_check
    _
  $region19: #{net_forward.1} parent=0 // pred_check_branch
    %37 = sbr.rel (0) target = $region21
  $region20: #{net_forward.1} parent=0 // pred_region
    _
  $region21: #{net_forward.1} parent=0 // pred_fallthru
    _
  // Predicated region
  $region22: #{net_forward.1} parent=0 // pred_check
    _
  $region23: #{net_forward.1} parent=0 // pred_check_branch
    %39 = sbr.rel (0) target = $region25
  $region24: #{net_forward.1} parent=0 // pred_region
    _
  $region25: #{net_forward.1} parent=0 // pred_fallthru
    _
  // Predicated region
  $region26: #{net_forward.1} parent=0 // pred_check
    _
  $region27: #{net_forward.1} parent=0 // pred_check_branch
    %41 = sbr.rel (0) target = $region29
  $region28: #{net_forward.1} parent=0 // pred_region
    _
  $region29: #{net_forward.1} parent=0 // pred_fallthru
    _
  // Predicated region
  $region30: #{net_forward.1} parent=0 // pred_check
    _
  $region31: #{net_forward.1} parent=0 // pred_check_branch
    %43 = sbr.rel (0) target = $region33
  $region32: #{net_forward.1} parent=0 // pred_region
    _
  $region33: #{net_forward.1} parent=0 // pred_fallthru
    _
  // Predicated region
  $region34: #{net_forward.1} parent=0 // pred_check
    _
  $region35: #{net_forward.1} parent=0 // pred_check_branch
    %45 = sbr.rel (0) target = $region37
  $region36: #{net_forward.1} parent=0 // pred_region
    _
  $region37: #{net_forward.1} parent=0 // pred_fallthru
    _
  // Predicated region
  $region38: #{net_forward.1} parent=0 // pred_check
    _
  $region39: #{net_forward.1} parent=0 // pred_check_branch
    %47 = sbr.rel (0) target = $region41
  $region40: #{net_forward.1} parent=0 // pred_region
    _
  $region41: #{net_forward.1} parent=0 // pred_fallthru
    _
  // Predicated region
  $region42: #{net_forward.1} parent=0 // pred_check
    _
  $region43: #{net_forward.1} parent=0 // pred_check_branch
    %49 = sbr.rel (0) target = $region45
  $region44: #{net_forward.1} parent=0 // pred_region
    _
  $region45: #{net_forward.1} parent=0 // pred_fallthru
    _
  // Predicated region
  $region46: #{net_forward.1} parent=0 // pred_check
    _
  $region47: #{net_forward.1} parent=0 // pred_check_branch
    %51 = sbr.rel (0) target = $region49
  $region48: #{net_forward.1} parent=0 // pred_region
    _
  $region49: #{net_forward.1} parent=0 // pred_fallthru
    _
  // Predicated region
  $region50: #{net_forward.1} parent=0 // pred_check
    _
  $region51: #{net_forward.1} parent=0 // pred_check_branch
    %53 = sbr.rel (0) target = $region53
  $region52: #{net_forward.1} parent=0 // pred_region
    _
  $region53: #{net_forward.1} parent=0 // pred_fallthru
    _
  // Predicated region
  $region54: #{net_forward.1} parent=0 // pred_check
    _
  $region55: #{net_forward.1} parent=0 // pred_check_branch
    %55 = sbr.rel (0) target = $region57
  $region56: #{net_forward.1} parent=0 // pred_region
    _
  $region57: #{net_forward.1} parent=0 // pred_fallthru
    _
  // Predicated region
  $region58: #{net_forward.1} parent=0 // pred_check
    _
  $region59: #{net_forward.1} parent=0 // pred_check_branch
    %57 = sbr.rel (0) target = $region61
  $region60: #{net_forward.1} parent=0 // pred_region
    _
  $region61: #{net_forward.1} parent=0 // pred_fallthru
    _
  // Predicated region
  $region62: #{net_forward.1} parent=0 // pred_check
    _
  $region63: #{net_forward.1} parent=0 // pred_check_branch
    %59 = sbr.rel (0) target = $region65
  $region64: #{net_forward.1} parent=0 // pred_region
    _
  $region65: #{net_forward.1} parent=0 // pred_fallthru
    _
  // Predicated region
  $region66: #{net_forward.1} parent=0 // pred_check
    _
  $region67: #{net_forward.1} parent=0 // pred_check_branch
    %61 = sbr.rel (0) target = $region69
  $region68: #{net_forward.1} parent=0 // pred_region
    _
  $region69: #{net_forward.1} parent=0 // pred_fallthru
    _
  // Predicated region
  $region70: #{net_forward.1} parent=0 // pred_check
    _
  $region71: #{net_forward.1} parent=0 // pred_check_branch
    %63 = sbr.rel (0) target = $region73
  $region72: #{net_forward.1} parent=0 // pred_region
    _
  $region73: #{net_forward.1} parent=0 // pred_fallthru
    _
  // Predicated region
  $region74: #{net_forward.1} parent=0 // pred_check
    _
  $region75: #{net_forward.1} parent=0 // pred_check_branch
    %65 = sbr.rel (0) target = $region77
  $region76: #{net_forward.1} parent=0 // pred_region
    _
  $region77: #{net_forward.1} parent=0 // pred_fallthru
    _
  // Predicated region
  $region78: #{net_forward.1} parent=0 // pred_check
    _
  $region79: #{net_forward.1} parent=0 // pred_check_branch
    %67 = sbr.rel (0) target = $region81
  $region80: #{net_forward.1} parent=0 // pred_region
    _
  $region81: #{net_forward.1} parent=0 // pred_fallthru
    _
  // Predicated region
  $region82: #{net_forward.1} parent=0 // pred_check
    _
  $region83: #{net_forward.1} parent=0 // pred_check_branch
    %69 = sbr.rel (0) target = $region85
  $region84: #{net_forward.1} parent=0 // pred_region
    _
  $region85: #{net_forward.1} parent=0 // pred_fallthru
    _
  // Predicated region
  $region86: #{net_forward.1} parent=0 // pred_check
    _
  $region87: #{net_forward.1} parent=0 // pred_check_branch
    %71 = sbr.rel (0) target = $region89
  $region88: #{net_forward.1} parent=0 // pred_region
    _
  $region89: #{net_forward.1} parent=0 // pred_fallthru
    _
  // Predicated region
  $region90: #{net_forward.1} parent=0 // pred_check
    _
  $region91: #{net_forward.1} parent=0 // pred_check_branch
    %73 = sbr.rel (0) target = $region93
  $region92: #{net_forward.1} parent=0 // pred_region
    _
  $region93: #{net_forward.1} parent=0 // pred_fallthru
    _
  %v74 = vld [vmem:[%s0] sm:$0xff]
  %v75 = vld [vmem:[%s0 + $0x8] sm:$0xff]
  %v76 = vld [vmem:[%s2] sm:$0xf]
  %v77 = vld [vmem:[%s2 + $0x4] sm:$0x1]
  %v78 = vld [vmem:[%s2 + $0x5] sm:$0x1]
  %v79 = vld [vmem:[%s2 + $0x6] sm:$0x1]
  %v80 = vld [vmem:[%s1] sm:$0xff]
  %v81 = vld [vmem:[%s1 + $0x8] sm:$0xff]
  %v82 = vld [vmem:[%s1 + $0x10] sm:$0xff]
  %v83 = vld [vmem:[%s1 + $0x18] sm:$0xff]
  %vm84 = vcmask 261120
  %v86 = vsel %vm84, %v74, 0
  %v89 = vsel %vm84, %v75, 0
  %91 = vmatprep.subr.mxu0 0.0
  %92 = vmatpush1.msra.mxu0 %v80
  %93 = vmatprep.subr.mxu0 0.0
  %94 = vmatpush1.msra.mxu0 %v81
  %95 = vmatprep.subr.mxu0 0.0
  %96 = vmatpush1.msra.mxu0 %v82
  %97 = vmatprep.subr.mxu0 0.0
  %98 = vmatpush1.msra.mxu0 %v83
  %99 = vmatprep.subr.mxu0 0.0
  %100 = vmatpush1.msra.mxu0 0.0
  %101 = vmatprep.subr.mxu0 0.0
  %102 = vmatpush1.msra.mxu0 0.0
  %103 = vmatprep.subr.mxu0 0.0
  %104 = vmatpush1.msra.mxu0 0.0
  %105 = vmatprep.subr.mxu0 0.0
  %106 = vmatpush1.msra.mxu0 0.0
  %107 = vmatprep.subr.mxu0 0.0
  %108 = vmatpush1.msra.mxu0 0.0
  %109 = vmatprep.subr.mxu0 0.0
  %110 = vmatpush1.msra.mxu0 0.0
  %111 = vmatprep.subr.mxu0 0.0
  %112 = vmatpush1.msra.mxu0 0.0
  %113 = vmatprep.subr.mxu0 0.0
  %114 = vmatpush1.msra.mxu0 0.0
  %115 = vmatprep.subr.mxu0 0.0
  %116 = vmatpush1.msra.mxu0 0.0
  %117 = vmatprep.subr.mxu0 0.0
  %118 = vmatpush1.msra.mxu0 0.0
  %119 = vmatprep.subr.mxu0 0.0
  %120 = vmatpush1.msra.mxu0 0.0
  %121 = vmatprep.subr.mxu0 0.0
  %122 = vmatpush1.msra.mxu0 0.0
  %123 = vmatprep.subr.mxu0 0.0
  %124 = vmatpush1.msra.mxu0 0.0
  %125 = vmatprep.subr.mxu0 0.0
  %126 = vmatpush1.msra.mxu0 0.0
  %127 = vmatprep.subr.mxu0 0.0
  %128 = vmatpush1.msra.mxu0 0.0
  %129 = vmatprep.subr.mxu0 0.0
  %130 = vmatpush1.msra.mxu0 0.0
  %131 = vmatprep.subr.mxu0 0.0
  %132 = vmatpush1.msra.mxu0 0.0
  %133 = vmatprep.subr.mxu0 0.0
  %134 = vmatpush1.msra.mxu0 0.0
  %135 = vmatprep.subr.mxu0 0.0
  %136 = vmatpush1.msra.mxu0 0.0
  %137 = vmatprep.subr.mxu0 0.0
  %138 = vmatpush1.msra.mxu0 0.0
  %139 = vmatprep.subr.mxu0 0.0
  %140 = vmatpush1.msra.mxu0 0.0
  %141 = vmatprep.subr.mxu0 0.0
  %142 = vmatpush1.msra.mxu0 0.0
  %143 = vmatprep.subr.mxu0 0.0
  %144 = vmatpush1.msra.mxu0 0.0
  %145 = vmatprep.subr.mxu0 0.0
  %146 = vmatpush1.msra.mxu0 0.0
  %147 = vmatprep.subr.mxu0 0.0
  %148 = vmatpush1.msra.mxu0 0.0
  %149 = vmatprep.subr.mxu0 0.0
  %150 = vmatpush1.msra.mxu0 0.0
  %151 = vmatprep.subr.mxu0 0.0
  %152 = vmatpush1.msra.mxu0 0.0
  %153 = vmatprep.subr.mxu0 0.0
  %154 = vmatpush1.msra.mxu0 0.0
  %155 = vmatprep.mubr.f32.mxu0 0.0
  %156 = vmatmul.mubr.f32.gmra.mrb[0].mxu0 %v86
  %v157 = vpop.f32.mrb[0].mxu0
  %v158 = vadd.f32 0.0, %v157
  %v159 = vpop.f32.mrb[0].mxu0
  %160 = vmatprep.mubr.f32.mxu0 0.0
  %161 = vmatmul.mubr.f32.gmra.mrb[0].mxu0 %v89
  %v162 = vpop.f32.mrb[0].mxu0
  %v163 = vadd.f32 0.0, %v162
  %v164 = vpop.f32.mrb[0].mxu0
  %165 = vdwg.mxu0
  %vm168 = vcmask 1045504
  %v169 = vrot.slane %v158, 2
  %v170 = vrot.slane %v163, 2
  %v171 = vsel %vm168, %v169, %v170
  %v175 = vsel %vm168, 0.0, %v169
  %v176 = vlaneseq
  %v177 = vshrl.u32 %v176, 7
  %v178 = vsub.s32 0, %v177
  %v179 = vrot.slane %v76, %v178
  %v180 = vmul.f32 %v175, %v179
  %v181 = vmul.f32 %v171, %v179
  %v182 = vlaneseq
  %v183 = vshrl.u32 %v182, 7
  %v184 = vsub.s32 0, %v183
  %v185 = vrot.slane %v77, %v184
  %v186 = vadd.f32 %v185, %v180
  %v187 = vadd.f32 %v185, %v181
  %v188 = vlaneseq
  %v189 = vshrl.u32 %v188, 7
  %v190 = vsub.s32 1, %v189
  %v191 = vrot.slane %v76, %v190
  %v192 = vmul.f32 %v175, %v191
  %v193 = vmul.f32 %v171, %v191
  %v194 = vmul.f32 %v170, %v191
  %v198 = vrot.slane %v192, 2
  %v199 = vrot.slane %v193, 2
  %v200 = vsel %vm168, %v198, %v199
  %v201 = vrot.slane %v194, 2
  %v202 = vsel %vm168, %v199, %v201
  %v205 = vadd.f32 %v186, %v200
  %v206 = vadd.f32 %v187, %v202
  %v207 = vlaneseq
  %v208 = vshrl.u32 %v207, 7
  %v209 = vsub.s32 2, %v208
  %v210 = vrot.slane %v76, %v209
  %v211 = vmul.f32 %v175, %v210
  %v212 = vmul.f32 %v171, %v210
  %v213 = vmul.f32 %v170, %v210
  %vm217 = vcmask 1043456
  %v218 = vrot.slane %v211, 4
  %v219 = vrot.slane %v212, 4
  %v220 = vsel %vm217, %v218, %v219
  %v221 = vrot.slane %v213, 4
  %v222 = vsel %vm217, %v219, %v221
  %v225 = vadd.f32 %v205, %v220
  %v226 = vadd.f32 %v206, %v222
  %v227 = vlaneseq
  %v228 = vshrl.u32 %v227, 7
  %v229 = vsub.s32 3, %v228
  %v230 = vrot.slane %v76, %v229
  %v231 = vmul.f32 %v175, %v230
  %v232 = vmul.f32 %v171, %v230
  %v233 = vmul.f32 %v170, %v230
  %vm237 = vcmask 1041408
  %v238 = vrot.slane %v231, 6
  %v239 = vrot.slane %v232, 6
  %v240 = vsel %vm237, %v238, %v239
  %v241 = vrot.slane %v233, 6
  %v242 = vsel %vm237, %v239, %v241
  %v245 = vadd.f32 %v225, %v240
  %v246 = vadd.f32 %v226, %v242
  %v247 = vxor.u32 %v245, 2147483648
  %v248 = vxor.u32 %v246, 2147483648
  %v249 = vmul.f32 %v247, 1.442695
  %v250 = vpow.pop %v249
  %v251 = vmul.f32 %v248, 1.442695
  %v252 = vpow.pop %v251
  %v253 = vadd.f32 %v250, 1.0
  %v254 = vadd.f32 %v252, 1.0
  %v255 = vrcp.pop %v253
  %v256 = vmul.f32 1.0, %v255
  %v257 = vrcp.pop %v254
  %v258 = vmul.f32 1.0, %v257
  %v259 = vmul.f32 %v245, %v256
  %v260 = vmul.f32 %v246, %v258
  %v261 = vld [vmem:[%s3] sm:$0xff]
  %v262 = vld [vmem:[%s3 + $0x8] sm:$0xff]
  %v263 = vld [vmem:[%s3 + $0x10] sm:$0xff]
  %v264 = vld [vmem:[%s3 + $0x18] sm:$0xff]
  %v265 = vld [vmem:[%s3 + $0x20] sm:$0xff]
  %v266 = vld [vmem:[%s3 + $0x28] sm:$0xff]
  %v267 = vld [vmem:[%s3 + $0x30] sm:$0xff]
  %v268 = vld [vmem:[%s3 + $0x38] sm:$0xff]
  %vm269 = vcmask 523264
  %v271 = vsel %vm269, %v259, 0
  %v274 = vsel %vm269, %v260, 0
  %276 = vmatprep.subr.mxu0 0.0
  %277 = vmatpush1.msra.mxu0 %v261
  %278 = vmatprep.subr.mxu0 0.0
  %279 = vmatpush1.msra.mxu0 %v262
  %280 = vmatprep.subr.mxu0 0.0
  %281 = vmatpush1.msra.mxu0 %v263
  %282 = vmatprep.subr.mxu0 0.0
  %283 = vmatpush1.msra.mxu0 %v264
  %284 = vmatprep.subr.mxu0 0.0
  %285 = vmatpush1.msra.mxu0 %v265
  %286 = vmatprep.subr.mxu0 0.0
  %287 = vmatpush1.msra.mxu0 %v266
  %288 = vmatprep.subr.mxu0 0.0
  %289 = vmatpush1.msra.mxu0 %v267
  %290 = vmatprep.subr.mxu0 0.0
  %291 = vmatpush1.msra.mxu0 %v268
  %292 = vmatprep.subr.mxu0 0.0
  %293 = vmatpush1.msra.mxu0 0.0
  %294 = vmatprep.subr.mxu0 0.0
  %295 = vmatpush1.msra.mxu0 0.0
  %296 = vmatprep.subr.mxu0 0.0
  %297 = vmatpush1.msra.mxu0 0.0
  %298 = vmatprep.subr.mxu0 0.0
  %299 = vmatpush1.msra.mxu0 0.0
  %300 = vmatprep.subr.mxu0 0.0
  %301 = vmatpush1.msra.mxu0 0.0
  %302 = vmatprep.subr.mxu0 0.0
  %303 = vmatpush1.msra.mxu0 0.0
  %304 = vmatprep.subr.mxu0 0.0
  %305 = vmatpush1.msra.mxu0 0.0
  %306 = vmatprep.subr.mxu0 0.0
  %307 = vmatpush1.msra.mxu0 0.0
  %308 = vmatprep.subr.mxu0 0.0
  %309 = vmatpush1.msra.mxu0 0.0
  %310 = vmatprep.subr.mxu0 0.0
  %311 = vmatpush1.msra.mxu0 0.0
  %312 = vmatprep.subr.mxu0 0.0
  %313 = vmatpush1.msra.mxu0 0.0
  %314 = vmatprep.subr.mxu0 0.0
  %315 = vmatpush1.msra.mxu0 0.0
  %316 = vmatprep.subr.mxu0 0.0
  %317 = vmatpush1.msra.mxu0 0.0
  %318 = vmatprep.subr.mxu0 0.0
  %319 = vmatpush1.msra.mxu0 0.0
  %320 = vmatprep.subr.mxu0 0.0
  %321 = vmatpush1.msra.mxu0 0.0
  %322 = vmatprep.subr.mxu0 0.0
  %323 = vmatpush1.msra.mxu0 0.0
  %324 = vmatprep.subr.mxu0 0.0
  %325 = vmatpush1.msra.mxu0 0.0
  %326 = vmatprep.subr.mxu0 0.0
  %327 = vmatpush1.msra.mxu0 0.0
  %328 = vmatprep.subr.mxu0 0.0
  %329 = vmatpush1.msra.mxu0 0.0
  %330 = vmatprep.subr.mxu0 0.0
  %331 = vmatpush1.msra.mxu0 0.0
  %332 = vmatprep.subr.mxu0 0.0
  %333 = vmatpush1.msra.mxu0 0.0
  %334 = vmatprep.subr.mxu0 0.0
  %335 = vmatpush1.msra.mxu0 0.0
  %336 = vmatprep.subr.mxu0 0.0
  %337 = vmatpush1.msra.mxu0 0.0
  %338 = vmatprep.subr.mxu0 0.0
  %339 = vmatpush1.msra.mxu0 0.0
  %340 = vmatprep.mubr.f32.mxu0 0.0
  %341 = vmatmul.mubr.f32.gmra.mrb[0].mxu0 %v271
  %v342 = vpop.f32.mrb[0].mxu0
  %v343 = vadd.f32 0.0, %v342
  %v344 = vpop.f32.mrb[0].mxu0
  %345 = vmatprep.mubr.f32.mxu0 0.0
  %346 = vmatmul.mubr.f32.gmra.mrb[0].mxu0 %v274
  %v347 = vpop.f32.mrb[0].mxu0
  %v348 = vadd.f32 0.0, %v347
  %v349 = vpop.f32.mrb[0].mxu0
  %350 = vdwg.mxu0
  %v351 = vld [vmem:[%s4] sm:$0x3]
  %v352 = vlaneseq
  %v353 = vshrl.u32 %v352, 7
  %v354 = vsub.s32 0, %v353
  %v355 = vrot.slane %v78, %v354
  %358 = vrot.lane.b32.xlu0 %v343, 96
  %v359 = vpop.permute.xlu0 %358
  %360 = vrot.lane.b32.xlu0 %v348, 96
  %v361 = vpop.permute.xlu0 %360
  %vm362 = vcmask 15360
  %v363 = vsel %vm362, %v359, 0
  %v365 = vsel %vm362, %v361, 0
  %v368 = vsel %vm237, %v351, 0
  %370 = vmatprep.subr.mxu0 0.0
  %371 = vmatpush1.msra.mxu0 %v368
  %372 = vmatprep.subr.mxu0 0.0
  %373 = vmatpush1.msra.mxu0 0.0
  %374 = vmatprep.subr.mxu0 0.0
  %375 = vmatpush1.msra.mxu0 0.0
  %376 = vmatprep.subr.mxu0 0.0
  %377 = vmatpush1.msra.mxu0 0.0
  %378 = vmatprep.subr.mxu0 0.0
  %379 = vmatpush1.msra.mxu0 0.0
  %380 = vmatprep.subr.mxu0 0.0
  %381 = vmatpush1.msra.mxu0 0.0
  %382 = vmatprep.subr.mxu0 0.0
  %383 = vmatpush1.msra.mxu0 0.0
  %384 = vmatprep.subr.mxu0 0.0
  %385 = vmatpush1.msra.mxu0 0.0
  %386 = vmatprep.subr.mxu0 0.0
  %387 = vmatpush1.msra.mxu0 0.0
  %388 = vmatprep.subr.mxu0 0.0
  %389 = vmatpush1.msra.mxu0 0.0
  %390 = vmatprep.subr.mxu0 0.0
  %391 = vmatpush1.msra.mxu0 0.0
  %392 = vmatprep.subr.mxu0 0.0
  %393 = vmatpush1.msra.mxu0 0.0
  %394 = vmatprep.subr.mxu0 0.0
  %395 = vmatpush1.msra.mxu0 0.0
  %396 = vmatprep.subr.mxu0 0.0
  %397 = vmatpush1.msra.mxu0 0.0
  %398 = vmatprep.subr.mxu0 0.0
  %399 = vmatpush1.msra.mxu0 0.0
  %400 = vmatprep.subr.mxu0 0.0
  %401 = vmatpush1.msra.mxu0 0.0
  %402 = vmatprep.subr.mxu0 0.0
  %403 = vmatpush1.msra.mxu0 0.0
  %404 = vmatprep.subr.mxu0 0.0
  %405 = vmatpush1.msra.mxu0 0.0
  %406 = vmatprep.subr.mxu0 0.0
  %407 = vmatpush1.msra.mxu0 0.0
  %408 = vmatprep.subr.mxu0 0.0
  %409 = vmatpush1.msra.mxu0 0.0
  %410 = vmatprep.subr.mxu0 0.0
  %411 = vmatpush1.msra.mxu0 0.0
  %412 = vmatprep.subr.mxu0 0.0
  %413 = vmatpush1.msra.mxu0 0.0
  %414 = vmatprep.subr.mxu0 0.0
  %415 = vmatpush1.msra.mxu0 0.0
  %416 = vmatprep.subr.mxu0 0.0
  %417 = vmatpush1.msra.mxu0 0.0
  %418 = vmatprep.subr.mxu0 0.0
  %419 = vmatpush1.msra.mxu0 0.0
  %420 = vmatprep.subr.mxu0 0.0
  %421 = vmatpush1.msra.mxu0 0.0
  %422 = vmatprep.subr.mxu0 0.0
  %423 = vmatpush1.msra.mxu0 0.0
  %424 = vmatprep.subr.mxu0 0.0
  %425 = vmatpush1.msra.mxu0 0.0
  %426 = vmatprep.subr.mxu0 0.0
  %427 = vmatpush1.msra.mxu0 0.0
  %428 = vmatprep.subr.mxu0 0.0
  %429 = vmatpush1.msra.mxu0 0.0
  %430 = vmatprep.subr.mxu0 0.0
  %431 = vmatpush1.msra.mxu0 0.0
  %432 = vmatprep.subr.mxu0 0.0
  %433 = vmatpush1.msra.mxu0 0.0
  %434 = vmatprep.mubr.f32.mxu0 0.0
  %435 = vmatmul.mubr.f32.gmra.mrb[0].mxu0 %v363
  %v436 = vpop.f32.mrb[0].mxu0
  %v437 = vadd.f32 %v355, %v436
  %v438 = vpop.f32.mrb[0].mxu0
  %439 = vmatprep.mubr.f32.mxu0 0.0
  %440 = vmatmul.mubr.f32.gmra.mrb[0].mxu0 %v365
  %v441 = vpop.f32.mrb[0].mxu0
  %v442 = vadd.f32 %v355, %v441
  %v443 = vpop.f32.mrb[0].mxu0
  %444 = vdwg.mxu0
  %v445 = vmax.f32 %v437, 0.0
  %v446 = vmax.f32 %v442, 0.0
  %vm447 = vcmp.ne.f32.partialorder %v437, %v437
  %vm448 = vcmp.ne.f32.partialorder %v442, %v442
  %v449 = vadd.f32 %v437, 0.0
  %v450 = vadd.f32 %v442, 0.0
  %v451 = vand.u32 2147483647, %v437
  %v452 = vand.u32 2147483647, %v442
  %v453 = vsub.f32 0.0, %v451
  %v454 = vsub.f32 0.0, %v452
  %v455 = vmul.f32 %v453, 1.442695
  %v456 = vpow.pop %v455
  %v457 = vmul.f32 %v454, 1.442695
  %v458 = vpow.pop %v457
  %v459 = vadd.f32 %v456, 1.0
  %v460 = vlog2.pop %v459
  %v461 = vmul.f32 %v460, 0.6931472
  %v462 = vmul.f32 -0.5, %v456
  %v463 = vadd.f32 %v462, 1.0
  %v464 = vmul.f32 %v463, %v456
  %v465 = vand.u32 2147483647, %v456
  %vm466 = vcmp.lt.f32.partialorder %v465, 0.0004427343
  %v467 = vsel %vm466, %v464, %v461
  %v468 = vadd.f32 %v458, 1.0
  %v469 = vlog2.pop %v468
  %v470 = vmul.f32 %v469, 0.6931472
  %v471 = vmul.f32 -0.5, %v458
  %v472 = vadd.f32 %v471, 1.0
  %v473 = vmul.f32 %v472, %v458
  %v474 = vand.u32 2147483647, %v458
  %vm475 = vcmp.lt.f32.partialorder %v474, 0.0004427343
  %v476 = vsel %vm475, %v473, %v470
  %v477 = vadd.f32 %v445, %v467
  %v478 = vadd.f32 %v446, %v476
  %v479 = vsel %vm447, %v449, %v477
  %v480 = vsel %vm448, %v450, %v478
  %v481 = vld [vmem:[%s5] sm:$0xff]
  %v482 = vmul.f32 %v481, 1.442695
  %v483 = vpow.pop %v482
  %v484 = vsub.f32 0.0, %v483
  %487 = vrot.lane.b32.xlu0 %v479, 64
  %v488 = vpop.permute.xlu0 %487
  %489 = vrot.lane.b32.xlu0 %v480, 64
  %v490 = vpop.permute.xlu0 %489
  %v493 = vsel %vm269, %v479, %v488
  %v494 = vsel %vm269, %v480, %v490
  %v496 = vlaneseq
  %v497 = vshrl.u32 %v496, 7
  %v498 = vsub.s32 0, %v497
  %v499 = vrot.slane %v484, %v498
  %v500 = vlaneseq
  %v501 = vshrl.u32 %v500, 7
  %v502 = vsub.s32 1, %v501
  %v503 = vrot.slane %v484, %v502
  %v504 = vlaneseq
  %v505 = vshrl.u32 %v504, 7
  %v506 = vsub.s32 2, %v505
  %v507 = vrot.slane %v484, %v506
  %v508 = vlaneseq
  %v509 = vshrl.u32 %v508, 7
  %v510 = vsub.s32 3, %v509
  %v511 = vrot.slane %v484, %v510
  %v512 = vlaneseq
  %v513 = vshrl.u32 %v512, 7
  %v514 = vsub.s32 4, %v513
  %v515 = vrot.slane %v484, %v514
  %v516 = vlaneseq
  %v517 = vshrl.u32 %v516, 7
  %v518 = vsub.s32 5, %v517
  %v519 = vrot.slane %v484, %v518
  %v520 = vlaneseq
  %v521 = vshrl.u32 %v520, 7
  %v522 = vsub.s32 6, %v521
  %v523 = vrot.slane %v484, %v522
  %v524 = vlaneseq
  %v525 = vshrl.u32 %v524, 7
  %v526 = vsub.s32 7, %v525
  %v527 = vrot.slane %v484, %v526
  %v536 = vmul.f32 %v499, %v493
  %v537 = vmul.f32 %v503, %v493
  %v538 = vmul.f32 %v507, %v493
  %v539 = vmul.f32 %v511, %v493
  %v540 = vmul.f32 %v515, %v493
  %v541 = vmul.f32 %v519, %v493
  %v542 = vmul.f32 %v523, %v493
  %v543 = vmul.f32 %v527, %v493
  %v544 = vmul.f32 %v499, %v494
  %v545 = vmul.f32 %v503, %v494
  %v546 = vmul.f32 %v507, %v494
  %v547 = vmul.f32 %v511, %v494
  %v548 = vmul.f32 %v515, %v494
  %v549 = vmul.f32 %v519, %v494
  %v550 = vmul.f32 %v523, %v494
  %v551 = vmul.f32 %v527, %v494
  %v552 = vmul.f32 %v536, 1.442695
  %v553 = vpow.pop %v552
  %v554 = vmul.f32 %v537, 1.442695
  %v555 = vpow.pop %v554
  %v556 = vmul.f32 %v538, 1.442695
  %v557 = vpow.pop %v556
  %v558 = vmul.f32 %v539, 1.442695
  %v559 = vpow.pop %v558
  %v560 = vmul.f32 %v540, 1.442695
  %v561 = vpow.pop %v560
  %v562 = vmul.f32 %v541, 1.442695
  %v563 = vpow.pop %v562
  %v564 = vmul.f32 %v542, 1.442695
  %v565 = vpow.pop %v564
  %v566 = vmul.f32 %v543, 1.442695
  %v567 = vpow.pop %v566
  %v568 = vmul.f32 %v544, 1.442695
  %v569 = vpow.pop %v568
  %v570 = vmul.f32 %v545, 1.442695
  %v571 = vpow.pop %v570
  %v572 = vmul.f32 %v546, 1.442695
  %v573 = vpow.pop %v572
  %v574 = vmul.f32 %v547, 1.442695
  %v575 = vpow.pop %v574
  %v576 = vmul.f32 %v548, 1.442695
  %v577 = vpow.pop %v576
  %v578 = vmul.f32 %v549, 1.442695
  %v579 = vpow.pop %v578
  %v580 = vmul.f32 %v550, 1.442695
  %v581 = vpow.pop %v580
  %v582 = vmul.f32 %v551, 1.442695
  %v583 = vpow.pop %v582
  %v584 = vmul.f32 %v479, %v259
  %v585 = vmul.f32 %v480, %v260
  %586 = vset.pattern.permute.xlu0 0
  %587 = vperm.xlu0 %586, %v343
  %v588 = vpop.permute.xlu0 %587
  %590 = vset.pattern.permute.xlu0 0
  %591 = vperm.xlu0 %590, %v348
  %v592 = vpop.permute.xlu0 %591
  %v594 = vmul.f32 %v588, %v584
  %v595 = vmul.f32 %v592, %v585
  %596 = vset.pattern.permute.xlu0 1
  %597 = vperm.xlu0 %596, %v343
  %v598 = vpop.permute.xlu0 %597
  %600 = vset.pattern.permute.xlu0 1
  %601 = vperm.xlu0 %600, %v348
  %v602 = vpop.permute.xlu0 %601
  %v604 = vmul.f32 %v598, %v584
  %v605 = vmul.f32 %v602, %v585
  %606 = vset.pattern.permute.xlu0 2
  %607 = vperm.xlu0 %606, %v343
  %v608 = vpop.permute.xlu0 %607
  %610 = vset.pattern.permute.xlu0 2
  %611 = vperm.xlu0 %610, %v348
  %v612 = vpop.permute.xlu0 %611
  %v614 = vmul.f32 %v608, %v584
  %v615 = vmul.f32 %v612, %v585
  %616 = vset.pattern.permute.xlu0 3
  %617 = vperm.xlu0 %616, %v343
  %v618 = vpop.permute.xlu0 %617
  %620 = vset.pattern.permute.xlu0 3
  %621 = vperm.xlu0 %620, %v348
  %v622 = vpop.permute.xlu0 %621
  %v624 = vmul.f32 %v618, %v584
  %v625 = vmul.f32 %v622, %v585
  %626 = vset.pattern.permute.xlu0 4
  %627 = vperm.xlu0 %626, %v343
  %v628 = vpop.permute.xlu0 %627
  %630 = vset.pattern.permute.xlu0 4
  %631 = vperm.xlu0 %630, %v348
  %v632 = vpop.permute.xlu0 %631
  %v634 = vmul.f32 %v628, %v584
  %v635 = vmul.f32 %v632, %v585
  %636 = vset.pattern.permute.xlu0 5
  %637 = vperm.xlu0 %636, %v343
  %v638 = vpop.permute.xlu0 %637
  %640 = vset.pattern.permute.xlu0 5
  %641 = vperm.xlu0 %640, %v348
  %v642 = vpop.permute.xlu0 %641
  %v644 = vmul.f32 %v638, %v584
  %v645 = vmul.f32 %v642, %v585
  %646 = vset.pattern.permute.xlu0 6
  %647 = vperm.xlu0 %646, %v343
  %v648 = vpop.permute.xlu0 %647
  %650 = vset.pattern.permute.xlu0 6
  %651 = vperm.xlu0 %650, %v348
  %v652 = vpop.permute.xlu0 %651
  %v654 = vmul.f32 %v648, %v584
  %v655 = vmul.f32 %v652, %v585
  %656 = vset.pattern.permute.xlu0 7
  %657 = vperm.xlu0 %656, %v343
  %v658 = vpop.permute.xlu0 %657
  %660 = vset.pattern.permute.xlu0 7
  %661 = vperm.xlu0 %660, %v348
  %v662 = vpop.permute.xlu0 %661
  %v664 = vmul.f32 %v658, %v584
  %v665 = vmul.f32 %v662, %v585
  %666 = vset.pattern.permute.xlu0 8
  %667 = vperm.xlu0 %666, %v343
  %v668 = vpop.permute.xlu0 %667
  %670 = vset.pattern.permute.xlu0 8
  %671 = vperm.xlu0 %670, %v348
  %v672 = vpop.permute.xlu0 %671
  %v674 = vmul.f32 %v668, %v584
  %v675 = vmul.f32 %v672, %v585
  %676 = vset.pattern.permute.xlu0 9
  %677 = vperm.xlu0 %676, %v343
  %v678 = vpop.permute.xlu0 %677
  %680 = vset.pattern.permute.xlu0 9
  %681 = vperm.xlu0 %680, %v348
  %v682 = vpop.permute.xlu0 %681
  %v684 = vmul.f32 %v678, %v584
  %v685 = vmul.f32 %v682, %v585
  %686 = vset.pattern.permute.xlu0 10
  %687 = vperm.xlu0 %686, %v343
  %v688 = vpop.permute.xlu0 %687
  %690 = vset.pattern.permute.xlu0 10
  %691 = vperm.xlu0 %690, %v348
  %v692 = vpop.permute.xlu0 %691
  %v694 = vmul.f32 %v688, %v584
  %v695 = vmul.f32 %v692, %v585
  %696 = vset.pattern.permute.xlu0 11
  %697 = vperm.xlu0 %696, %v343
  %v698 = vpop.permute.xlu0 %697
  %700 = vset.pattern.permute.xlu0 11
  %701 = vperm.xlu0 %700, %v348
  %v702 = vpop.permute.xlu0 %701
  %v704 = vmul.f32 %v698, %v584
  %v705 = vmul.f32 %v702, %v585
  %706 = vset.pattern.permute.xlu0 12
  %707 = vperm.xlu0 %706, %v343
  %v708 = vpop.permute.xlu0 %707
  %710 = vset.pattern.permute.xlu0 12
  %711 = vperm.xlu0 %710, %v348
  %v712 = vpop.permute.xlu0 %711
  %v714 = vmul.f32 %v708, %v584
  %v715 = vmul.f32 %v712, %v585
  %716 = vset.pattern.permute.xlu0 13
  %717 = vperm.xlu0 %716, %v343
  %v718 = vpop.permute.xlu0 %717
  %720 = vset.pattern.permute.xlu0 13
  %721 = vperm.xlu0 %720, %v348
  %v722 = vpop.permute.xlu0 %721
  %v724 = vmul.f32 %v718, %v584
  %v725 = vmul.f32 %v722, %v585
  %726 = vset.pattern.permute.xlu0 14
  %727 = vperm.xlu0 %726, %v343
  %v728 = vpop.permute.xlu0 %727
  %730 = vset.pattern.permute.xlu0 14
  %731 = vperm.xlu0 %730, %v348
  %v732 = vpop.permute.xlu0 %731
  %v734 = vmul.f32 %v728, %v584
  %v735 = vmul.f32 %v732, %v585
  %736 = vset.pattern.permute.xlu0 15
  %737 = vperm.xlu0 %736, %v343
  %v738 = vpop.permute.xlu0 %737
  %740 = vset.pattern.permute.xlu0 15
  %741 = vperm.xlu0 %740, %v348
  %v742 = vpop.permute.xlu0 %741
  %v744 = vmul.f32 %v738, %v584
  %v745 = vmul.f32 %v742, %v585
  %748 = vrot.lane.b32.xlu0 %v604, 64
  %v749 = vpop.permute.xlu0 %748
  %750 = vrot.lane.b32.xlu0 %v605, 64
  %v751 = vpop.permute.xlu0 %750
  %756 = vrot.lane.b32.xlu0 %v624, 64
  %v757 = vpop.permute.xlu0 %756
  %758 = vrot.lane.b32.xlu0 %v625, 64
  %v759 = vpop.permute.xlu0 %758
  %764 = vrot.lane.b32.xlu0 %v644, 64
  %v765 = vpop.permute.xlu0 %764
  %766 = vrot.lane.b32.xlu0 %v645, 64
  %v767 = vpop.permute.xlu0 %766
  %772 = vrot.lane.b32.xlu0 %v664, 64
  %v773 = vpop.permute.xlu0 %772
  %774 = vrot.lane.b32.xlu0 %v665, 64
  %v775 = vpop.permute.xlu0 %774
  %780 = vrot.lane.b32.xlu0 %v684, 64
  %v781 = vpop.permute.xlu0 %780
  %782 = vrot.lane.b32.xlu0 %v685, 64
  %v783 = vpop.permute.xlu0 %782
  %788 = vrot.lane.b32.xlu0 %v704, 64
  %v789 = vpop.permute.xlu0 %788
  %790 = vrot.lane.b32.xlu0 %v705, 64
  %v791 = vpop.permute.xlu0 %790
  %796 = vrot.lane.b32.xlu0 %v724, 64
  %v797 = vpop.permute.xlu0 %796
  %798 = vrot.lane.b32.xlu0 %v725, 64
  %v799 = vpop.permute.xlu0 %798
  %804 = vrot.lane.b32.xlu0 %v744, 64
  %v805 = vpop.permute.xlu0 %804
  %806 = vrot.lane.b32.xlu0 %v745, 64
  %v807 = vpop.permute.xlu0 %806
  %v810 = vsel %vm269, %v594, %v749
  %v811 = vsel %vm269, %v595, %v751
  %v812 = vsel %vm269, %v614, %v757
  %v813 = vsel %vm269, %v615, %v759
  %v814 = vsel %vm269, %v634, %v765
  %v815 = vsel %vm269, %v635, %v767
  %v816 = vsel %vm269, %v654, %v773
  %v817 = vsel %vm269, %v655, %v775
  %v818 = vsel %vm269, %v674, %v781
  %v819 = vsel %vm269, %v675, %v783
  %v820 = vsel %vm269, %v694, %v789
  %v821 = vsel %vm269, %v695, %v791
  %v822 = vsel %vm269, %v714, %v797
  %v823 = vsel %vm269, %v715, %v799
  %v824 = vsel %vm269, %v734, %v805
  %v825 = vsel %vm269, %v735, %v807
  %v826 = vmul.f32 %v553, 0.0
  %v827 = vmul.f32 %v555, 0.0
  %v828 = vmul.f32 %v557, 0.0
  %v829 = vmul.f32 %v559, 0.0
  %v830 = vmul.f32 %v561, 0.0
  %v831 = vmul.f32 %v563, 0.0
  %v832 = vmul.f32 %v565, 0.0
  %v833 = vmul.f32 %v567, 0.0
  %v834 = vadd.f32 %v826, %v810
  %v835 = vadd.f32 %v827, %v812
  %v836 = vadd.f32 %v828, %v814
  %v837 = vadd.f32 %v829, %v816
  %v838 = vadd.f32 %v830, %v818
  %v839 = vadd.f32 %v831, %v820
  %v840 = vadd.f32 %v832, %v822
  %v841 = vadd.f32 %v833, %v824
  %v850 = vrot.slane %v834, 6
  %v851 = vrot.slane %v835, 6
  %v852 = vrot.slane %v836, 6
  %v853 = vrot.slane %v837, 6
  %v854 = vrot.slane %v838, 6
  %v855 = vrot.slane %v839, 6
  %v856 = vrot.slane %v840, 6
  %v857 = vrot.slane %v841, 6
  %v866 = vmul.f32 %v553, %v850
  %v867 = vmul.f32 %v555, %v851
  %v868 = vmul.f32 %v557, %v852
  %v869 = vmul.f32 %v559, %v853
  %v870 = vmul.f32 %v561, %v854
  %v871 = vmul.f32 %v563, %v855
  %v872 = vmul.f32 %v565, %v856
  %v873 = vmul.f32 %v567, %v857
  %v874 = vadd.f32 %v866, %v810
  %v875 = vadd.f32 %v867, %v812
  %v876 = vadd.f32 %v868, %v814
  %v877 = vadd.f32 %v869, %v816
  %v878 = vadd.f32 %v870, %v818
  %v879 = vadd.f32 %v871, %v820
  %v880 = vadd.f32 %v872, %v822
  %v881 = vadd.f32 %v873, %v824
  %v890 = vrot.slane %v874, 6
  %v891 = vrot.slane %v875, 6
  %v892 = vrot.slane %v876, 6
  %v893 = vrot.slane %v877, 6
  %v894 = vrot.slane %v878, 6
  %v895 = vrot.slane %v879, 6
  %v896 = vrot.slane %v880, 6
  %v897 = vrot.slane %v881, 6
  %v906 = vmul.f32 %v553, %v890
  %v907 = vmul.f32 %v555, %v891
  %v908 = vmul.f32 %v557, %v892
  %v909 = vmul.f32 %v559, %v893
  %v910 = vmul.f32 %v561, %v894
  %v911 = vmul.f32 %v563, %v895
  %v912 = vmul.f32 %v565, %v896
  %v913 = vmul.f32 %v567, %v897
  %v914 = vadd.f32 %v906, %v810
  %v915 = vadd.f32 %v907, %v812
  %v916 = vadd.f32 %v908, %v814
  %v917 = vadd.f32 %v909, %v816
  %v918 = vadd.f32 %v910, %v818
  %v919 = vadd.f32 %v911, %v820
  %v920 = vadd.f32 %v912, %v822
  %v921 = vadd.f32 %v913, %v824
  %v930 = vrot.slane %v914, 6
  %v931 = vrot.slane %v915, 6
  %v932 = vrot.slane %v916, 6
  %v933 = vrot.slane %v917, 6
  %v934 = vrot.slane %v918, 6
  %v935 = vrot.slane %v919, 6
  %v936 = vrot.slane %v920, 6
  %v937 = vrot.slane %v921, 6
  %v946 = vmul.f32 %v553, %v930
  %v947 = vmul.f32 %v555, %v931
  %v948 = vmul.f32 %v557, %v932
  %v949 = vmul.f32 %v559, %v933
  %v950 = vmul.f32 %v561, %v934
  %v951 = vmul.f32 %v563, %v935
  %v952 = vmul.f32 %v565, %v936
  %v953 = vmul.f32 %v567, %v937
  %v954 = vadd.f32 %v946, %v810
  %v955 = vadd.f32 %v947, %v812
  %v956 = vadd.f32 %v948, %v814
  %v957 = vadd.f32 %v949, %v816
  %v958 = vadd.f32 %v950, %v818
  %v959 = vadd.f32 %v951, %v820
  %v960 = vadd.f32 %v952, %v822
  %v961 = vadd.f32 %v953, %v824
  %v970 = vrot.slane %v954, 6
  %v971 = vrot.slane %v955, 6
  %v972 = vrot.slane %v956, 6
  %v973 = vrot.slane %v957, 6
  %v974 = vrot.slane %v958, 6
  %v975 = vrot.slane %v959, 6
  %v976 = vrot.slane %v960, 6
  %v977 = vrot.slane %v961, 6
  %v986 = vmul.f32 %v569, %v970
  %v987 = vmul.f32 %v571, %v971
  %v988 = vmul.f32 %v573, %v972
  %v989 = vmul.f32 %v575, %v973
  %v990 = vmul.f32 %v577, %v974
  %v991 = vmul.f32 %v579, %v975
  %v992 = vmul.f32 %v581, %v976
  %v993 = vmul.f32 %v583, %v977
  %v994 = vadd.f32 %v986, %v811
  %v995 = vadd.f32 %v987, %v813
  %v996 = vadd.f32 %v988, %v815
  %v997 = vadd.f32 %v989, %v817
  %v998 = vadd.f32 %v990, %v819
  %v999 = vadd.f32 %v991, %v821
  %v1000 = vadd.f32 %v992, %v823
  %v1001 = vadd.f32 %v993, %v825
  %v1010 = vrot.slane %v994, 6
  %v1011 = vrot.slane %v995, 6
  %v1012 = vrot.slane %v996, 6
  %v1013 = vrot.slane %v997, 6
  %v1014 = vrot.slane %v998, 6
  %v1015 = vrot.slane %v999, 6
  %v1016 = vrot.slane %v1000, 6
  %v1017 = vrot.slane %v1001, 6
  %v1026 = vmul.f32 %v569, %v1010
  %v1027 = vmul.f32 %v571, %v1011
  %v1028 = vmul.f32 %v573, %v1012
  %v1029 = vmul.f32 %v575, %v1013
  %v1030 = vmul.f32 %v577, %v1014
  %v1031 = vmul.f32 %v579, %v1015
  %v1032 = vmul.f32 %v581, %v1016
  %v1033 = vmul.f32 %v583, %v1017
  %v1034 = vadd.f32 %v1026, %v811
  %v1035 = vadd.f32 %v1027, %v813
  %v1036 = vadd.f32 %v1028, %v815
  %v1037 = vadd.f32 %v1029, %v817
  %v1038 = vadd.f32 %v1030, %v819
  %v1039 = vadd.f32 %v1031, %v821
  %v1040 = vadd.f32 %v1032, %v823
  %v1041 = vadd.f32 %v1033, %v825
  %v1050 = vrot.slane %v1034, 6
  %v1051 = vrot.slane %v1035, 6
  %v1052 = vrot.slane %v1036, 6
  %v1053 = vrot.slane %v1037, 6
  %v1054 = vrot.slane %v1038, 6
  %v1055 = vrot.slane %v1039, 6
  %v1056 = vrot.slane %v1040, 6
  %v1057 = vrot.slane %v1041, 6
  %v1066 = vmul.f32 %v569, %v1050
  %v1067 = vmul.f32 %v571, %v1051
  %v1068 = vmul.f32 %v573, %v1052
  %v1069 = vmul.f32 %v575, %v1053
  %v1070 = vmul.f32 %v577, %v1054
  %v1071 = vmul.f32 %v579, %v1055
  %v1072 = vmul.f32 %v581, %v1056
  %v1073 = vmul.f32 %v583, %v1057
  %v1074 = vadd.f32 %v1066, %v811
  %v1075 = vadd.f32 %v1067, %v813
  %v1076 = vadd.f32 %v1068, %v815
  %v1077 = vadd.f32 %v1069, %v817
  %v1078 = vadd.f32 %v1070, %v819
  %v1079 = vadd.f32 %v1071, %v821
  %v1080 = vadd.f32 %v1072, %v823
  %v1081 = vadd.f32 %v1073, %v825
  %v1090 = vrot.slane %v1074, 6
  %v1091 = vrot.slane %v1075, 6
  %v1092 = vrot.slane %v1076, 6
  %v1093 = vrot.slane %v1077, 6
  %v1094 = vrot.slane %v1078, 6
  %v1095 = vrot.slane %v1079, 6
  %v1096 = vrot.slane %v1080, 6
  %v1097 = vrot.slane %v1081, 6
  %v1106 = vmul.f32 %v569, %v1090
  %v1107 = vmul.f32 %v571, %v1091
  %v1108 = vmul.f32 %v573, %v1092
  %v1109 = vmul.f32 %v575, %v1093
  %v1110 = vmul.f32 %v577, %v1094
  %v1111 = vmul.f32 %v579, %v1095
  %v1112 = vmul.f32 %v581, %v1096
  %v1113 = vmul.f32 %v583, %v1097
  %v1114 = vadd.f32 %v1106, %v811
  %v1115 = vadd.f32 %v1107, %v813
  %v1116 = vadd.f32 %v1108, %v815
  %v1117 = vadd.f32 %v1109, %v817
  %v1118 = vadd.f32 %v1110, %v819
  %v1119 = vadd.f32 %v1111, %v821
  %v1120 = vadd.f32 %v1112, %v823
  %v1121 = vadd.f32 %v1113, %v825
  %v1122 = vsel %vm237, %v834, %v874
  %v1123 = vsel %vm237, %v835, %v875
  %v1124 = vsel %vm237, %v836, %v876
  %v1125 = vsel %vm237, %v837, %v877
  %v1126 = vsel %vm237, %v838, %v878
  %v1127 = vsel %vm237, %v839, %v879
  %v1128 = vsel %vm237, %v840, %v880
  %v1129 = vsel %vm237, %v841, %v881
  %v1130 = vsel %vm217, %v1122, %v914
  %v1131 = vsel %vm217, %v1123, %v915
  %v1132 = vsel %vm217, %v1124, %v916
  %v1133 = vsel %vm217, %v1125, %v917
  %v1134 = vsel %vm217, %v1126, %v918
  %v1135 = vsel %vm217, %v1127, %v919
  %v1136 = vsel %vm217, %v1128, %v920
  %v1137 = vsel %vm217, %v1129, %v921
  %v1138 = vsel %vm168, %v1130, %v954
  %v1139 = vsel %vm168, %v1131, %v955
  %v1140 = vsel %vm168, %v1132, %v956
  %v1141 = vsel %vm168, %v1133, %v957
  %v1142 = vsel %vm168, %v1134, %v958
  %v1143 = vsel %vm168, %v1135, %v959
  %v1144 = vsel %vm168, %v1136, %v960
  %v1145 = vsel %vm168, %v1137, %v961
  %v1146 = vsel %vm237, %v994, %v1034
  %v1147 = vsel %vm237, %v995, %v1035
  %v1148 = vsel %vm237, %v996, %v1036
  %v1149 = vsel %vm237, %v997, %v1037
  %v1150 = vsel %vm237, %v998, %v1038
  %v1151 = vsel %vm237, %v999, %v1039
  %v1152 = vsel %vm237, %v1000, %v1040
  %v1153 = vsel %vm237, %v1001, %v1041
  %v1154 = vsel %vm217, %v1146, %v1074
  %v1155 = vsel %vm217, %v1147, %v1075
  %v1156 = vsel %vm217, %v1148, %v1076
  %v1157 = vsel %vm217, %v1149, %v1077
  %v1158 = vsel %vm217, %v1150, %v1078
  %v1159 = vsel %vm217, %v1151, %v1079
  %v1160 = vsel %vm217, %v1152, %v1080
  %v1161 = vsel %vm217, %v1153, %v1081
  %v1162 = vsel %vm168, %v1154, %v1114
  %v1163 = vsel %vm168, %v1155, %v1115
  %v1164 = vsel %vm168, %v1156, %v1116
  %v1165 = vsel %vm168, %v1157, %v1117
  %v1166 = vsel %vm168, %v1158, %v1118
  %v1167 = vsel %vm168, %v1159, %v1119
  %v1168 = vsel %vm168, %v1160, %v1120
  %v1169 = vsel %vm168, %v1161, %v1121
  %v1170 = vlaneseq
  %v1171 = vshrl.u32 %v1170, 7
  %v1172 = vsub.s32 0, %v1171
  %v1173 = vrot.slane %v79, %v1172
  %v1174 = vmul.f32 %v1173, %v259
  %v1175 = vmul.f32 %v1173, %v260
  %1176 = vset.pattern.permute.xlu0 16
  %1177 = vperm.xlu0 %1176, %v343
  %v1178 = vpop.permute.xlu0 %1177
  %1180 = vset.pattern.permute.xlu0 16
  %1181 = vperm.xlu0 %1180, %v348
  %v1182 = vpop.permute.xlu0 %1181
  %v1184 = vmul.f32 %v1178, %v1138
  %v1185 = vmul.f32 %v1182, %v1162
  %v1186 = vadd.f32 %v1174, %v1184
  %v1187 = vadd.f32 %v1175, %v1185
  %1188 = vset.pattern.permute.xlu0 17
  %1189 = vperm.xlu0 %1188, %v343
  %v1190 = vpop.permute.xlu0 %1189
  %1192 = vset.pattern.permute.xlu0 17
  %1193 = vperm.xlu0 %1192, %v348
  %v1194 = vpop.permute.xlu0 %1193
  %v1196 = vmul.f32 %v1190, %v1138
  %v1197 = vmul.f32 %v1194, %v1162
  %1200 = vrot.lane.b32.xlu0 %v1196, 64
  %v1201 = vpop.permute.xlu0 %1200
  %1202 = vrot.lane.b32.xlu0 %v1197, 64
  %v1203 = vpop.permute.xlu0 %1202
  %v1206 = vadd.f32 %v1186, %v1201
  %v1207 = vadd.f32 %v1187, %v1203
  %1208 = vset.pattern.permute.xlu0 18
  %1209 = vperm.xlu0 %1208, %v343
  %v1210 = vpop.permute.xlu0 %1209
  %1212 = vset.pattern.permute.xlu0 18
  %1213 = vperm.xlu0 %1212, %v348
  %v1214 = vpop.permute.xlu0 %1213
  %v1216 = vmul.f32 %v1210, %v1139
  %v1217 = vmul.f32 %v1214, %v1163
  %v1218 = vadd.f32 %v1206, %v1216
  %v1219 = vadd.f32 %v1207, %v1217
  %1220 = vset.pattern.permute.xlu0 19
  %1221 = vperm.xlu0 %1220, %v343
  %v1222 = vpop.permute.xlu0 %1221
  %1224 = vset.pattern.permute.xlu0 19
  %1225 = vperm.xlu0 %1224, %v348
  %v1226 = vpop.permute.xlu0 %1225
  %v1228 = vmul.f32 %v1222, %v1139
  %v1229 = vmul.f32 %v1226, %v1163
  %1232 = vrot.lane.b32.xlu0 %v1228, 64
  %v1233 = vpop.permute.xlu0 %1232
  %1234 = vrot.lane.b32.xlu0 %v1229, 64
  %v1235 = vpop.permute.xlu0 %1234
  %v1238 = vadd.f32 %v1218, %v1233
  %v1239 = vadd.f32 %v1219, %v1235
  %1240 = vset.pattern.permute.xlu0 20
  %1241 = vperm.xlu0 %1240, %v343
  %v1242 = vpop.permute.xlu0 %1241
  %1244 = vset.pattern.permute.xlu0 20
  %1245 = vperm.xlu0 %1244, %v348
  %v1246 = vpop.permute.xlu0 %1245
  %v1248 = vmul.f32 %v1242, %v1140
  %v1249 = vmul.f32 %v1246, %v1164
  %v1250 = vadd.f32 %v1238, %v1248
  %v1251 = vadd.f32 %v1239, %v1249
  %1252 = vset.pattern.permute.xlu0 21
  %1253 = vperm.xlu0 %1252, %v343
  %v1254 = vpop.permute.xlu0 %1253
  %1256 = vset.pattern.permute.xlu0 21
  %1257 = vperm.xlu0 %1256, %v348
  %v1258 = vpop.permute.xlu0 %1257
  %v1260 = vmul.f32 %v1254, %v1140
  %v1261 = vmul.f32 %v1258, %v1164
  %1264 = vrot.lane.b32.xlu0 %v1260, 64
  %v1265 = vpop.permute.xlu0 %1264
  %1266 = vrot.lane.b32.xlu0 %v1261, 64
  %v1267 = vpop.permute.xlu0 %1266
  %v1270 = vadd.f32 %v1250, %v1265
  %v1271 = vadd.f32 %v1251, %v1267
  %1272 = vset.pattern.permute.xlu0 22
  %1273 = vperm.xlu0 %1272, %v343
  %v1274 = vpop.permute.xlu0 %1273
  %1276 = vset.pattern.permute.xlu0 22
  %1277 = vperm.xlu0 %1276, %v348
  %v1278 = vpop.permute.xlu0 %1277
  %v1280 = vmul.f32 %v1274, %v1141
  %v1281 = vmul.f32 %v1278, %v1165
  %v1282 = vadd.f32 %v1270, %v1280
  %v1283 = vadd.f32 %v1271, %v1281
  %1284 = vset.pattern.permute.xlu0 23
  %1285 = vperm.xlu0 %1284, %v343
  %v1286 = vpop.permute.xlu0 %1285
  %1288 = vset.pattern.permute.xlu0 23
  %1289 = vperm.xlu0 %1288, %v348
  %v1290 = vpop.permute.xlu0 %1289
  %v1292 = vmul.f32 %v1286, %v1141
  %v1293 = vmul.f32 %v1290, %v1165
  %1296 = vrot.lane.b32.xlu0 %v1292, 64
  %v1297 = vpop.permute.xlu0 %1296
  %1298 = vrot.lane.b32.xlu0 %v1293, 64
  %v1299 = vpop.permute.xlu0 %1298
  %v1302 = vadd.f32 %v1282, %v1297
  %v1303 = vadd.f32 %v1283, %v1299
  %1304 = vset.pattern.permute.xlu0 24
  %1305 = vperm.xlu0 %1304, %v343
  %v1306 = vpop.permute.xlu0 %1305
  %1308 = vset.pattern.permute.xlu0 24
  %1309 = vperm.xlu0 %1308, %v348
  %v1310 = vpop.permute.xlu0 %1309
  %v1312 = vmul.f32 %v1306, %v1142
  %v1313 = vmul.f32 %v1310, %v1166
  %v1314 = vadd.f32 %v1302, %v1312
  %v1315 = vadd.f32 %v1303, %v1313
  %1316 = vset.pattern.permute.xlu0 25
  %1317 = vperm.xlu0 %1316, %v343
  %v1318 = vpop.permute.xlu0 %1317
  %1320 = vset.pattern.permute.xlu0 25
  %1321 = vperm.xlu0 %1320, %v348
  %v1322 = vpop.permute.xlu0 %1321
  %v1324 = vmul.f32 %v1318, %v1142
  %v1325 = vmul.f32 %v1322, %v1166
  %1328 = vrot.lane.b32.xlu0 %v1324, 64
  %v1329 = vpop.permute.xlu0 %1328
  %1330 = vrot.lane.b32.xlu0 %v1325, 64
  %v1331 = vpop.permute.xlu0 %1330
  %v1334 = vadd.f32 %v1314, %v1329
  %v1335 = vadd.f32 %v1315, %v1331
  %1336 = vset.pattern.permute.xlu0 26
  %1337 = vperm.xlu0 %1336, %v343
  %v1338 = vpop.permute.xlu0 %1337
  %1340 = vset.pattern.permute.xlu0 26
  %1341 = vperm.xlu0 %1340, %v348
  %v1342 = vpop.permute.xlu0 %1341
  %v1344 = vmul.f32 %v1338, %v1143
  %v1345 = vmul.f32 %v1342, %v1167
  %v1346 = vadd.f32 %v1334, %v1344
  %v1347 = vadd.f32 %v1335, %v1345
  %1348 = vset.pattern.permute.xlu0 27
  %1349 = vperm.xlu0 %1348, %v343
  %v1350 = vpop.permute.xlu0 %1349
  %1352 = vset.pattern.permute.xlu0 27
  %1353 = vperm.xlu0 %1352, %v348
  %v1354 = vpop.permute.xlu0 %1353
  %v1356 = vmul.f32 %v1350, %v1143
  %v1357 = vmul.f32 %v1354, %v1167
  %1360 = vrot.lane.b32.xlu0 %v1356, 64
  %v1361 = vpop.permute.xlu0 %1360
  %1362 = vrot.lane.b32.xlu0 %v1357, 64
  %v1363 = vpop.permute.xlu0 %1362
  %v1366 = vadd.f32 %v1346, %v1361
  %v1367 = vadd.f32 %v1347, %v1363
  %1368 = vset.pattern.permute.xlu0 28
  %1369 = vperm.xlu0 %1368, %v343
  %v1370 = vpop.permute.xlu0 %1369
  %1372 = vset.pattern.permute.xlu0 28
  %1373 = vperm.xlu0 %1372, %v348
  %v1374 = vpop.permute.xlu0 %1373
  %v1376 = vmul.f32 %v1370, %v1144
  %v1377 = vmul.f32 %v1374, %v1168
  %v1378 = vadd.f32 %v1366, %v1376
  %v1379 = vadd.f32 %v1367, %v1377
  %1380 = vset.pattern.permute.xlu0 29
  %1381 = vperm.xlu0 %1380, %v343
  %v1382 = vpop.permute.xlu0 %1381
  %1384 = vset.pattern.permute.xlu0 29
  %1385 = vperm.xlu0 %1384, %v348
  %v1386 = vpop.permute.xlu0 %1385
  %v1388 = vmul.f32 %v1382, %v1144
  %v1389 = vmul.f32 %v1386, %v1168
  %1392 = vrot.lane.b32.xlu0 %v1388, 64
  %v1393 = vpop.permute.xlu0 %1392
  %1394 = vrot.lane.b32.xlu0 %v1389, 64
  %v1395 = vpop.permute.xlu0 %1394
  %v1398 = vadd.f32 %v1378, %v1393
  %v1399 = vadd.f32 %v1379, %v1395
  %1400 = vset.pattern.permute.xlu0 30
  %1401 = vperm.xlu0 %1400, %v343
  %v1402 = vpop.permute.xlu0 %1401
  %1404 = vset.pattern.permute.xlu0 30
  %1405 = vperm.xlu0 %1404, %v348
  %v1406 = vpop.permute.xlu0 %1405
  %v1408 = vmul.f32 %v1402, %v1145
  %v1409 = vmul.f32 %v1406, %v1169
  %v1410 = vadd.f32 %v1398, %v1408
  %v1411 = vadd.f32 %v1399, %v1409
  %1412 = vset.pattern.permute.xlu0 31
  %1413 = vperm.xlu0 %1412, %v343
  %v1414 = vpop.permute.xlu0 %1413
  %1416 = vset.pattern.permute.xlu0 31
  %1417 = vperm.xlu0 %1416, %v348
  %v1418 = vpop.permute.xlu0 %1417
  %v1420 = vmul.f32 %v1414, %v1145
  %v1421 = vmul.f32 %v1418, %v1169
  %1424 = vrot.lane.b32.xlu0 %v1420, 64
  %v1425 = vpop.permute.xlu0 %1424
  %1426 = vrot.lane.b32.xlu0 %v1421, 64
  %v1427 = vpop.permute.xlu0 %1426
  %v1430 = vadd.f32 %v1410, %v1425
  %v1431 = vadd.f32 %v1411, %v1427
  %v1432 = vxor.u32 %v158, 2147483648
  %v1433 = vxor.u32 %v163, 2147483648
  %v1434 = vmul.f32 %v1432, 1.442695
  %v1435 = vpow.pop %v1434
  %v1436 = vmul.f32 %v1433, 1.442695
  %v1437 = vpow.pop %v1436
  %v1438 = vadd.f32 %v1435, 1.0
  %v1439 = vadd.f32 %v1437, 1.0
  %v1440 = vrcp.pop %v1438
  %v1441 = vmul.f32 1.0, %v1440
  %v1442 = vrcp.pop %v1439
  %v1443 = vmul.f32 1.0, %v1442
  %v1444 = vmul.f32 %v158, %v1441
  %v1445 = vmul.f32 %v163, %v1443
  %1448 = vrot.lane.b32.xlu0 %v1444, 64
  %v1449 = vpop.permute.xlu0 %1448
  %1450 = vrot.lane.b32.xlu0 %v1445, 64
  %v1451 = vpop.permute.xlu0 %1450
  %v1454 = vmul.f32 %v1430, %v1449
  %v1455 = vmul.f32 %v1431, %v1451
  %v1456 = vld [vmem:[%s6] sm:$0xff]
  %v1457 = vld [vmem:[%s6 + $0x8] sm:$0xff]
  %v1458 = vld [vmem:[%s6 + $0x10] sm:$0xff]
  %v1459 = vld [vmem:[%s6 + $0x18] sm:$0xff]
  %v1460 = vld [vmem:[%s6 + $0x20] sm:$0xff]
  %v1461 = vld [vmem:[%s6 + $0x28] sm:$0xff]
  %v1462 = vld [vmem:[%s6 + $0x30] sm:$0xff]
  %v1463 = vld [vmem:[%s6 + $0x38] sm:$0xff]
  %v1465 = vsel %vm269, %v1454, 0
  %v1468 = vsel %vm269, %v1455, 0
  %1470 = vmatprep.subr.mxu0 0.0
  %1471 = vmatpush1.msra.mxu0 %v1456
  %1472 = vmatprep.subr.mxu0 0.0
  %1473 = vmatpush1.msra.mxu0 %v1457
  %1474 = vmatprep.subr.mxu0 0.0
  %1475 = vmatpush1.msra.mxu0 %v1458
  %1476 = vmatprep.subr.mxu0 0.0
  %1477 = vmatpush1.msra.mxu0 %v1459
  %1478 = vmatprep.subr.mxu0 0.0
  %1479 = vmatpush1.msra.mxu0 %v1460
  %1480 = vmatprep.subr.mxu0 0.0
  %1481 = vmatpush1.msra.mxu0 %v1461
  %1482 = vmatprep.subr.mxu0 0.0
  %1483 = vmatpush1.msra.mxu0 %v1462
  %1484 = vmatprep.subr.mxu0 0.0
  %1485 = vmatpush1.msra.mxu0 %v1463
  %1486 = vmatprep.subr.mxu0 0.0
  %1487 = vmatpush1.msra.mxu0 0.0
  %1488 = vmatprep.subr.mxu0 0.0
  %1489 = vmatpush1.msra.mxu0 0.0
  %1490 = vmatprep.subr.mxu0 0.0
  %1491 = vmatpush1.msra.mxu0 0.0
  %1492 = vmatprep.subr.mxu0 0.0
  %1493 = vmatpush1.msra.mxu0 0.0
  %1494 = vmatprep.subr.mxu0 0.0
  %1495 = vmatpush1.msra.mxu0 0.0
  %1496 = vmatprep.subr.mxu0 0.0
  %1497 = vmatpush1.msra.mxu0 0.0
  %1498 = vmatprep.subr.mxu0 0.0
  %1499 = vmatpush1.msra.mxu0 0.0
  %1500 = vmatprep.subr.mxu0 0.0
  %1501 = vmatpush1.msra.mxu0 0.0
  %1502 = vmatprep.subr.mxu0 0.0
  %1503 = vmatpush1.msra.mxu0 0.0
  %1504 = vmatprep.subr.mxu0 0.0
  %1505 = vmatpush1.msra.mxu0 0.0
  %1506 = vmatprep.subr.mxu0 0.0
  %1507 = vmatpush1.msra.mxu0 0.0
  %1508 = vmatprep.subr.mxu0 0.0
  %1509 = vmatpush1.msra.mxu0 0.0
  %1510 = vmatprep.subr.mxu0 0.0
  %1511 = vmatpush1.msra.mxu0 0.0
  %1512 = vmatprep.subr.mxu0 0.0
  %1513 = vmatpush1.msra.mxu0 0.0
  %1514 = vmatprep.subr.mxu0 0.0
  %1515 = vmatpush1.msra.mxu0 0.0
  %1516 = vmatprep.subr.mxu0 0.0
  %1517 = vmatpush1.msra.mxu0 0.0
  %1518 = vmatprep.subr.mxu0 0.0
  %1519 = vmatpush1.msra.mxu0 0.0
  %1520 = vmatprep.subr.mxu0 0.0
  %1521 = vmatpush1.msra.mxu0 0.0
  %1522 = vmatprep.subr.mxu0 0.0
  %1523 = vmatpush1.msra.mxu0 0.0
  %1524 = vmatprep.subr.mxu0 0.0
  %1525 = vmatpush1.msra.mxu0 0.0
  %1526 = vmatprep.subr.mxu0 0.0
  %1527 = vmatpush1.msra.mxu0 0.0
  %1528 = vmatprep.subr.mxu0 0.0
  %1529 = vmatpush1.msra.mxu0 0.0
  %1530 = vmatprep.subr.mxu0 0.0
  %1531 = vmatpush1.msra.mxu0 0.0
  %1532 = vmatprep.subr.mxu0 0.0
  %1533 = vmatpush1.msra.mxu0 0.0
  %1534 = vmatprep.mubr.f32.mxu0 0.0
  %1535 = vmatmul.mubr.f32.gmra.mrb[0].mxu0 %v1465
  %v1536 = vpop.f32.mrb[0].mxu0
  %v1537 = vadd.f32 0.0, %v1536
  %v1538 = vpop.f32.mrb[0].mxu0
  %1539 = vmatprep.mubr.f32.mxu0 0.0
  %1540 = vmatmul.mubr.f32.gmra.mrb[0].mxu0 %v1468
  %v1541 = vpop.f32.mrb[0].mxu0
  %v1542 = vadd.f32 0.0, %v1541
  %v1543 = vpop.f32.mrb[0].mxu0
  %1544 = vdwg.mxu0
  %v1545 = vadd.f32 %v74, %v1537
  %v1546 = vadd.f32 %v75, %v1542
  %v1547 = vld [vmem:[%s8] sm:$0x1]
  %v1548 = vld [vmem:[%s8 + $0x1] sm:$0x1]
  %v1549 = vlaneseq
  %v1550 = vshrl.u32 %v1549, 7
  %v1551 = vlaneseq
  %v1552 = vand.u32 %v1551, 127
  %vm1553 = vcmp.lt.s32.totalorder %v1552, 0
  %v1554 = vsub.s32 0, %v1552
  %v1555 = vsel %vm1553, %v1554, %v1552
  %v1556 = vshrl.u32 %v1555, 1
  %v1557 = vand.u32 %v1555, 1
  %v1558 = vsub.s32 0, %v1557
  %v1559 = vsel %vm1553, %v1558, %v1557
  %vm1560 = vcmp.ne.s32.totalorder %v1559, 0
  %vm1561 = vcmp.lt.s32.totalorder %v1559, 0
  %vm1562 = vmand %vm1561, %vm1560
  %v1563 = vadd.s32 %v1559, 2
  %v1564 = vsel %vm1562, %v1563, %v1559
  %vm1565 = vcmp.eq.s32.totalorder %v1564, %v1550
  %v1566 = vsel %vm1565, 0.125, 0.0
  %vm1567 = vcmask 130048
  %v1569 = vsel %vm1567, %v1566, 0
  %1571 = vmatprep.subr.mxu0 0.0
  %1572 = vmatpush1.msra.mxu0 %v1545
  %1573 = vmatprep.subr.mxu0 0.0
  %1574 = vmatpush1.msra.mxu0 %v1546
  %1575 = vmatprep.subr.mxu0 0.0
  %1576 = vmatpush1.msra.mxu0 0.0
  %1577 = vmatprep.subr.mxu0 0.0
  %1578 = vmatpush1.msra.mxu0 0.0
  %1579 = vmatprep.subr.mxu0 0.0
  %1580 = vmatpush1.msra.mxu0 0.0
  %1581 = vmatprep.subr.mxu0 0.0
  %1582 = vmatpush1.msra.mxu0 0.0
  %1583 = vmatprep.subr.mxu0 0.0
  %1584 = vmatpush1.msra.mxu0 0.0
  %1585 = vmatprep.subr.mxu0 0.0
  %1586 = vmatpush1.msra.mxu0 0.0
  %1587 = vmatprep.subr.mxu0 0.0
  %1588 = vmatpush1.msra.mxu0 0.0
  %1589 = vmatprep.subr.mxu0 0.0
  %1590 = vmatpush1.msra.mxu0 0.0
  %1591 = vmatprep.subr.mxu0 0.0
  %1592 = vmatpush1.msra.mxu0 0.0
  %1593 = vmatprep.subr.mxu0 0.0
  %1594 = vmatpush1.msra.mxu0 0.0
  %1595 = vmatprep.subr.mxu0 0.0
  %1596 = vmatpush1.msra.mxu0 0.0
  %1597 = vmatprep.subr.mxu0 0.0
  %1598 = vmatpush1.msra.mxu0 0.0
  %1599 = vmatprep.subr.mxu0 0.0
  %1600 = vmatpush1.msra.mxu0 0.0
  %1601 = vmatprep.subr.mxu0 0.0
  %1602 = vmatpush1.msra.mxu0 0.0
  %1603 = vmatprep.subr.mxu0 0.0
  %1604 = vmatpush1.msra.mxu0 0.0
  %1605 = vmatprep.subr.mxu0 0.0
  %1606 = vmatpush1.msra.mxu0 0.0
  %1607 = vmatprep.subr.mxu0 0.0
  %1608 = vmatpush1.msra.mxu0 0.0
  %1609 = vmatprep.subr.mxu0 0.0
  %1610 = vmatpush1.msra.mxu0 0.0
  %1611 = vmatprep.subr.mxu0 0.0
  %1612 = vmatpush1.msra.mxu0 0.0
  %1613 = vmatprep.subr.mxu0 0.0
  %1614 = vmatpush1.msra.mxu0 0.0
  %1615 = vmatprep.subr.mxu0 0.0
  %1616 = vmatpush1.msra.mxu0 0.0
  %1617 = vmatprep.subr.mxu0 0.0
  %1618 = vmatpush1.msra.mxu0 0.0
  %1619 = vmatprep.subr.mxu0 0.0
  %1620 = vmatpush1.msra.mxu0 0.0
  %1621 = vmatprep.subr.mxu0 0.0
  %1622 = vmatpush1.msra.mxu0 0.0
  %1623 = vmatprep.subr.mxu0 0.0
  %1624 = vmatpush1.msra.mxu0 0.0
  %1625 = vmatprep.subr.mxu0 0.0
  %1626 = vmatpush1.msra.mxu0 0.0
  %1627 = vmatprep.subr.mxu0 0.0
  %1628 = vmatpush1.msra.mxu0 0.0
  %1629 = vmatprep.subr.mxu0 0.0
  %1630 = vmatpush1.msra.mxu0 0.0
  %1631 = vmatprep.subr.mxu0 0.0
  %1632 = vmatpush1.msra.mxu0 0.0
  %1633 = vmatprep.subr.mxu0 0.0
  %1634 = vmatpush1.msra.mxu0 0.0
  %1635 = vmatprep.mubr.f32.mxu0 0.0
  %1636 = vmatmul.mubr.f32.gmra.mrb[0].mxu0 %v1569
  %v1637 = vpop.f32.mrb[0].mxu0
  %v1638 = vadd.f32 0.0, %v1637
  %v1639 = vpop.f32.mrb[0].mxu0
  %1640 = vdwg.mxu0
  %v1641 = vld [vmem:[%s7] sm:$0xff]
  %v1642 = vld [vmem:[%s7 + $0x8] sm:$0xff]
  %v1643 = vld [vmem:[%s7 + $0x10] sm:$0xff]
  %v1644 = vld [vmem:[%s7 + $0x18] sm:$0xff]
  %v1645 = vlaneseq
  %v1646 = vshrl.u32 %v1645, 7
  %v1647 = vsub.s32 0, %v1646
  %v1648 = vrot.slane %v1547, %v1647
  %v1650 = vsel %vm84, %v1638, 0
  %1652 = vmatprep.subr.mxu0 0.0
  %1653 = vmatpush1.msra.mxu0 %v1641
  %1654 = vmatprep.subr.mxu0 0.0
  %1655 = vmatpush1.msra.mxu0 %v1642
  %1656 = vmatprep.subr.mxu0 0.0
  %1657 = vmatpush1.msra.mxu0 %v1643
  %1658 = vmatprep.subr.mxu0 0.0
  %1659 = vmatpush1.msra.mxu0 %v1644
  %1660 = vmatprep.subr.mxu0 0.0
  %1661 = vmatpush1.msra.mxu0 0.0
  %1662 = vmatprep.subr.mxu0 0.0
  %1663 = vmatpush1.msra.mxu0 0.0
  %1664 = vmatprep.subr.mxu0 0.0
  %1665 = vmatpush1.msra.mxu0 0.0
  %1666 = vmatprep.subr.mxu0 0.0
  %1667 = vmatpush1.msra.mxu0 0.0
  %1668 = vmatprep.subr.mxu0 0.0
  %1669 = vmatpush1.msra.mxu0 0.0
  %1670 = vmatprep.subr.mxu0 0.0
  %1671 = vmatpush1.msra.mxu0 0.0
  %1672 = vmatprep.subr.mxu0 0.0
  %1673 = vmatpush1.msra.mxu0 0.0
  %1674 = vmatprep.subr.mxu0 0.0
  %1675 = vmatpush1.msra.mxu0 0.0
  %1676 = vmatprep.subr.mxu0 0.0
  %1677 = vmatpush1.msra.mxu0 0.0
  %1678 = vmatprep.subr.mxu0 0.0
  %1679 = vmatpush1.msra.mxu0 0.0
  %1680 = vmatprep.subr.mxu0 0.0
  %1681 = vmatpush1.msra.mxu0 0.0
  %1682 = vmatprep.subr.mxu0 0.0
  %1683 = vmatpush1.msra.mxu0 0.0
  %1684 = vmatprep.subr.mxu0 0.0
  %1685 = vmatpush1.msra.mxu0 0.0
  %1686 = vmatprep.subr.mxu0 0.0
  %1687 = vmatpush1.msra.mxu0 0.0
  %1688 = vmatprep.subr.mxu0 0.0
  %1689 = vmatpush1.msra.mxu0 0.0
  %1690 = vmatprep.subr.mxu0 0.0
  %1691 = vmatpush1.msra.mxu0 0.0
  %1692 = vmatprep.subr.mxu0 0.0
  %1693 = vmatpush1.msra.mxu0 0.0
  %1694 = vmatprep.subr.mxu0 0.0
  %1695 = vmatpush1.msra.mxu0 0.0
  %1696 = vmatprep.subr.mxu0 0.0
  %1697 = vmatpush1.msra.mxu0 0.0
  %1698 = vmatprep.subr.mxu0 0.0
  %1699 = vmatpush1.msra.mxu0 0.0
  %1700 = vmatprep.subr.mxu0 0.0
  %1701 = vmatpush1.msra.mxu0 0.0
  %1702 = vmatprep.subr.mxu0 0.0
  %1703 = vmatpush1.msra.mxu0 0.0
  %1704 = vmatprep.subr.mxu0 0.0
  %1705 = vmatpush1.msra.mxu0 0.0
  %1706 = vmatprep.subr.mxu0 0.0
  %1707 = vmatpush1.msra.mxu0 0.0
  %1708 = vmatprep.subr.mxu0 0.0
  %1709 = vmatpush1.msra.mxu0 0.0
  %1710 = vmatprep.subr.mxu0 0.0
  %1711 = vmatpush1.msra.mxu0 0.0
  %1712 = vmatprep.subr.mxu0 0.0
  %1713 = vmatpush1.msra.mxu0 0.0
  %1714 = vmatprep.subr.mxu0 0.0
  %1715 = vmatpush1.msra.mxu0 0.0
  %1716 = vmatprep.mubr.f32.mxu0 0.0
  %1717 = vmatmul.mubr.f32.gmra.mrb[0].mxu0 %v1650
  %v1718 = vpop.f32.mrb[0].mxu0
  %v1719 = vadd.f32 %v1648, %v1718
  %v1720 = vpop.f32.mrb[0].mxu0
  %1721 = vdwg.mxu0
  %v1722 = vlaneseq
  %v1723 = vshrl.u32 %v1722, 7
  %v1724 = vsub.s32 0, %v1723
  %v1725 = vrot.slane %v1548, %v1724
  %v1726 = vadd.f32 %v1719, %v1725
  %v1727 = vxor.u32 %v1726, 2147483648
  %v1728 = vmul.f32 %v1727, 1.442695
  %v1729 = vpow.pop %v1728
  %v1730 = vadd.f32 %v1729, 1.0
  %v1731 = vrcp.pop %v1730
  %v1732 = vmul.f32 1.0, %v1731
  %v1733 = vadd.s32 %v1550, 8
  %vm1734 = vcmp.lt.s32.totalorder %v1550, 0
  %v1735 = vsub.s32 0, %v1550
  %v1736 = vsel %vm1734, %v1735, %v1550
  %v1737 = vshrl.u32 %v1736, 1
  %v1738 = vand.u32 %v1736, 1
  %v1739 = vsub.s32 0, %v1738
  %v1740 = vsel %vm1734, %v1739, %v1738
  %vm1741 = vcmp.lt.s32.totalorder %v1733, 0
  %v1742 = vsub.s32 0, %v1733
  %v1743 = vsel %vm1741, %v1742, %v1733
  %v1744 = vshrl.u32 %v1743, 1
  %v1745 = vand.u32 %v1743, 1
  %v1746 = vsub.s32 0, %v1745
  %v1747 = vsel %vm1741, %v1746, %v1745
  %vm1748 = vcmp.ne.s32.totalorder %v1740, 0
  %vm1749 = vcmp.ne.s32.totalorder %v1747, 0
  %vm1750 = vcmp.lt.s32.totalorder %v1740, 0
  %vm1751 = vcmp.lt.s32.totalorder %v1747, 0
  %vm1752 = vmand %vm1750, %vm1748
  %vm1753 = vmand %vm1751, %vm1749
  %v1754 = vadd.s32 %v1740, 2
  %v1755 = vadd.s32 %v1747, 2
  %v1756 = vsel %vm1752, %v1754, %v1740
  %v1757 = vsel %vm1753, %v1755, %v1747
  %vm1758 = vcmp.eq.s32.totalorder %v1756, %v1552
  %vm1759 = vcmp.eq.s32.totalorder %v1757, %v1552
  %v1760 = vsel %vm1758, 1, 0
  %v1761 = vsel %vm1759, 1, 0
  %v1762 = vcvt.s32.f32 %v1760
  %v1763 = vcvt.s32.f32 %v1761
  %v1765 = vsel %vm362, %v1762, 0
  %v1768 = vsel %vm362, %v1763, 0
  %v1771 = vsel %vm237, %v1732, 0
  %1773 = vmatprep.subr.mxu0 0.0
  %1774 = vmatpush1.msra.mxu0 %v1771
  %1775 = vmatprep.subr.mxu0 0.0
  %1776 = vmatpush1.msra.mxu0 0.0
  %1777 = vmatprep.subr.mxu0 0.0
  %1778 = vmatpush1.msra.mxu0 0.0
  %1779 = vmatprep.subr.mxu0 0.0
  %1780 = vmatpush1.msra.mxu0 0.0
  %1781 = vmatprep.subr.mxu0 0.0
  %1782 = vmatpush1.msra.mxu0 0.0
  %1783 = vmatprep.subr.mxu0 0.0
  %1784 = vmatpush1.msra.mxu0 0.0
  %1785 = vmatprep.subr.mxu0 0.0
  %1786 = vmatpush1.msra.mxu0 0.0
  %1787 = vmatprep.subr.mxu0 0.0
  %1788 = vmatpush1.msra.mxu0 0.0
  %1789 = vmatprep.subr.mxu0 0.0
  %1790 = vmatpush1.msra.mxu0 0.0
  %1791 = vmatprep.subr.mxu0 0.0
  %1792 = vmatpush1.msra.mxu0 0.0
  %1793 = vmatprep.subr.mxu0 0.0
  %1794 = vmatpush1.msra.mxu0 0.0
  %1795 = vmatprep.subr.mxu0 0.0
  %1796 = vmatpush1.msra.mxu0 0.0
  %1797 = vmatprep.subr.mxu0 0.0
  %1798 = vmatpush1.msra.mxu0 0.0
  %1799 = vmatprep.subr.mxu0 0.0
  %1800 = vmatpush1.msra.mxu0 0.0
  %1801 = vmatprep.subr.mxu0 0.0
  %1802 = vmatpush1.msra.mxu0 0.0
  %1803 = vmatprep.subr.mxu0 0.0
  %1804 = vmatpush1.msra.mxu0 0.0
  %1805 = vmatprep.subr.mxu0 0.0
  %1806 = vmatpush1.msra.mxu0 0.0
  %1807 = vmatprep.subr.mxu0 0.0
  %1808 = vmatpush1.msra.mxu0 0.0
  %1809 = vmatprep.subr.mxu0 0.0
  %1810 = vmatpush1.msra.mxu0 0.0
  %1811 = vmatprep.subr.mxu0 0.0
  %1812 = vmatpush1.msra.mxu0 0.0
  %1813 = vmatprep.subr.mxu0 0.0
  %1814 = vmatpush1.msra.mxu0 0.0
  %1815 = vmatprep.subr.mxu0 0.0
  %1816 = vmatpush1.msra.mxu0 0.0
  %1817 = vmatprep.subr.mxu0 0.0
  %1818 = vmatpush1.msra.mxu0 0.0
  %1819 = vmatprep.subr.mxu0 0.0
  %1820 = vmatpush1.msra.mxu0 0.0
  %1821 = vmatprep.subr.mxu0 0.0
  %1822 = vmatpush1.msra.mxu0 0.0
  %1823 = vmatprep.subr.mxu0 0.0
  %1824 = vmatpush1.msra.mxu0 0.0
  %1825 = vmatprep.subr.mxu0 0.0
  %1826 = vmatpush1.msra.mxu0 0.0
  %1827 = vmatprep.subr.mxu0 0.0
  %1828 = vmatpush1.msra.mxu0 0.0
  %1829 = vmatprep.subr.mxu0 0.0
  %1830 = vmatpush1.msra.mxu0 0.0
  %1831 = vmatprep.subr.mxu0 0.0
  %1832 = vmatpush1.msra.mxu0 0.0
  %1833 = vmatprep.subr.mxu0 0.0
  %1834 = vmatpush1.msra.mxu0 0.0
  %1835 = vmatprep.subr.mxu0 0.0
  %1836 = vmatpush1.msra.mxu0 0.0
  %1837 = vmatprep.mubr.f32.mxu0 0.0
  %1838 = vmatmul.mubr.f32.gmra.mrb[0].mxu0 %v1765
  %v1839 = vpop.f32.mrb[0].mxu0
  %v1840 = vadd.f32 0.0, %v1839
  %v1841 = vpop.f32.mrb[0].mxu0
  %1842 = vmatprep.mubr.f32.mxu0 0.0
  %1843 = vmatmul.mubr.f32.gmra.mrb[0].mxu0 %v1768
  %v1844 = vpop.f32.mrb[0].mxu0
  %v1845 = vadd.f32 0.0, %v1844
  %v1846 = vpop.f32.mrb[0].mxu0
  %1847 = vdwg.mxu0
  %v1848 = vmul.f32 %v1545, %v1840
  %v1849 = vmul.f32 %v1546, %v1845
  %v1850 = vld [vmem:[%s9] sm:$0xff]
  %v1851 = vld [vmem:[%s9 + $0x8] sm:$0xff]
  %v1852 = vld [vmem:[%s9 + $0x10] sm:$0xff]
  %v1853 = vld [vmem:[%s9 + $0x18] sm:$0xff]
  %v1854 = vld [vmem:[%s10] sm:$0x1]
  %v1856 = vlaneseq
  %v1857 = vshrl.u32 %v1856, 7
  %v1858 = vsub.s32 0, %v1857
  %v1859 = vrot.slane %v1854, %v1858
  %v1862 = vsel %vm84, %v1848, 0
  %v1865 = vsel %vm84, %v1849, 0
  %1867 = vmatprep.subr.mxu0 0.0
  %1868 = vmatpush1.msra.mxu0 %v1850
  %1869 = vmatprep.subr.mxu0 0.0
  %1870 = vmatpush1.msra.mxu0 %v1851
  %1871 = vmatprep.subr.mxu0 0.0
  %1872 = vmatpush1.msra.mxu0 %v1852
  %1873 = vmatprep.subr.mxu0 0.0
  %1874 = vmatpush1.msra.mxu0 %v1853
  %1875 = vmatprep.subr.mxu0 0.0
  %1876 = vmatpush1.msra.mxu0 0.0
  %1877 = vmatprep.subr.mxu0 0.0
  %1878 = vmatpush1.msra.mxu0 0.0
  %1879 = vmatprep.subr.mxu0 0.0
  %1880 = vmatpush1.msra.mxu0 0.0
  %1881 = vmatprep.subr.mxu0 0.0
  %1882 = vmatpush1.msra.mxu0 0.0
  %1883 = vmatprep.subr.mxu0 0.0
  %1884 = vmatpush1.msra.mxu0 0.0
  %1885 = vmatprep.subr.mxu0 0.0
  %1886 = vmatpush1.msra.mxu0 0.0
  %1887 = vmatprep.subr.mxu0 0.0
  %1888 = vmatpush1.msra.mxu0 0.0
  %1889 = vmatprep.subr.mxu0 0.0
  %1890 = vmatpush1.msra.mxu0 0.0
  %1891 = vmatprep.subr.mxu0 0.0
  %1892 = vmatpush1.msra.mxu0 0.0
  %1893 = vmatprep.subr.mxu0 0.0
  %1894 = vmatpush1.msra.mxu0 0.0
  %1895 = vmatprep.subr.mxu0 0.0
  %1896 = vmatpush1.msra.mxu0 0.0
  %1897 = vmatprep.subr.mxu0 0.0
  %1898 = vmatpush1.msra.mxu0 0.0
  %1899 = vmatprep.subr.mxu0 0.0
  %1900 = vmatpush1.msra.mxu0 0.0
  %1901 = vmatprep.subr.mxu0 0.0
  %1902 = vmatpush1.msra.mxu0 0.0
  %1903 = vmatprep.subr.mxu0 0.0
  %1904 = vmatpush1.msra.mxu0 0.0
  %1905 = vmatprep.subr.mxu0 0.0
  %1906 = vmatpush1.msra.mxu0 0.0
  %1907 = vmatprep.subr.mxu0 0.0
  %1908 = vmatpush1.msra.mxu0 0.0
  %1909 = vmatprep.subr.mxu0 0.0
  %1910 = vmatpush1.msra.mxu0 0.0
  %1911 = vmatprep.subr.mxu0 0.0
  %1912 = vmatpush1.msra.mxu0 0.0
  %1913 = vmatprep.subr.mxu0 0.0
  %1914 = vmatpush1.msra.mxu0 0.0
  %1915 = vmatprep.subr.mxu0 0.0
  %1916 = vmatpush1.msra.mxu0 0.0
  %1917 = vmatprep.subr.mxu0 0.0
  %1918 = vmatpush1.msra.mxu0 0.0
  %1919 = vmatprep.subr.mxu0 0.0
  %1920 = vmatpush1.msra.mxu0 0.0
  %1921 = vmatprep.subr.mxu0 0.0
  %1922 = vmatpush1.msra.mxu0 0.0
  %1923 = vmatprep.subr.mxu0 0.0
  %1924 = vmatpush1.msra.mxu0 0.0
  %1925 = vmatprep.subr.mxu0 0.0
  %1926 = vmatpush1.msra.mxu0 0.0
  %1927 = vmatprep.subr.mxu0 0.0
  %1928 = vmatpush1.msra.mxu0 0.0
  %1929 = vmatprep.subr.mxu0 0.0
  %1930 = vmatpush1.msra.mxu0 0.0
  %1931 = vmatprep.mubr.f32.mxu0 0.0
  %1932 = vmatmul.mubr.f32.gmra.mrb[0].mxu0 %v1862
  %v1933 = vpop.f32.mrb[0].mxu0
  %v1934 = vadd.f32 %v1859, %v1933
  %v1935 = vpop.f32.mrb[0].mxu0
  %1936 = vmatprep.mubr.f32.mxu0 0.0
  %1937 = vmatmul.mubr.f32.gmra.mrb[0].mxu0 %v1865
  %v1938 = vpop.f32.mrb[0].mxu0
  %v1939 = vadd.f32 %v1859, %v1938
  %v1940 = vpop.f32.mrb[0].mxu0
  %1941 = vdwg.mxu0
  %v1942 = vld [vmem:[%s11] sm:$0xff]
  %v1943 = vld [vmem:[%s11 + $0x8] sm:$0xff]
  %v1944 = vld [vmem:[%s12] sm:$0x1]
  %v1946 = vlaneseq
  %v1947 = vshrl.u32 %v1946, 7
  %v1948 = vsub.s32 0, %v1947
  %v1949 = vrot.slane %v1944, %v1948
  %v1952 = vsel %vm1567, %v1934, 0
  %v1955 = vsel %vm1567, %v1939, 0
  %1957 = vmatprep.subr.mxu0 0.0
  %1958 = vmatpush1.msra.mxu0 %v1942
  %1959 = vmatprep.subr.mxu0 0.0
  %1960 = vmatpush1.msra.mxu0 %v1943
  %1961 = vmatprep.subr.mxu0 0.0
  %1962 = vmatpush1.msra.mxu0 0.0
  %1963 = vmatprep.subr.mxu0 0.0
  %1964 = vmatpush1.msra.mxu0 0.0
  %1965 = vmatprep.subr.mxu0 0.0
  %1966 = vmatpush1.msra.mxu0 0.0
  %1967 = vmatprep.subr.mxu0 0.0
  %1968 = vmatpush1.msra.mxu0 0.0
  %1969 = vmatprep.subr.mxu0 0.0
  %1970 = vmatpush1.msra.mxu0 0.0
  %1971 = vmatprep.subr.mxu0 0.0
  %1972 = vmatpush1.msra.mxu0 0.0
  %1973 = vmatprep.subr.mxu0 0.0
  %1974 = vmatpush1.msra.mxu0 0.0
  %1975 = vmatprep.subr.mxu0 0.0
  %1976 = vmatpush1.msra.mxu0 0.0
  %1977 = vmatprep.subr.mxu0 0.0
  %1978 = vmatpush1.msra.mxu0 0.0
  %1979 = vmatprep.subr.mxu0 0.0
  %1980 = vmatpush1.msra.mxu0 0.0
  %1981 = vmatprep.subr.mxu0 0.0
  %1982 = vmatpush1.msra.mxu0 0.0
  %1983 = vmatprep.subr.mxu0 0.0
  %1984 = vmatpush1.msra.mxu0 0.0
  %1985 = vmatprep.subr.mxu0 0.0
  %1986 = vmatpush1.msra.mxu0 0.0
  %1987 = vmatprep.subr.mxu0 0.0
  %1988 = vmatpush1.msra.mxu0 0.0
  %1989 = vmatprep.subr.mxu0 0.0
  %1990 = vmatpush1.msra.mxu0 0.0
  %1991 = vmatprep.subr.mxu0 0.0
  %1992 = vmatpush1.msra.mxu0 0.0
  %1993 = vmatprep.subr.mxu0 0.0
  %1994 = vmatpush1.msra.mxu0 0.0
  %1995 = vmatprep.subr.mxu0 0.0
  %1996 = vmatpush1.msra.mxu0 0.0
  %1997 = vmatprep.subr.mxu0 0.0
  %1998 = vmatpush1.msra.mxu0 0.0
  %1999 = vmatprep.subr.mxu0 0.0
  %2000 = vmatpush1.msra.mxu0 0.0
  %2001 = vmatprep.subr.mxu0 0.0
  %2002 = vmatpush1.msra.mxu0 0.0
  %2003 = vmatprep.subr.mxu0 0.0
  %2004 = vmatpush1.msra.mxu0 0.0
  %2005 = vmatprep.subr.mxu0 0.0
  %2006 = vmatpush1.msra.mxu0 0.0
  %2007 = vmatprep.subr.mxu0 0.0
  %2008 = vmatpush1.msra.mxu0 0.0
  %2009 = vmatprep.subr.mxu0 0.0
  %2010 = vmatpush1.msra.mxu0 0.0
  %2011 = vmatprep.subr.mxu0 0.0
  %2012 = vmatpush1.msra.mxu0 0.0
  %2013 = vmatprep.subr.mxu0 0.0
  %2014 = vmatpush1.msra.mxu0 0.0
  %2015 = vmatprep.subr.mxu0 0.0
  %2016 = vmatpush1.msra.mxu0 0.0
  %2017 = vmatprep.subr.mxu0 0.0
  %2018 = vmatpush1.msra.mxu0 0.0
  %2019 = vmatprep.subr.mxu0 0.0
  %2020 = vmatpush1.msra.mxu0 0.0
  %2021 = vmatprep.mubr.f32.mxu0 0.0
  %2022 = vmatmul.mubr.f32.gmra.mrb[0].mxu0 %v1952
  %v2023 = vpop.f32.mrb[0].mxu0
  %v2024 = vadd.f32 %v1949, %v2023
  %v2025 = vpop.f32.mrb[0].mxu0
  %2026 = vmatprep.mubr.f32.mxu0 0.0
  %2027 = vmatmul.mubr.f32.gmra.mrb[0].mxu0 %v1955
  %v2028 = vpop.f32.mrb[0].mxu0
  %v2029 = vadd.f32 %v1949, %v2028
  %v2030 = vpop.f32.mrb[0].mxu0
  %2031 = vdwg.mxu0
  %v2032 = vld [vmem:[%s14] sm:$0xf]
  %v2033 = vld [vmem:[%s14 + $0x4] sm:$0x1]
  %v2034 = vld [vmem:[%s14 + $0x5] sm:$0x1]
  %v2035 = vld [vmem:[%s14 + $0x6] sm:$0x1]
  %v2036 = vld [vmem:[%s13] sm:$0xff]
  %v2037 = vld [vmem:[%s13 + $0x8] sm:$0xff]
  %v2038 = vld [vmem:[%s13 + $0x10] sm:$0xff]
  %v2039 = vld [vmem:[%s13 + $0x18] sm:$0xff]
  %v2041 = vsel %vm84, %v2024, 0
  %v2044 = vsel %vm84, %v2029, 0
  %2046 = vmatprep.subr.mxu0 0.0
  %2047 = vmatpush1.msra.mxu0 %v2036
  %2048 = vmatprep.subr.mxu0 0.0
  %2049 = vmatpush1.msra.mxu0 %v2037
  %2050 = vmatprep.subr.mxu0 0.0
  %2051 = vmatpush1.msra.mxu0 %v2038
  %2052 = vmatprep.subr.mxu0 0.0
  %2053 = vmatpush1.msra.mxu0 %v2039
  %2054 = vmatprep.subr.mxu0 0.0
  %2055 = vmatpush1.msra.mxu0 0.0
  %2056 = vmatprep.subr.mxu0 0.0
  %2057 = vmatpush1.msra.mxu0 0.0
  %2058 = vmatprep.subr.mxu0 0.0
  %2059 = vmatpush1.msra.mxu0 0.0
  %2060 = vmatprep.subr.mxu0 0.0
  %2061 = vmatpush1.msra.mxu0 0.0
  %2062 = vmatprep.subr.mxu0 0.0
  %2063 = vmatpush1.msra.mxu0 0.0
  %2064 = vmatprep.subr.mxu0 0.0
  %2065 = vmatpush1.msra.mxu0 0.0
  %2066 = vmatprep.subr.mxu0 0.0
  %2067 = vmatpush1.msra.mxu0 0.0
  %2068 = vmatprep.subr.mxu0 0.0
  %2069 = vmatpush1.msra.mxu0 0.0
  %2070 = vmatprep.subr.mxu0 0.0
  %2071 = vmatpush1.msra.mxu0 0.0
  %2072 = vmatprep.subr.mxu0 0.0
  %2073 = vmatpush1.msra.mxu0 0.0
  %2074 = vmatprep.subr.mxu0 0.0
  %2075 = vmatpush1.msra.mxu0 0.0
  %2076 = vmatprep.subr.mxu0 0.0
  %2077 = vmatpush1.msra.mxu0 0.0
  %2078 = vmatprep.subr.mxu0 0.0
  %2079 = vmatpush1.msra.mxu0 0.0
  %2080 = vmatprep.subr.mxu0 0.0
  %2081 = vmatpush1.msra.mxu0 0.0
  %2082 = vmatprep.subr.mxu0 0.0
  %2083 = vmatpush1.msra.mxu0 0.0
  %2084 = vmatprep.subr.mxu0 0.0
  %2085 = vmatpush1.msra.mxu0 0.0
  %2086 = vmatprep.subr.mxu0 0.0
  %2087 = vmatpush1.msra.mxu0 0.0
  %2088 = vmatprep.subr.mxu0 0.0
  %2089 = vmatpush1.msra.mxu0 0.0
  %2090 = vmatprep.subr.mxu0 0.0
  %2091 = vmatpush1.msra.mxu0 0.0
  %2092 = vmatprep.subr.mxu0 0.0
  %2093 = vmatpush1.msra.mxu0 0.0
  %2094 = vmatprep.subr.mxu0 0.0
  %2095 = vmatpush1.msra.mxu0 0.0
  %2096 = vmatprep.subr.mxu0 0.0
  %2097 = vmatpush1.msra.mxu0 0.0
  %2098 = vmatprep.subr.mxu0 0.0
  %2099 = vmatpush1.msra.mxu0 0.0
  %2100 = vmatprep.subr.mxu0 0.0
  %2101 = vmatpush1.msra.mxu0 0.0
  %2102 = vmatprep.subr.mxu0 0.0
  %2103 = vmatpush1.msra.mxu0 0.0
  %2104 = vmatprep.subr.mxu0 0.0
  %2105 = vmatpush1.msra.mxu0 0.0
  %2106 = vmatprep.subr.mxu0 0.0
  %2107 = vmatpush1.msra.mxu0 0.0
  %2108 = vmatprep.subr.mxu0 0.0
  %2109 = vmatpush1.msra.mxu0 0.0
  %2110 = vmatprep.mubr.f32.mxu0 0.0
  %2111 = vmatmul.mubr.f32.gmra.mrb[0].mxu0 %v2041
  %v2112 = vpop.f32.mrb[0].mxu0
  %v2113 = vadd.f32 0.0, %v2112
  %v2114 = vpop.f32.mrb[0].mxu0
  %2115 = vmatprep.mubr.f32.mxu0 0.0
  %2116 = vmatmul.mubr.f32.gmra.mrb[0].mxu0 %v2044
  %v2117 = vpop.f32.mrb[0].mxu0
  %v2118 = vadd.f32 0.0, %v2117
  %v2119 = vpop.f32.mrb[0].mxu0
  %2120 = vdwg.mxu0
  %v2123 = vrot.slane %v2113, 2
  %v2124 = vrot.slane %v2118, 2
  %v2125 = vsel %vm168, %v2123, %v2124
  %v2129 = vsel %vm168, 0.0, %v2123
  %v2130 = vlaneseq
  %v2131 = vshrl.u32 %v2130, 7
  %v2132 = vsub.s32 0, %v2131
  %v2133 = vrot.slane %v2032, %v2132
  %v2134 = vmul.f32 %v2129, %v2133
  %v2135 = vmul.f32 %v2125, %v2133
  %v2136 = vlaneseq
  %v2137 = vshrl.u32 %v2136, 7
  %v2138 = vsub.s32 0, %v2137
  %v2139 = vrot.slane %v2033, %v2138
  %v2140 = vadd.f32 %v2139, %v2134
  %v2141 = vadd.f32 %v2139, %v2135
  %v2142 = vlaneseq
  %v2143 = vshrl.u32 %v2142, 7
  %v2144 = vsub.s32 1, %v2143
  %v2145 = vrot.slane %v2032, %v2144
  %v2146 = vmul.f32 %v2129, %v2145
  %v2147 = vmul.f32 %v2125, %v2145
  %v2148 = vmul.f32 %v2124, %v2145
  %v2152 = vrot.slane %v2146, 2
  %v2153 = vrot.slane %v2147, 2
  %v2154 = vsel %vm168, %v2152, %v2153
  %v2155 = vrot.slane %v2148, 2
  %v2156 = vsel %vm168, %v2153, %v2155
  %v2159 = vadd.f32 %v2140, %v2154
  %v2160 = vadd.f32 %v2141, %v2156
  %v2161 = vlaneseq
  %v2162 = vshrl.u32 %v2161, 7
  %v2163 = vsub.s32 2, %v2162
  %v2164 = vrot.slane %v2032, %v2163
  %v2165 = vmul.f32 %v2129, %v2164
  %v2166 = vmul.f32 %v2125, %v2164
  %v2167 = vmul.f32 %v2124, %v2164
  %v2171 = vrot.slane %v2165, 4
  %v2172 = vrot.slane %v2166, 4
  %v2173 = vsel %vm217, %v2171, %v2172
  %v2174 = vrot.slane %v2167, 4
  %v2175 = vsel %vm217, %v2172, %v2174
  %v2178 = vadd.f32 %v2159, %v2173
  %v2179 = vadd.f32 %v2160, %v2175
  %v2180 = vlaneseq
  %v2181 = vshrl.u32 %v2180, 7
  %v2182 = vsub.s32 3, %v2181
  %v2183 = vrot.slane %v2032, %v2182
  %v2184 = vmul.f32 %v2129, %v2183
  %v2185 = vmul.f32 %v2125, %v2183
  %v2186 = vmul.f32 %v2124, %v2183
  %v2190 = vrot.slane %v2184, 6
  %v2191 = vrot.slane %v2185, 6
  %v2192 = vsel %vm237, %v2190, %v2191
  %v2193 = vrot.slane %v2186, 6
  %v2194 = vsel %vm237, %v2191, %v2193
  %v2197 = vadd.f32 %v2178, %v2192
  %v2198 = vadd.f32 %v2179, %v2194
  %v2199 = vxor.u32 %v2197, 2147483648
  %v2200 = vxor.u32 %v2198, 2147483648
  %v2201 = vmul.f32 %v2199, 1.442695
  %v2202 = vpow.pop %v2201
  %v2203 = vmul.f32 %v2200, 1.442695
  %v2204 = vpow.pop %v2203
  %v2205 = vadd.f32 %v2202, 1.0
  %v2206 = vadd.f32 %v2204, 1.0
  %v2207 = vrcp.pop %v2205
  %v2208 = vmul.f32 1.0, %v2207
  %v2209 = vrcp.pop %v2206
  %v2210 = vmul.f32 1.0, %v2209
  %v2211 = vmul.f32 %v2197, %v2208
  %v2212 = vmul.f32 %v2198, %v2210
  %v2213 = vld [vmem:[%s15] sm:$0xff]
  %v2214 = vld [vmem:[%s15 + $0x8] sm:$0xff]
  %v2215 = vld [vmem:[%s15 + $0x10] sm:$0xff]
  %v2216 = vld [vmem:[%s15 + $0x18] sm:$0xff]
  %v2217 = vld [vmem:[%s15 + $0x20] sm:$0xff]
  %v2218 = vld [vmem:[%s15 + $0x28] sm:$0xff]
  %v2219 = vld [vmem:[%s15 + $0x30] sm:$0xff]
  %v2220 = vld [vmem:[%s15 + $0x38] sm:$0xff]
  %v2222 = vsel %vm269, %v2211, 0
  %v2225 = vsel %vm269, %v2212, 0
  %2227 = vmatprep.subr.mxu0 0.0
  %2228 = vmatpush1.msra.mxu0 %v2213
  %2229 = vmatprep.subr.mxu0 0.0
  %2230 = vmatpush1.msra.mxu0 %v2214
  %2231 = vmatprep.subr.mxu0 0.0
  %2232 = vmatpush1.msra.mxu0 %v2215
  %2233 = vmatprep.subr.mxu0 0.0
  %2234 = vmatpush1.msra.mxu0 %v2216
  %2235 = vmatprep.subr.mxu0 0.0
  %2236 = vmatpush1.msra.mxu0 %v2217
  %2237 = vmatprep.subr.mxu0 0.0
  %2238 = vmatpush1.msra.mxu0 %v2218
  %2239 = vmatprep.subr.mxu0 0.0
  %2240 = vmatpush1.msra.mxu0 %v2219
  %2241 = vmatprep.subr.mxu0 0.0
  %2242 = vmatpush1.msra.mxu0 %v2220
  %2243 = vmatprep.subr.mxu0 0.0
  %2244 = vmatpush1.msra.mxu0 0.0
  %2245 = vmatprep.subr.mxu0 0.0
  %2246 = vmatpush1.msra.mxu0 0.0
  %2247 = vmatprep.subr.mxu0 0.0
  %2248 = vmatpush1.msra.mxu0 0.0
  %2249 = vmatprep.subr.mxu0 0.0
  %2250 = vmatpush1.msra.mxu0 0.0
  %2251 = vmatprep.subr.mxu0 0.0
  %2252 = vmatpush1.msra.mxu0 0.0
  %2253 = vmatprep.subr.mxu0 0.0
  %2254 = vmatpush1.msra.mxu0 0.0
  %2255 = vmatprep.subr.mxu0 0.0
  %2256 = vmatpush1.msra.mxu0 0.0
  %2257 = vmatprep.subr.mxu0 0.0
  %2258 = vmatpush1.msra.mxu0 0.0
  %2259 = vmatprep.subr.mxu0 0.0
  %2260 = vmatpush1.msra.mxu0 0.0
  %2261 = vmatprep.subr.mxu0 0.0
  %2262 = vmatpush1.msra.mxu0 0.0
  %2263 = vmatprep.subr.mxu0 0.0
  %2264 = vmatpush1.msra.mxu0 0.0
  %2265 = vmatprep.subr.mxu0 0.0
  %2266 = vmatpush1.msra.mxu0 0.0
  %2267 = vmatprep.subr.mxu0 0.0
  %2268 = vmatpush1.msra.mxu0 0.0
  %2269 = vmatprep.subr.mxu0 0.0
  %2270 = vmatpush1.msra.mxu0 0.0
  %2271 = vmatprep.subr.mxu0 0.0
  %2272 = vmatpush1.msra.mxu0 0.0
  %2273 = vmatprep.subr.mxu0 0.0
  %2274 = vmatpush1.msra.mxu0 0.0
  %2275 = vmatprep.subr.mxu0 0.0
  %2276 = vmatpush1.msra.mxu0 0.0
  %2277 = vmatprep.subr.mxu0 0.0
  %2278 = vmatpush1.msra.mxu0 0.0
  %2279 = vmatprep.subr.mxu0 0.0
  %2280 = vmatpush1.msra.mxu0 0.0
  %2281 = vmatprep.subr.mxu0 0.0
  %2282 = vmatpush1.msra.mxu0 0.0
  %2283 = vmatprep.subr.mxu0 0.0
  %2284 = vmatpush1.msra.mxu0 0.0
  %2285 = vmatprep.subr.mxu0 0.0
  %2286 = vmatpush1.msra.mxu0 0.0
  %2287 = vmatprep.subr.mxu0 0.0
  %2288 = vmatpush1.msra.mxu0 0.0
  %2289 = vmatprep.subr.mxu0 0.0
  %2290 = vmatpush1.msra.mxu0 0.0
  %2291 = vmatprep.mubr.f32.mxu0 0.0
  %2292 = vmatmul.mubr.f32.gmra.mrb[0].mxu0 %v2222
  %v2293 = vpop.f32.mrb[0].mxu0
  %v2294 = vadd.f32 0.0, %v2293
  %v2295 = vpop.f32.mrb[0].mxu0
  %2296 = vmatprep.mubr.f32.mxu0 0.0
  %2297 = vmatmul.mubr.f32.gmra.mrb[0].mxu0 %v2225
  %v2298 = vpop.f32.mrb[0].mxu0
  %v2299 = vadd.f32 0.0, %v2298
  %v2300 = vpop.f32.mrb[0].mxu0
  %2301 = vdwg.mxu0
  %v2302 = vld [vmem:[%s16] sm:$0x3]
  %v2303 = vlaneseq
  %v2304 = vshrl.u32 %v2303, 7
  %v2305 = vsub.s32 0, %v2304
  %v2306 = vrot.slane %v2034, %v2305
  %2309 = vrot.lane.b32.xlu0 %v2294, 96
  %v2310 = vpop.permute.xlu0 %2309
  %2311 = vrot.lane.b32.xlu0 %v2299, 96
  %v2312 = vpop.permute.xlu0 %2311
  %v2313 = vsel %vm362, %v2310, 0
  %v2315 = vsel %vm362, %v2312, 0
  %v2318 = vsel %vm237, %v2302, 0
  %2320 = vmatprep.subr.mxu0 0.0
  %2321 = vmatpush1.msra.mxu0 %v2318
  %2322 = vmatprep.subr.mxu0 0.0
  %2323 = vmatpush1.msra.mxu0 0.0
  %2324 = vmatprep.subr.mxu0 0.0
  %2325 = vmatpush1.msra.mxu0 0.0
  %2326 = vmatprep.subr.mxu0 0.0
  %2327 = vmatpush1.msra.mxu0 0.0
  %2328 = vmatprep.subr.mxu0 0.0
  %2329 = vmatpush1.msra.mxu0 0.0
  %2330 = vmatprep.subr.mxu0 0.0
  %2331 = vmatpush1.msra.mxu0 0.0
  %2332 = vmatprep.subr.mxu0 0.0
  %2333 = vmatpush1.msra.mxu0 0.0
  %2334 = vmatprep.subr.mxu0 0.0
  %2335 = vmatpush1.msra.mxu0 0.0
  %2336 = vmatprep.subr.mxu0 0.0
  %2337 = vmatpush1.msra.mxu0 0.0
  %2338 = vmatprep.subr.mxu0 0.0
  %2339 = vmatpush1.msra.mxu0 0.0
  %2340 = vmatprep.subr.mxu0 0.0
  %2341 = vmatpush1.msra.mxu0 0.0
  %2342 = vmatprep.subr.mxu0 0.0
  %2343 = vmatpush1.msra.mxu0 0.0
  %2344 = vmatprep.subr.mxu0 0.0
  %2345 = vmatpush1.msra.mxu0 0.0
  %2346 = vmatprep.subr.mxu0 0.0
  %2347 = vmatpush1.msra.mxu0 0.0
  %2348 = vmatprep.subr.mxu0 0.0
  %2349 = vmatpush1.msra.mxu0 0.0
  %2350 = vmatprep.subr.mxu0 0.0
  %2351 = vmatpush1.msra.mxu0 0.0
  %2352 = vmatprep.subr.mxu0 0.0
  %2353 = vmatpush1.msra.mxu0 0.0
  %2354 = vmatprep.subr.mxu0 0.0
  %2355 = vmatpush1.msra.mxu0 0.0
  %2356 = vmatprep.subr.mxu0 0.0
  %2357 = vmatpush1.msra.mxu0 0.0
  %2358 = vmatprep.subr.mxu0 0.0
  %2359 = vmatpush1.msra.mxu0 0.0
  %2360 = vmatprep.subr.mxu0 0.0
  %2361 = vmatpush1.msra.mxu0 0.0
  %2362 = vmatprep.subr.mxu0 0.0
  %2363 = vmatpush1.msra.mxu0 0.0
  %2364 = vmatprep.subr.mxu0 0.0
  %2365 = vmatpush1.msra.mxu0 0.0
  %2366 = vmatprep.subr.mxu0 0.0
  %2367 = vmatpush1.msra.mxu0 0.0
  %2368 = vmatprep.subr.mxu0 0.0
  %2369 = vmatpush1.msra.mxu0 0.0
  %2370 = vmatprep.subr.mxu0 0.0
  %2371 = vmatpush1.msra.mxu0 0.0
  %2372 = vmatprep.subr.mxu0 0.0
  %2373 = vmatpush1.msra.mxu0 0.0
  %2374 = vmatprep.subr.mxu0 0.0
  %2375 = vmatpush1.msra.mxu0 0.0
  %2376 = vmatprep.subr.mxu0 0.0
  %2377 = vmatpush1.msra.mxu0 0.0
  %2378 = vmatprep.subr.mxu0 0.0
  %2379 = vmatpush1.msra.mxu0 0.0
  %2380 = vmatprep.subr.mxu0 0.0
  %2381 = vmatpush1.msra.mxu0 0.0
  %2382 = vmatprep.subr.mxu0 0.0
  %2383 = vmatpush1.msra.mxu0 0.0
  %2384 = vmatprep.mubr.f32.mxu0 0.0
  %2385 = vmatmul.mubr.f32.gmra.mrb[0].mxu0 %v2313
  %v2386 = vpop.f32.mrb[0].mxu0
  %v2387 = vadd.f32 %v2306, %v2386
  %v2388 = vpop.f32.mrb[0].mxu0
  %2389 = vmatprep.mubr.f32.mxu0 0.0
  %2390 = vmatmul.mubr.f32.gmra.mrb[0].mxu0 %v2315
  %v2391 = vpop.f32.mrb[0].mxu0
  %v2392 = vadd.f32 %v2306, %v2391
  %v2393 = vpop.f32.mrb[0].mxu0
  %2394 = vdwg.mxu0
  %v2395 = vmax.f32 %v2387, 0.0
  %v2396 = vmax.f32 %v2392, 0.0
  %vm2397 = vcmp.ne.f32.partialorder %v2387, %v2387
  %vm2398 = vcmp.ne.f32.partialorder %v2392, %v2392
  %v2399 = vadd.f32 %v2387, 0.0
  %v2400 = vadd.f32 %v2392, 0.0
  %v2401 = vand.u32 2147483647, %v2387
  %v2402 = vand.u32 2147483647, %v2392
  %v2403 = vsub.f32 0.0, %v2401
  %v2404 = vsub.f32 0.0, %v2402
  %v2405 = vmul.f32 %v2403, 1.442695
  %v2406 = vpow.pop %v2405
  %v2407 = vmul.f32 %v2404, 1.442695
  %v2408 = vpow.pop %v2407
  %v2409 = vadd.f32 %v2406, 1.0
  %v2410 = vlog2.pop %v2409
  %v2411 = vmul.f32 %v2410, 0.6931472
  %v2412 = vmul.f32 -0.5, %v2406
  %v2413 = vadd.f32 %v2412, 1.0
  %v2414 = vmul.f32 %v2413, %v2406
  %v2415 = vand.u32 2147483647, %v2406
  %vm2416 = vcmp.lt.f32.partialorder %v2415, 0.0004427343
  %v2417 = vsel %vm2416, %v2414, %v2411
  %v2418 = vadd.f32 %v2408, 1.0
  %v2419 = vlog2.pop %v2418
  %v2420 = vmul.f32 %v2419, 0.6931472
  %v2421 = vmul.f32 -0.5, %v2408
  %v2422 = vadd.f32 %v2421, 1.0
  %v2423 = vmul.f32 %v2422, %v2408
  %v2424 = vand.u32 2147483647, %v2408
  %vm2425 = vcmp.lt.f32.partialorder %v2424, 0.0004427343
  %v2426 = vsel %vm2425, %v2423, %v2420
  %v2427 = vadd.f32 %v2395, %v2417
  %v2428 = vadd.f32 %v2396, %v2426
  %v2429 = vsel %vm2397, %v2399, %v2427
  %v2430 = vsel %vm2398, %v2400, %v2428
  %v2431 = vld [vmem:[%s17] sm:$0xff]
  %v2432 = vmul.f32 %v2431, 1.442695
  %v2433 = vpow.pop %v2432
  %v2434 = vsub.f32 0.0, %v2433
  %2437 = vrot.lane.b32.xlu0 %v2429, 64
  %v2438 = vpop.permute.xlu0 %2437
  %2439 = vrot.lane.b32.xlu0 %v2430, 64
  %v2440 = vpop.permute.xlu0 %2439
  %v2443 = vsel %vm269, %v2429, %v2438
  %v2444 = vsel %vm269, %v2430, %v2440
  %v2446 = vlaneseq
  %v2447 = vshrl.u32 %v2446, 7
  %v2448 = vsub.s32 0, %v2447
  %v2449 = vrot.slane %v2434, %v2448
  %v2450 = vlaneseq
  %v2451 = vshrl.u32 %v2450, 7
  %v2452 = vsub.s32 1, %v2451
  %v2453 = vrot.slane %v2434, %v2452
  %v2454 = vlaneseq
  %v2455 = vshrl.u32 %v2454, 7
  %v2456 = vsub.s32 2, %v2455
  %v2457 = vrot.slane %v2434, %v2456
  %v2458 = vlaneseq
  %v2459 = vshrl.u32 %v2458, 7
  %v2460 = vsub.s32 3, %v2459
  %v2461 = vrot.slane %v2434, %v2460
  %v2462 = vlaneseq
  %v2463 = vshrl.u32 %v2462, 7
  %v2464 = vsub.s32 4, %v2463
  %v2465 = vrot.slane %v2434, %v2464
  %v2466 = vlaneseq
  %v2467 = vshrl.u32 %v2466, 7
  %v2468 = vsub.s32 5, %v2467
  %v2469 = vrot.slane %v2434, %v2468
  %v2470 = vlaneseq
  %v2471 = vshrl.u32 %v2470, 7
  %v2472 = vsub.s32 6, %v2471
  %v2473 = vrot.slane %v2434, %v2472
  %v2474 = vlaneseq
  %v2475 = vshrl.u32 %v2474, 7
  %v2476 = vsub.s32 7, %v2475
  %v2477 = vrot.slane %v2434, %v2476
  %v2486 = vmul.f32 %v2449, %v2443
  %v2487 = vmul.f32 %v2453, %v2443
  %v2488 = vmul.f32 %v2457, %v2443
  %v2489 = vmul.f32 %v2461, %v2443
  %v2490 = vmul.f32 %v2465, %v2443
  %v2491 = vmul.f32 %v2469, %v2443
  %v2492 = vmul.f32 %v2473, %v2443
  %v2493 = vmul.f32 %v2477, %v2443
  %v2494 = vmul.f32 %v2449, %v2444
  %v2495 = vmul.f32 %v2453, %v2444
  %v2496 = vmul.f32 %v2457, %v2444
  %v2497 = vmul.f32 %v2461, %v2444
  %v2498 = vmul.f32 %v2465, %v2444
  %v2499 = vmul.f32 %v2469, %v2444
  %v2500 = vmul.f32 %v2473, %v2444
  %v2501 = vmul.f32 %v2477, %v2444
  %v2502 = vmul.f32 %v2486, 1.442695
  %v2503 = vpow.pop %v2502
  %v2504 = vmul.f32 %v2487, 1.442695
  %v2505 = vpow.pop %v2504
  %v2506 = vmul.f32 %v2488, 1.442695
  %v2507 = vpow.pop %v2506
  %v2508 = vmul.f32 %v2489, 1.442695
  %v2509 = vpow.pop %v2508
  %v2510 = vmul.f32 %v2490, 1.442695
  %v2511 = vpow.pop %v2510
  %v2512 = vmul.f32 %v2491, 1.442695
  %v2513 = vpow.pop %v2512
  %v2514 = vmul.f32 %v2492, 1.442695
  %v2515 = vpow.pop %v2514
  %v2516 = vmul.f32 %v2493, 1.442695
  %v2517 = vpow.pop %v2516
  %v2518 = vmul.f32 %v2494, 1.442695
  %v2519 = vpow.pop %v2518
  %v2520 = vmul.f32 %v2495, 1.442695
  %v2521 = vpow.pop %v2520
  %v2522 = vmul.f32 %v2496, 1.442695
  %v2523 = vpow.pop %v2522
  %v2524 = vmul.f32 %v2497, 1.442695
  %v2525 = vpow.pop %v2524
  %v2526 = vmul.f32 %v2498, 1.442695
  %v2527 = vpow.pop %v2526
  %v2528 = vmul.f32 %v2499, 1.442695
  %v2529 = vpow.pop %v2528
  %v2530 = vmul.f32 %v2500, 1.442695
  %v2531 = vpow.pop %v2530
  %v2532 = vmul.f32 %v2501, 1.442695
  %v2533 = vpow.pop %v2532
  %v2534 = vmul.f32 %v2429, %v2211
  %v2535 = vmul.f32 %v2430, %v2212
  %2536 = vset.pattern.permute.xlu0 0
  %2537 = vperm.xlu0 %2536, %v2294
  %v2538 = vpop.permute.xlu0 %2537
  %2540 = vset.pattern.permute.xlu0 0
  %2541 = vperm.xlu0 %2540, %v2299
  %v2542 = vpop.permute.xlu0 %2541
  %v2544 = vmul.f32 %v2538, %v2534
  %v2545 = vmul.f32 %v2542, %v2535
  %2546 = vset.pattern.permute.xlu0 1
  %2547 = vperm.xlu0 %2546, %v2294
  %v2548 = vpop.permute.xlu0 %2547
  %2550 = vset.pattern.permute.xlu0 1
  %2551 = vperm.xlu0 %2550, %v2299
  %v2552 = vpop.permute.xlu0 %2551
  %v2554 = vmul.f32 %v2548, %v2534
  %v2555 = vmul.f32 %v2552, %v2535
  %2556 = vset.pattern.permute.xlu0 2
  %2557 = vperm.xlu0 %2556, %v2294
  %v2558 = vpop.permute.xlu0 %2557
  %2560 = vset.pattern.permute.xlu0 2
  %2561 = vperm.xlu0 %2560, %v2299
  %v2562 = vpop.permute.xlu0 %2561
  %v2564 = vmul.f32 %v2558, %v2534
  %v2565 = vmul.f32 %v2562, %v2535
  %2566 = vset.pattern.permute.xlu0 3
  %2567 = vperm.xlu0 %2566, %v2294
  %v2568 = vpop.permute.xlu0 %2567
  %2570 = vset.pattern.permute.xlu0 3
  %2571 = vperm.xlu0 %2570, %v2299
  %v2572 = vpop.permute.xlu0 %2571
  %v2574 = vmul.f32 %v2568, %v2534
  %v2575 = vmul.f32 %v2572, %v2535
  %2576 = vset.pattern.permute.xlu0 4
  %2577 = vperm.xlu0 %2576, %v2294
  %v2578 = vpop.permute.xlu0 %2577
  %2580 = vset.pattern.permute.xlu0 4
  %2581 = vperm.xlu0 %2580, %v2299
  %v2582 = vpop.permute.xlu0 %2581
  %v2584 = vmul.f32 %v2578, %v2534
  %v2585 = vmul.f32 %v2582, %v2535
  %2586 = vset.pattern.permute.xlu0 5
  %2587 = vperm.xlu0 %2586, %v2294
  %v2588 = vpop.permute.xlu0 %2587
  %2590 = vset.pattern.permute.xlu0 5
  %2591 = vperm.xlu0 %2590, %v2299
  %v2592 = vpop.permute.xlu0 %2591
  %v2594 = vmul.f32 %v2588, %v2534
  %v2595 = vmul.f32 %v2592, %v2535
  %2596 = vset.pattern.permute.xlu0 6
  %2597 = vperm.xlu0 %2596, %v2294
  %v2598 = vpop.permute.xlu0 %2597
  %2600 = vset.pattern.permute.xlu0 6
  %2601 = vperm.xlu0 %2600, %v2299
  %v2602 = vpop.permute.xlu0 %2601
  %v2604 = vmul.f32 %v2598, %v2534
  %v2605 = vmul.f32 %v2602, %v2535
  %2606 = vset.pattern.permute.xlu0 7
  %2607 = vperm.xlu0 %2606, %v2294
  %v2608 = vpop.permute.xlu0 %2607
  %2610 = vset.pattern.permute.xlu0 7
  %2611 = vperm.xlu0 %2610, %v2299
  %v2612 = vpop.permute.xlu0 %2611
  %v2614 = vmul.f32 %v2608, %v2534
  %v2615 = vmul.f32 %v2612, %v2535
  %2616 = vset.pattern.permute.xlu0 8
  %2617 = vperm.xlu0 %2616, %v2294
  %v2618 = vpop.permute.xlu0 %2617
  %2620 = vset.pattern.permute.xlu0 8
  %2621 = vperm.xlu0 %2620, %v2299
  %v2622 = vpop.permute.xlu0 %2621
  %v2624 = vmul.f32 %v2618, %v2534
  %v2625 = vmul.f32 %v2622, %v2535
  %2626 = vset.pattern.permute.xlu0 9
  %2627 = vperm.xlu0 %2626, %v2294
  %v2628 = vpop.permute.xlu0 %2627
  %2630 = vset.pattern.permute.xlu0 9
  %2631 = vperm.xlu0 %2630, %v2299
  %v2632 = vpop.permute.xlu0 %2631
  %v2634 = vmul.f32 %v2628, %v2534
  %v2635 = vmul.f32 %v2632, %v2535
  %2636 = vset.pattern.permute.xlu0 10
  %2637 = vperm.xlu0 %2636, %v2294
  %v2638 = vpop.permute.xlu0 %2637
  %2640 = vset.pattern.permute.xlu0 10
  %2641 = vperm.xlu0 %2640, %v2299
  %v2642 = vpop.permute.xlu0 %2641
  %v2644 = vmul.f32 %v2638, %v2534
  %v2645 = vmul.f32 %v2642, %v2535
  %2646 = vset.pattern.permute.xlu0 11
  %2647 = vperm.xlu0 %2646, %v2294
  %v2648 = vpop.permute.xlu0 %2647
  %2650 = vset.pattern.permute.xlu0 11
  %2651 = vperm.xlu0 %2650, %v2299
  %v2652 = vpop.permute.xlu0 %2651
  %v2654 = vmul.f32 %v2648, %v2534
  %v2655 = vmul.f32 %v2652, %v2535
  %2656 = vset.pattern.permute.xlu0 12
  %2657 = vperm.xlu0 %2656, %v2294
  %v2658 = vpop.permute.xlu0 %2657
  %2660 = vset.pattern.permute.xlu0 12
  %2661 = vperm.xlu0 %2660, %v2299
  %v2662 = vpop.permute.xlu0 %2661
  %v2664 = vmul.f32 %v2658, %v2534
  %v2665 = vmul.f32 %v2662, %v2535
  %2666 = vset.pattern.permute.xlu0 13
  %2667 = vperm.xlu0 %2666, %v2294
  %v2668 = vpop.permute.xlu0 %2667
  %2670 = vset.pattern.permute.xlu0 13
  %2671 = vperm.xlu0 %2670, %v2299
  %v2672 = vpop.permute.xlu0 %2671
  %v2674 = vmul.f32 %v2668, %v2534
  %v2675 = vmul.f32 %v2672, %v2535
  %2676 = vset.pattern.permute.xlu0 14
  %2677 = vperm.xlu0 %2676, %v2294
  %v2678 = vpop.permute.xlu0 %2677
  %2680 = vset.pattern.permute.xlu0 14
  %2681 = vperm.xlu0 %2680, %v2299
  %v2682 = vpop.permute.xlu0 %2681
  %v2684 = vmul.f32 %v2678, %v2534
  %v2685 = vmul.f32 %v2682, %v2535
  %2686 = vset.pattern.permute.xlu0 15
  %2687 = vperm.xlu0 %2686, %v2294
  %v2688 = vpop.permute.xlu0 %2687
  %2690 = vset.pattern.permute.xlu0 15
  %2691 = vperm.xlu0 %2690, %v2299
  %v2692 = vpop.permute.xlu0 %2691
  %v2694 = vmul.f32 %v2688, %v2534
  %v2695 = vmul.f32 %v2692, %v2535
  %2698 = vrot.lane.b32.xlu0 %v2554, 64
  %v2699 = vpop.permute.xlu0 %2698
  %2700 = vrot.lane.b32.xlu0 %v2555, 64
  %v2701 = vpop.permute.xlu0 %2700
  %2706 = vrot.lane.b32.xlu0 %v2574, 64
  %v2707 = vpop.permute.xlu0 %2706
  %2708 = vrot.lane.b32.xlu0 %v2575, 64
  %v2709 = vpop.permute.xlu0 %2708
  %2714 = vrot.lane.b32.xlu0 %v2594, 64
  %v2715 = vpop.permute.xlu0 %2714
  %2716 = vrot.lane.b32.xlu0 %v2595, 64
  %v2717 = vpop.permute.xlu0 %2716
  %2722 = vrot.lane.b32.xlu0 %v2614, 64
  %v2723 = vpop.permute.xlu0 %2722
  %2724 = vrot.lane.b32.xlu0 %v2615, 64
  %v2725 = vpop.permute.xlu0 %2724
  %2730 = vrot.lane.b32.xlu0 %v2634, 64
  %v2731 = vpop.permute.xlu0 %2730
  %2732 = vrot.lane.b32.xlu0 %v2635, 64
  %v2733 = vpop.permute.xlu0 %2732
  %2738 = vrot.lane.b32.xlu0 %v2654, 64
  %v2739 = vpop.permute.xlu0 %2738
  %2740 = vrot.lane.b32.xlu0 %v2655, 64
  %v2741 = vpop.permute.xlu0 %2740
  %2746 = vrot.lane.b32.xlu0 %v2674, 64
  %v2747 = vpop.permute.xlu0 %2746
  %2748 = vrot.lane.b32.xlu0 %v2675, 64
  %v2749 = vpop.permute.xlu0 %2748
  %2754 = vrot.lane.b32.xlu0 %v2694, 64
  %v2755 = vpop.permute.xlu0 %2754
  %2756 = vrot.lane.b32.xlu0 %v2695, 64
  %v2757 = vpop.permute.xlu0 %2756
  %v2760 = vsel %vm269, %v2544, %v2699
  %v2761 = vsel %vm269, %v2545, %v2701
  %v2762 = vsel %vm269, %v2564, %v2707
  %v2763 = vsel %vm269, %v2565, %v2709
  %v2764 = vsel %vm269, %v2584, %v2715
  %v2765 = vsel %vm269, %v2585, %v2717
  %v2766 = vsel %vm269, %v2604, %v2723
  %v2767 = vsel %vm269, %v2605, %v2725
  %v2768 = vsel %vm269, %v2624, %v2731
  %v2769 = vsel %vm269, %v2625, %v2733
  %v2770 = vsel %vm269, %v2644, %v2739
  %v2771 = vsel %vm269, %v2645, %v2741
  %v2772 = vsel %vm269, %v2664, %v2747
  %v2773 = vsel %vm269, %v2665, %v2749
  %v2774 = vsel %vm269, %v2684, %v2755
  %v2775 = vsel %vm269, %v2685, %v2757
  %v2776 = vmul.f32 %v2503, 0.0
  %v2777 = vmul.f32 %v2505, 0.0
  %v2778 = vmul.f32 %v2507, 0.0
  %v2779 = vmul.f32 %v2509, 0.0
  %v2780 = vmul.f32 %v2511, 0.0
  %v2781 = vmul.f32 %v2513, 0.0
  %v2782 = vmul.f32 %v2515, 0.0
  %v2783 = vmul.f32 %v2517, 0.0
  %v2784 = vadd.f32 %v2776, %v2760
  %v2785 = vadd.f32 %v2777, %v2762
  %v2786 = vadd.f32 %v2778, %v2764
  %v2787 = vadd.f32 %v2779, %v2766
  %v2788 = vadd.f32 %v2780, %v2768
  %v2789 = vadd.f32 %v2781, %v2770
  %v2790 = vadd.f32 %v2782, %v2772
  %v2791 = vadd.f32 %v2783, %v2774
  %v2800 = vrot.slane %v2784, 6
  %v2801 = vrot.slane %v2785, 6
  %v2802 = vrot.slane %v2786, 6
  %v2803 = vrot.slane %v2787, 6
  %v2804 = vrot.slane %v2788, 6
  %v2805 = vrot.slane %v2789, 6
  %v2806 = vrot.slane %v2790, 6
  %v2807 = vrot.slane %v2791, 6
  %v2816 = vmul.f32 %v2503, %v2800
  %v2817 = vmul.f32 %v2505, %v2801
  %v2818 = vmul.f32 %v2507, %v2802
  %v2819 = vmul.f32 %v2509, %v2803
  %v2820 = vmul.f32 %v2511, %v2804
  %v2821 = vmul.f32 %v2513, %v2805
  %v2822 = vmul.f32 %v2515, %v2806
  %v2823 = vmul.f32 %v2517, %v2807
  %v2824 = vadd.f32 %v2816, %v2760
  %v2825 = vadd.f32 %v2817, %v2762
  %v2826 = vadd.f32 %v2818, %v2764
  %v2827 = vadd.f32 %v2819, %v2766
  %v2828 = vadd.f32 %v2820, %v2768
  %v2829 = vadd.f32 %v2821, %v2770
  %v2830 = vadd.f32 %v2822, %v2772
  %v2831 = vadd.f32 %v2823, %v2774
  %v2840 = vrot.slane %v2824, 6
  %v2841 = vrot.slane %v2825, 6
  %v2842 = vrot.slane %v2826, 6
  %v2843 = vrot.slane %v2827, 6
  %v2844 = vrot.slane %v2828, 6
  %v2845 = vrot.slane %v2829, 6
  %v2846 = vrot.slane %v2830, 6
  %v2847 = vrot.slane %v2831, 6
  %v2856 = vmul.f32 %v2503, %v2840
  %v2857 = vmul.f32 %v2505, %v2841
  %v2858 = vmul.f32 %v2507, %v2842
  %v2859 = vmul.f32 %v2509, %v2843
  %v2860 = vmul.f32 %v2511, %v2844
  %v2861 = vmul.f32 %v2513, %v2845
  %v2862 = vmul.f32 %v2515, %v2846
  %v2863 = vmul.f32 %v2517, %v2847
  %v2864 = vadd.f32 %v2856, %v2760
  %v2865 = vadd.f32 %v2857, %v2762
  %v2866 = vadd.f32 %v2858, %v2764
  %v2867 = vadd.f32 %v2859, %v2766
  %v2868 = vadd.f32 %v2860, %v2768
  %v2869 = vadd.f32 %v2861, %v2770
  %v2870 = vadd.f32 %v2862, %v2772
  %v2871 = vadd.f32 %v2863, %v2774
  %v2880 = vrot.slane %v2864, 6
  %v2881 = vrot.slane %v2865, 6
  %v2882 = vrot.slane %v2866, 6
  %v2883 = vrot.slane %v2867, 6
  %v2884 = vrot.slane %v2868, 6
  %v2885 = vrot.slane %v2869, 6
  %v2886 = vrot.slane %v2870, 6
  %v2887 = vrot.slane %v2871, 6
  %v2896 = vmul.f32 %v2503, %v2880
  %v2897 = vmul.f32 %v2505, %v2881
  %v2898 = vmul.f32 %v2507, %v2882
  %v2899 = vmul.f32 %v2509, %v2883
  %v2900 = vmul.f32 %v2511, %v2884
  %v2901 = vmul.f32 %v2513, %v2885
  %v2902 = vmul.f32 %v2515, %v2886
  %v2903 = vmul.f32 %v2517, %v2887
  %v2904 = vadd.f32 %v2896, %v2760
  %v2905 = vadd.f32 %v2897, %v2762
  %v2906 = vadd.f32 %v2898, %v2764
  %v2907 = vadd.f32 %v2899, %v2766
  %v2908 = vadd.f32 %v2900, %v2768
  %v2909 = vadd.f32 %v2901, %v2770
  %v2910 = vadd.f32 %v2902, %v2772
  %v2911 = vadd.f32 %v2903, %v2774
  %v2920 = vrot.slane %v2904, 6
  %v2921 = vrot.slane %v2905, 6
  %v2922 = vrot.slane %v2906, 6
  %v2923 = vrot.slane %v2907, 6
  %v2924 = vrot.slane %v2908, 6
  %v2925 = vrot.slane %v2909, 6
  %v2926 = vrot.slane %v2910, 6
  %v2927 = vrot.slane %v2911, 6
  %v2936 = vmul.f32 %v2519, %v2920
  %v2937 = vmul.f32 %v2521, %v2921
  %v2938 = vmul.f32 %v2523, %v2922
  %v2939 = vmul.f32 %v2525, %v2923
  %v2940 = vmul.f32 %v2527, %v2924
  %v2941 = vmul.f32 %v2529, %v2925
  %v2942 = vmul.f32 %v2531, %v2926
  %v2943 = vmul.f32 %v2533, %v2927
  %v2944 = vadd.f32 %v2936, %v2761
  %v2945 = vadd.f32 %v2937, %v2763
  %v2946 = vadd.f32 %v2938, %v2765
  %v2947 = vadd.f32 %v2939, %v2767
  %v2948 = vadd.f32 %v2940, %v2769
  %v2949 = vadd.f32 %v2941, %v2771
  %v2950 = vadd.f32 %v2942, %v2773
  %v2951 = vadd.f32 %v2943, %v2775
  %v2960 = vrot.slane %v2944, 6
  %v2961 = vrot.slane %v2945, 6
  %v2962 = vrot.slane %v2946, 6
  %v2963 = vrot.slane %v2947, 6
  %v2964 = vrot.slane %v2948, 6
  %v2965 = vrot.slane %v2949, 6
  %v2966 = vrot.slane %v2950, 6
  %v2967 = vrot.slane %v2951, 6
  %v2976 = vmul.f32 %v2519, %v2960
  %v2977 = vmul.f32 %v2521, %v2961
  %v2978 = vmul.f32 %v2523, %v2962
  %v2979 = vmul.f32 %v2525, %v2963
  %v2980 = vmul.f32 %v2527, %v2964
  %v2981 = vmul.f32 %v2529, %v2965
  %v2982 = vmul.f32 %v2531, %v2966
  %v2983 = vmul.f32 %v2533, %v2967
  %v2984 = vadd.f32 %v2976, %v2761
  %v2985 = vadd.f32 %v2977, %v2763
  %v2986 = vadd.f32 %v2978, %v2765
  %v2987 = vadd.f32 %v2979, %v2767
  %v2988 = vadd.f32 %v2980, %v2769
  %v2989 = vadd.f32 %v2981, %v2771
  %v2990 = vadd.f32 %v2982, %v2773
  %v2991 = vadd.f32 %v2983, %v2775
  %v3000 = vrot.slane %v2984, 6
  %v3001 = vrot.slane %v2985, 6
  %v3002 = vrot.slane %v2986, 6
  %v3003 = vrot.slane %v2987, 6
  %v3004 = vrot.slane %v2988, 6
  %v3005 = vrot.slane %v2989, 6
  %v3006 = vrot.slane %v2990, 6
  %v3007 = vrot.slane %v2991, 6
  %v3016 = vmul.f32 %v2519, %v3000
  %v3017 = vmul.f32 %v2521, %v3001
  %v3018 = vmul.f32 %v2523, %v3002
  %v3019 = vmul.f32 %v2525, %v3003
  %v3020 = vmul.f32 %v2527, %v3004
  %v3021 = vmul.f32 %v2529, %v3005
  %v3022 = vmul.f32 %v2531, %v3006
  %v3023 = vmul.f32 %v2533, %v3007
  %v3024 = vadd.f32 %v3016, %v2761
  %v3025 = vadd.f32 %v3017, %v2763
  %v3026 = vadd.f32 %v3018, %v2765
  %v3027 = vadd.f32 %v3019, %v2767
  %v3028 = vadd.f32 %v3020, %v2769
  %v3029 = vadd.f32 %v3021, %v2771
  %v3030 = vadd.f32 %v3022, %v2773
  %v3031 = vadd.f32 %v3023, %v2775
  %v3040 = vrot.slane %v3024, 6
  %v3041 = vrot.slane %v3025, 6
  %v3042 = vrot.slane %v3026, 6
  %v3043 = vrot.slane %v3027, 6
  %v3044 = vrot.slane %v3028, 6
  %v3045 = vrot.slane %v3029, 6
  %v3046 = vrot.slane %v3030, 6
  %v3047 = vrot.slane %v3031, 6
  %v3056 = vmul.f32 %v2519, %v3040
  %v3057 = vmul.f32 %v2521, %v3041
  %v3058 = vmul.f32 %v2523, %v3042
  %v3059 = vmul.f32 %v2525, %v3043
  %v3060 = vmul.f32 %v2527, %v3044
  %v3061 = vmul.f32 %v2529, %v3045
  %v3062 = vmul.f32 %v2531, %v3046
  %v3063 = vmul.f32 %v2533, %v3047
  %v3064 = vadd.f32 %v3056, %v2761
  %v3065 = vadd.f32 %v3057, %v2763
  %v3066 = vadd.f32 %v3058, %v2765
  %v3067 = vadd.f32 %v3059, %v2767
  %v3068 = vadd.f32 %v3060, %v2769
  %v3069 = vadd.f32 %v3061, %v2771
  %v3070 = vadd.f32 %v3062, %v2773
  %v3071 = vadd.f32 %v3063, %v2775
  %v3072 = vsel %vm237, %v2784, %v2824
  %v3073 = vsel %vm237, %v2785, %v2825
  %v3074 = vsel %vm237, %v2786, %v2826
  %v3075 = vsel %vm237, %v2787, %v2827
  %v3076 = vsel %vm237, %v2788, %v2828
  %v3077 = vsel %vm237, %v2789, %v2829
  %v3078 = vsel %vm237, %v2790, %v2830
  %v3079 = vsel %vm237, %v2791, %v2831
  %v3080 = vsel %vm217, %v3072, %v2864
  %v3081 = vsel %vm217, %v3073, %v2865
  %v3082 = vsel %vm217, %v3074, %v2866
  %v3083 = vsel %vm217, %v3075, %v2867
  %v3084 = vsel %vm217, %v3076, %v2868
  %v3085 = vsel %vm217, %v3077, %v2869
  %v3086 = vsel %vm217, %v3078, %v2870
  %v3087 = vsel %vm217, %v3079, %v2871
  %v3088 = vsel %vm168, %v3080, %v2904
  %v3089 = vsel %vm168, %v3081, %v2905
  %v3090 = vsel %vm168, %v3082, %v2906
  %v3091 = vsel %vm168, %v3083, %v2907
  %v3092 = vsel %vm168, %v3084, %v2908
  %v3093 = vsel %vm168, %v3085, %v2909
  %v3094 = vsel %vm168, %v3086, %v2910
  %v3095 = vsel %vm168, %v3087, %v2911
  %v3096 = vsel %vm237, %v2944, %v2984
  %v3097 = vsel %vm237, %v2945, %v2985
  %v3098 = vsel %vm237, %v2946, %v2986
  %v3099 = vsel %vm237, %v2947, %v2987
  %v3100 = vsel %vm237, %v2948, %v2988
  %v3101 = vsel %vm237, %v2949, %v2989
  %v3102 = vsel %vm237, %v2950, %v2990
  %v3103 = vsel %vm237, %v2951, %v2991
  %v3104 = vsel %vm217, %v3096, %v3024
  %v3105 = vsel %vm217, %v3097, %v3025
  %v3106 = vsel %vm217, %v3098, %v3026
  %v3107 = vsel %vm217, %v3099, %v3027
  %v3108 = vsel %vm217, %v3100, %v3028
  %v3109 = vsel %vm217, %v3101, %v3029
  %v3110 = vsel %vm217, %v3102, %v3030
  %v3111 = vsel %vm217, %v3103, %v3031
  %v3112 = vsel %vm168, %v3104, %v3064
  %v3113 = vsel %vm168, %v3105, %v3065
  %v3114 = vsel %vm168, %v3106, %v3066
  %v3115 = vsel %vm168, %v3107, %v3067
  %v3116 = vsel %vm168, %v3108, %v3068
  %v3117 = vsel %vm168, %v3109, %v3069
  %v3118 = vsel %vm168, %v3110, %v3070
  %v3119 = vsel %vm168, %v3111, %v3071
  %v3120 = vlaneseq
  %v3121 = vshrl.u32 %v3120, 7
  %v3122 = vsub.s32 0, %v3121
  %v3123 = vrot.slane %v2035, %v3122
  %v3124 = vmul.f32 %v3123, %v2211
  %v3125 = vmul.f32 %v3123, %v2212
  %3126 = vset.pattern.permute.xlu0 16
  %3127 = vperm.xlu0 %3126, %v2294
  %v3128 = vpop.permute.xlu0 %3127
  %3130 = vset.pattern.permute.xlu0 16
  %3131 = vperm.xlu0 %3130, %v2299
  %v3132 = vpop.permute.xlu0 %3131
  %v3134 = vmul.f32 %v3128, %v3088
  %v3135 = vmul.f32 %v3132, %v3112
  %v3136 = vadd.f32 %v3124, %v3134
  %v3137 = vadd.f32 %v3125, %v3135
  %3138 = vset.pattern.permute.xlu0 17
  %3139 = vperm.xlu0 %3138, %v2294
  %v3140 = vpop.permute.xlu0 %3139
  %3142 = vset.pattern.permute.xlu0 17
  %3143 = vperm.xlu0 %3142, %v2299
  %v3144 = vpop.permute.xlu0 %3143
  %v3146 = vmul.f32 %v3140, %v3088
  %v3147 = vmul.f32 %v3144, %v3112
  %3150 = vrot.lane.b32.xlu0 %v3146, 64
  %v3151 = vpop.permute.xlu0 %3150
  %3152 = vrot.lane.b32.xlu0 %v3147, 64
  %v3153 = vpop.permute.xlu0 %3152
  %v3156 = vadd.f32 %v3136, %v3151
  %v3157 = vadd.f32 %v3137, %v3153
  %3158 = vset.pattern.permute.xlu0 18
  %3159 = vperm.xlu0 %3158, %v2294
  %v3160 = vpop.permute.xlu0 %3159
  %3162 = vset.pattern.permute.xlu0 18
  %3163 = vperm.xlu0 %3162, %v2299
  %v3164 = vpop.permute.xlu0 %3163
  %v3166 = vmul.f32 %v3160, %v3089
  %v3167 = vmul.f32 %v3164, %v3113
  %v3168 = vadd.f32 %v3156, %v3166
  %v3169 = vadd.f32 %v3157, %v3167
  %3170 = vset.pattern.permute.xlu0 19
  %3171 = vperm.xlu0 %3170, %v2294
  %v3172 = vpop.permute.xlu0 %3171
  %3174 = vset.pattern.permute.xlu0 19
  %3175 = vperm.xlu0 %3174, %v2299
  %v3176 = vpop.permute.xlu0 %3175
  %v3178 = vmul.f32 %v3172, %v3089
  %v3179 = vmul.f32 %v3176, %v3113
  %3182 = vrot.lane.b32.xlu0 %v3178, 64
  %v3183 = vpop.permute.xlu0 %3182
  %3184 = vrot.lane.b32.xlu0 %v3179, 64
  %v3185 = vpop.permute.xlu0 %3184
  %v3188 = vadd.f32 %v3168, %v3183
  %v3189 = vadd.f32 %v3169, %v3185
  %3190 = vset.pattern.permute.xlu0 20
  %3191 = vperm.xlu0 %3190, %v2294
  %v3192 = vpop.permute.xlu0 %3191
  %3194 = vset.pattern.permute.xlu0 20
  %3195 = vperm.xlu0 %3194, %v2299
  %v3196 = vpop.permute.xlu0 %3195
  %v3198 = vmul.f32 %v3192, %v3090
  %v3199 = vmul.f32 %v3196, %v3114
  %v3200 = vadd.f32 %v3188, %v3198
  %v3201 = vadd.f32 %v3189, %v3199
  %3202 = vset.pattern.permute.xlu0 21
  %3203 = vperm.xlu0 %3202, %v2294
  %v3204 = vpop.permute.xlu0 %3203
  %3206 = vset.pattern.permute.xlu0 21
  %3207 = vperm.xlu0 %3206, %v2299
  %v3208 = vpop.permute.xlu0 %3207
  %v3210 = vmul.f32 %v3204, %v3090
  %v3211 = vmul.f32 %v3208, %v3114
  %3214 = vrot.lane.b32.xlu0 %v3210, 64
  %v3215 = vpop.permute.xlu0 %3214
  %3216 = vrot.lane.b32.xlu0 %v3211, 64
  %v3217 = vpop.permute.xlu0 %3216
  %v3220 = vadd.f32 %v3200, %v3215
  %v3221 = vadd.f32 %v3201, %v3217
  %3222 = vset.pattern.permute.xlu0 22
  %3223 = vperm.xlu0 %3222, %v2294
  %v3224 = vpop.permute.xlu0 %3223
  %3226 = vset.pattern.permute.xlu0 22
  %3227 = vperm.xlu0 %3226, %v2299
  %v3228 = vpop.permute.xlu0 %3227
  %v3230 = vmul.f32 %v3224, %v3091
  %v3231 = vmul.f32 %v3228, %v3115
  %v3232 = vadd.f32 %v3220, %v3230
  %v3233 = vadd.f32 %v3221, %v3231
  %3234 = vset.pattern.permute.xlu0 23
  %3235 = vperm.xlu0 %3234, %v2294
  %v3236 = vpop.permute.xlu0 %3235
  %3238 = vset.pattern.permute.xlu0 23
  %3239 = vperm.xlu0 %3238, %v2299
  %v3240 = vpop.permute.xlu0 %3239
  %v3242 = vmul.f32 %v3236, %v3091
  %v3243 = vmul.f32 %v3240, %v3115
  %3246 = vrot.lane.b32.xlu0 %v3242, 64
  %v3247 = vpop.permute.xlu0 %3246
  %3248 = vrot.lane.b32.xlu0 %v3243, 64
  %v3249 = vpop.permute.xlu0 %3248
  %v3252 = vadd.f32 %v3232, %v3247
  %v3253 = vadd.f32 %v3233, %v3249
  %3254 = vset.pattern.permute.xlu0 24
  %3255 = vperm.xlu0 %3254, %v2294
  %v3256 = vpop.permute.xlu0 %3255
  %3258 = vset.pattern.permute.xlu0 24
  %3259 = vperm.xlu0 %3258, %v2299
  %v3260 = vpop.permute.xlu0 %3259
  %v3262 = vmul.f32 %v3256, %v3092
  %v3263 = vmul.f32 %v3260, %v3116
  %v3264 = vadd.f32 %v3252, %v3262
  %v3265 = vadd.f32 %v3253, %v3263
  %3266 = vset.pattern.permute.xlu0 25
  %3267 = vperm.xlu0 %3266, %v2294
  %v3268 = vpop.permute.xlu0 %3267
  %3270 = vset.pattern.permute.xlu0 25
  %3271 = vperm.xlu0 %3270, %v2299
  %v3272 = vpop.permute.xlu0 %3271
  %v3274 = vmul.f32 %v3268, %v3092
  %v3275 = vmul.f32 %v3272, %v3116
  %3278 = vrot.lane.b32.xlu0 %v3274, 64
  %v3279 = vpop.permute.xlu0 %3278
  %3280 = vrot.lane.b32.xlu0 %v3275, 64
  %v3281 = vpop.permute.xlu0 %3280
  %v3284 = vadd.f32 %v3264, %v3279
  %v3285 = vadd.f32 %v3265, %v3281
  %3286 = vset.pattern.permute.xlu0 26
  %3287 = vperm.xlu0 %3286, %v2294
  %v3288 = vpop.permute.xlu0 %3287
  %3290 = vset.pattern.permute.xlu0 26
  %3291 = vperm.xlu0 %3290, %v2299
  %v3292 = vpop.permute.xlu0 %3291
  %v3294 = vmul.f32 %v3288, %v3093
  %v3295 = vmul.f32 %v3292, %v3117
  %v3296 = vadd.f32 %v3284, %v3294
  %v3297 = vadd.f32 %v3285, %v3295
  %3298 = vset.pattern.permute.xlu0 27
  %3299 = vperm.xlu0 %3298, %v2294
  %v3300 = vpop.permute.xlu0 %3299
  %3302 = vset.pattern.permute.xlu0 27
  %3303 = vperm.xlu0 %3302, %v2299
  %v3304 = vpop.permute.xlu0 %3303
  %v3306 = vmul.f32 %v3300, %v3093
  %v3307 = vmul.f32 %v3304, %v3117
  %3310 = vrot.lane.b32.xlu0 %v3306, 64
  %v3311 = vpop.permute.xlu0 %3310
  %3312 = vrot.lane.b32.xlu0 %v3307, 64
  %v3313 = vpop.permute.xlu0 %3312
  %v3316 = vadd.f32 %v3296, %v3311
  %v3317 = vadd.f32 %v3297, %v3313
  %3318 = vset.pattern.permute.xlu0 28
  %3319 = vperm.xlu0 %3318, %v2294
  %v3320 = vpop.permute.xlu0 %3319
  %3322 = vset.pattern.permute.xlu0 28
  %3323 = vperm.xlu0 %3322, %v2299
  %v3324 = vpop.permute.xlu0 %3323
  %v3326 = vmul.f32 %v3320, %v3094
  %v3327 = vmul.f32 %v3324, %v3118
  %v3328 = vadd.f32 %v3316, %v3326
  %v3329 = vadd.f32 %v3317, %v3327
  %3330 = vset.pattern.permute.xlu0 29
  %3331 = vperm.xlu0 %3330, %v2294
  %v3332 = vpop.permute.xlu0 %3331
  %3334 = vset.pattern.permute.xlu0 29
  %3335 = vperm.xlu0 %3334, %v2299
  %v3336 = vpop.permute.xlu0 %3335
  %v3338 = vmul.f32 %v3332, %v3094
  %v3339 = vmul.f32 %v3336, %v3118
  %3342 = vrot.lane.b32.xlu0 %v3338, 64
  %v3343 = vpop.permute.xlu0 %3342
  %3344 = vrot.lane.b32.xlu0 %v3339, 64
  %v3345 = vpop.permute.xlu0 %3344
  %v3348 = vadd.f32 %v3328, %v3343
  %v3349 = vadd.f32 %v3329, %v3345
  %3350 = vset.pattern.permute.xlu0 30
  %3351 = vperm.xlu0 %3350, %v2294
  %v3352 = vpop.permute.xlu0 %3351
  %3354 = vset.pattern.permute.xlu0 30
  %3355 = vperm.xlu0 %3354, %v2299
  %v3356 = vpop.permute.xlu0 %3355
  %v3358 = vmul.f32 %v3352, %v3095
  %v3359 = vmul.f32 %v3356, %v3119
  %v3360 = vadd.f32 %v3348, %v3358
  %v3361 = vadd.f32 %v3349, %v3359
  %3362 = vset.pattern.permute.xlu0 31
  %3363 = vperm.xlu0 %3362, %v2294
  %v3364 = vpop.permute.xlu0 %3363
  %3366 = vset.pattern.permute.xlu0 31
  %3367 = vperm.xlu0 %3366, %v2299
  %v3368 = vpop.permute.xlu0 %3367
  %v3370 = vmul.f32 %v3364, %v3095
  %v3371 = vmul.f32 %v3368, %v3119
  %3374 = vrot.lane.b32.xlu0 %v3370, 64
  %v3375 = vpop.permute.xlu0 %3374
  %3376 = vrot.lane.b32.xlu0 %v3371, 64
  %v3377 = vpop.permute.xlu0 %3376
  %v3380 = vadd.f32 %v3360, %v3375
  %v3381 = vadd.f32 %v3361, %v3377
  %v3382 = vxor.u32 %v2113, 2147483648
  %v3383 = vxor.u32 %v2118, 2147483648
  %v3384 = vmul.f32 %v3382, 1.442695
  %v3385 = vpow.pop %v3384
  %v3386 = vmul.f32 %v3383, 1.442695
  %v3387 = vpow.pop %v3386
  %v3388 = vadd.f32 %v3385, 1.0
  %v3389 = vadd.f32 %v3387, 1.0
  %v3390 = vrcp.pop %v3388
  %v3391 = vmul.f32 1.0, %v3390
  %v3392 = vrcp.pop %v3389
  %v3393 = vmul.f32 1.0, %v3392
  %v3394 = vmul.f32 %v2113, %v3391
  %v3395 = vmul.f32 %v2118, %v3393
  %3398 = vrot.lane.b32.xlu0 %v3394, 64
  %v3399 = vpop.permute.xlu0 %3398
  %3400 = vrot.lane.b32.xlu0 %v3395, 64
  %v3401 = vpop.permute.xlu0 %3400
  %v3404 = vmul.f32 %v3380, %v3399
  %v3405 = vmul.f32 %v3381, %v3401
  %v3406 = vld [vmem:[%s18] sm:$0xff]
  %v3407 = vld [vmem:[%s18 + $0x8] sm:$0xff]
  %v3408 = vld [vmem:[%s18 + $0x10] sm:$0xff]
  %v3409 = vld [vmem:[%s18 + $0x18] sm:$0xff]
  %v3410 = vld [vmem:[%s18 + $0x20] sm:$0xff]
  %v3411 = vld [vmem:[%s18 + $0x28] sm:$0xff]
  %v3412 = vld [vmem:[%s18 + $0x30] sm:$0xff]
  %v3413 = vld [vmem:[%s18 + $0x38] sm:$0xff]
  %v3415 = vsel %vm269, %v3404, 0
  %v3418 = vsel %vm269, %v3405, 0
  %3420 = vmatprep.subr.mxu0 0.0
  %3421 = vmatpush1.msra.mxu0 %v3406
  %3422 = vmatprep.subr.mxu0 0.0
  %3423 = vmatpush1.msra.mxu0 %v3407
  %3424 = vmatprep.subr.mxu0 0.0
  %3425 = vmatpush1.msra.mxu0 %v3408
  %3426 = vmatprep.subr.mxu0 0.0
  %3427 = vmatpush1.msra.mxu0 %v3409
  %3428 = vmatprep.subr.mxu0 0.0
  %3429 = vmatpush1.msra.mxu0 %v3410
  %3430 = vmatprep.subr.mxu0 0.0
  %3431 = vmatpush1.msra.mxu0 %v3411
  %3432 = vmatprep.subr.mxu0 0.0
  %3433 = vmatpush1.msra.mxu0 %v3412
  %3434 = vmatprep.subr.mxu0 0.0
  %3435 = vmatpush1.msra.mxu0 %v3413
  %3436 = vmatprep.subr.mxu0 0.0
  %3437 = vmatpush1.msra.mxu0 0.0
  %3438 = vmatprep.subr.mxu0 0.0
  %3439 = vmatpush1.msra.mxu0 0.0
  %3440 = vmatprep.subr.mxu0 0.0
  %3441 = vmatpush1.msra.mxu0 0.0
  %3442 = vmatprep.subr.mxu0 0.0
  %3443 = vmatpush1.msra.mxu0 0.0
  %3444 = vmatprep.subr.mxu0 0.0
  %3445 = vmatpush1.msra.mxu0 0.0
  %3446 = vmatprep.subr.mxu0 0.0
  %3447 = vmatpush1.msra.mxu0 0.0
  %3448 = vmatprep.subr.mxu0 0.0
  %3449 = vmatpush1.msra.mxu0 0.0
  %3450 = vmatprep.subr.mxu0 0.0
  %3451 = vmatpush1.msra.mxu0 0.0
  %3452 = vmatprep.subr.mxu0 0.0
  %3453 = vmatpush1.msra.mxu0 0.0
  %3454 = vmatprep.subr.mxu0 0.0
  %3455 = vmatpush1.msra.mxu0 0.0
  %3456 = vmatprep.subr.mxu0 0.0
  %3457 = vmatpush1.msra.mxu0 0.0
  %3458 = vmatprep.subr.mxu0 0.0
  %3459 = vmatpush1.msra.mxu0 0.0
  %3460 = vmatprep.subr.mxu0 0.0
  %3461 = vmatpush1.msra.mxu0 0.0
  %3462 = vmatprep.subr.mxu0 0.0
  %3463 = vmatpush1.msra.mxu0 0.0
  %3464 = vmatprep.subr.mxu0 0.0
  %3465 = vmatpush1.msra.mxu0 0.0
  %3466 = vmatprep.subr.mxu0 0.0
  %3467 = vmatpush1.msra.mxu0 0.0
  %3468 = vmatprep.subr.mxu0 0.0
  %3469 = vmatpush1.msra.mxu0 0.0
  %3470 = vmatprep.subr.mxu0 0.0
  %3471 = vmatpush1.msra.mxu0 0.0
  %3472 = vmatprep.subr.mxu0 0.0
  %3473 = vmatpush1.msra.mxu0 0.0
  %3474 = vmatprep.subr.mxu0 0.0
  %3475 = vmatpush1.msra.mxu0 0.0
  %3476 = vmatprep.subr.mxu0 0.0
  %3477 = vmatpush1.msra.mxu0 0.0
  %3478 = vmatprep.subr.mxu0 0.0
  %3479 = vmatpush1.msra.mxu0 0.0
  %3480 = vmatprep.subr.mxu0 0.0
  %3481 = vmatpush1.msra.mxu0 0.0
  %3482 = vmatprep.subr.mxu0 0.0
  %3483 = vmatpush1.msra.mxu0 0.0
  %3484 = vmatprep.mubr.f32.mxu0 0.0
  %3485 = vmatmul.mubr.f32.gmra.mrb[0].mxu0 %v3415
  %v3486 = vpop.f32.mrb[0].mxu0
  %v3487 = vadd.f32 0.0, %v3486
  %v3488 = vpop.f32.mrb[0].mxu0
  %3489 = vmatprep.mubr.f32.mxu0 0.0
  %3490 = vmatmul.mubr.f32.gmra.mrb[0].mxu0 %v3418
  %v3491 = vpop.f32.mrb[0].mxu0
  %v3492 = vadd.f32 0.0, %v3491
  %v3493 = vpop.f32.mrb[0].mxu0
  %3494 = vdwg.mxu0
  %v3495 = vadd.f32 %v2024, %v3487
  %v3496 = vadd.f32 %v2029, %v3492
  %v3497 = vld [vmem:[%s20] sm:$0x1]
  %v3498 = vld [vmem:[%s20 + $0x1] sm:$0x1]
  %3499 = vmatprep.subr.mxu0 0.0
  %3500 = vmatpush1.msra.mxu0 %v3495
  %3501 = vmatprep.subr.mxu0 0.0
  %3502 = vmatpush1.msra.mxu0 %v3496
  %3503 = vmatprep.subr.mxu0 0.0
  %3504 = vmatpush1.msra.mxu0 0.0
  %3505 = vmatprep.subr.mxu0 0.0
  %3506 = vmatpush1.msra.mxu0 0.0
  %3507 = vmatprep.subr.mxu0 0.0
  %3508 = vmatpush1.msra.mxu0 0.0
  %3509 = vmatprep.subr.mxu0 0.0
  %3510 = vmatpush1.msra.mxu0 0.0
  %3511 = vmatprep.subr.mxu0 0.0
  %3512 = vmatpush1.msra.mxu0 0.0
  %3513 = vmatprep.subr.mxu0 0.0
  %3514 = vmatpush1.msra.mxu0 0.0
  %3515 = vmatprep.subr.mxu0 0.0
  %3516 = vmatpush1.msra.mxu0 0.0
  %3517 = vmatprep.subr.mxu0 0.0
  %3518 = vmatpush1.msra.mxu0 0.0
  %3519 = vmatprep.subr.mxu0 0.0
  %3520 = vmatpush1.msra.mxu0 0.0
  %3521 = vmatprep.subr.mxu0 0.0
  %3522 = vmatpush1.msra.mxu0 0.0
  %3523 = vmatprep.subr.mxu0 0.0
  %3524 = vmatpush1.msra.mxu0 0.0
  %3525 = vmatprep.subr.mxu0 0.0
  %3526 = vmatpush1.msra.mxu0 0.0
  %3527 = vmatprep.subr.mxu0 0.0
  %3528 = vmatpush1.msra.mxu0 0.0
  %3529 = vmatprep.subr.mxu0 0.0
  %3530 = vmatpush1.msra.mxu0 0.0
  %3531 = vmatprep.subr.mxu0 0.0
  %3532 = vmatpush1.msra.mxu0 0.0
  %3533 = vmatprep.subr.mxu0 0.0
  %3534 = vmatpush1.msra.mxu0 0.0
  %3535 = vmatprep.subr.mxu0 0.0
  %3536 = vmatpush1.msra.mxu0 0.0
  %3537 = vmatprep.subr.mxu0 0.0
  %3538 = vmatpush1.msra.mxu0 0.0
  %3539 = vmatprep.subr.mxu0 0.0
  %3540 = vmatpush1.msra.mxu0 0.0
  %3541 = vmatprep.subr.mxu0 0.0
  %3542 = vmatpush1.msra.mxu0 0.0
  %3543 = vmatprep.subr.mxu0 0.0
  %3544 = vmatpush1.msra.mxu0 0.0
  %3545 = vmatprep.subr.mxu0 0.0
  %3546 = vmatpush1.msra.mxu0 0.0
  %3547 = vmatprep.subr.mxu0 0.0
  %3548 = vmatpush1.msra.mxu0 0.0
  %3549 = vmatprep.subr.mxu0 0.0
  %3550 = vmatpush1.msra.mxu0 0.0
  %3551 = vmatprep.subr.mxu0 0.0
  %3552 = vmatpush1.msra.mxu0 0.0
  %3553 = vmatprep.subr.mxu0 0.0
  %3554 = vmatpush1.msra.mxu0 0.0
  %3555 = vmatprep.subr.mxu0 0.0
  %3556 = vmatpush1.msra.mxu0 0.0
  %3557 = vmatprep.subr.mxu0 0.0
  %3558 = vmatpush1.msra.mxu0 0.0
  %3559 = vmatprep.subr.mxu0 0.0
  %3560 = vmatpush1.msra.mxu0 0.0
  %3561 = vmatprep.subr.mxu0 0.0
  %3562 = vmatpush1.msra.mxu0 0.0
  %3563 = vmatprep.mubr.f32.mxu0 0.0
  %3564 = vmatmul.mubr.f32.gmra.mrb[0].mxu0 %v1569
  %v3565 = vpop.f32.mrb[0].mxu0
  %v3566 = vadd.f32 0.0, %v3565
  %v3567 = vpop.f32.mrb[0].mxu0
  %3568 = vdwg.mxu0
  %v3569 = vld [vmem:[%s19] sm:$0xff]
  %v3570 = vld [vmem:[%s19 + $0x8] sm:$0xff]
  %v3571 = vld [vmem:[%s19 + $0x10] sm:$0xff]
  %v3572 = vld [vmem:[%s19 + $0x18] sm:$0xff]
  %v3573 = vlaneseq
  %v3574 = vshrl.u32 %v3573, 7
  %v3575 = vsub.s32 0, %v3574
  %v3576 = vrot.slane %v3497, %v3575
  %v3578 = vsel %vm84, %v3566, 0
  %3580 = vmatprep.subr.mxu0 0.0
  %3581 = vmatpush1.msra.mxu0 %v3569
  %3582 = vmatprep.subr.mxu0 0.0
  %3583 = vmatpush1.msra.mxu0 %v3570
  %3584 = vmatprep.subr.mxu0 0.0
  %3585 = vmatpush1.msra.mxu0 %v3571
  %3586 = vmatprep.subr.mxu0 0.0
  %3587 = vmatpush1.msra.mxu0 %v3572
  %3588 = vmatprep.subr.mxu0 0.0
  %3589 = vmatpush1.msra.mxu0 0.0
  %3590 = vmatprep.subr.mxu0 0.0
  %3591 = vmatpush1.msra.mxu0 0.0
  %3592 = vmatprep.subr.mxu0 0.0
  %3593 = vmatpush1.msra.mxu0 0.0
  %3594 = vmatprep.subr.mxu0 0.0
  %3595 = vmatpush1.msra.mxu0 0.0
  %3596 = vmatprep.subr.mxu0 0.0
  %3597 = vmatpush1.msra.mxu0 0.0
  %3598 = vmatprep.subr.mxu0 0.0
  %3599 = vmatpush1.msra.mxu0 0.0
  %3600 = vmatprep.subr.mxu0 0.0
  %3601 = vmatpush1.msra.mxu0 0.0
  %3602 = vmatprep.subr.mxu0 0.0
  %3603 = vmatpush1.msra.mxu0 0.0
  %3604 = vmatprep.subr.mxu0 0.0
  %3605 = vmatpush1.msra.mxu0 0.0
  %3606 = vmatprep.subr.mxu0 0.0
  %3607 = vmatpush1.msra.mxu0 0.0
  %3608 = vmatprep.subr.mxu0 0.0
  %3609 = vmatpush1.msra.mxu0 0.0
  %3610 = vmatprep.subr.mxu0 0.0
  %3611 = vmatpush1.msra.mxu0 0.0
  %3612 = vmatprep.subr.mxu0 0.0
  %3613 = vmatpush1.msra.mxu0 0.0
  %3614 = vmatprep.subr.mxu0 0.0
  %3615 = vmatpush1.msra.mxu0 0.0
  %3616 = vmatprep.subr.mxu0 0.0
  %3617 = vmatpush1.msra.mxu0 0.0
  %3618 = vmatprep.subr.mxu0 0.0
  %3619 = vmatpush1.msra.mxu0 0.0
  %3620 = vmatprep.subr.mxu0 0.0
  %3621 = vmatpush1.msra.mxu0 0.0
  %3622 = vmatprep.subr.mxu0 0.0
  %3623 = vmatpush1.msra.mxu0 0.0
  %3624 = vmatprep.subr.mxu0 0.0
  %3625 = vmatpush1.msra.mxu0 0.0
  %3626 = vmatprep.subr.mxu0 0.0
  %3627 = vmatpush1.msra.mxu0 0.0
  %3628 = vmatprep.subr.mxu0 0.0
  %3629 = vmatpush1.msra.mxu0 0.0
  %3630 = vmatprep.subr.mxu0 0.0
  %3631 = vmatpush1.msra.mxu0 0.0
  %3632 = vmatprep.subr.mxu0 0.0
  %3633 = vmatpush1.msra.mxu0 0.0
  %3634 = vmatprep.subr.mxu0 0.0
  %3635 = vmatpush1.msra.mxu0 0.0
  %3636 = vmatprep.subr.mxu0 0.0
  %3637 = vmatpush1.msra.mxu0 0.0
  %3638 = vmatprep.subr.mxu0 0.0
  %3639 = vmatpush1.msra.mxu0 0.0
  %3640 = vmatprep.subr.mxu0 0.0
  %3641 = vmatpush1.msra.mxu0 0.0
  %3642 = vmatprep.subr.mxu0 0.0
  %3643 = vmatpush1.msra.mxu0 0.0
  %3644 = vmatprep.mubr.f32.mxu0 0.0
  %3645 = vmatmul.mubr.f32.gmra.mrb[0].mxu0 %v3578
  %v3646 = vpop.f32.mrb[0].mxu0
  %v3647 = vadd.f32 %v3576, %v3646
  %v3648 = vpop.f32.mrb[0].mxu0
  %3649 = vdwg.mxu0
  %v3650 = vlaneseq
  %v3651 = vshrl.u32 %v3650, 7
  %v3652 = vsub.s32 0, %v3651
  %v3653 = vrot.slane %v3498, %v3652
  %v3654 = vadd.f32 %v3647, %v3653
  %v3655 = vxor.u32 %v3654, 2147483648
  %v3656 = vmul.f32 %v3655, 1.442695
  %v3657 = vpow.pop %v3656
  %v3658 = vadd.f32 %v3657, 1.0
  %v3659 = vrcp.pop %v3658
  %v3660 = vmul.f32 1.0, %v3659
  %v3662 = vsel %vm237, %v3660, 0
  %3664 = vmatprep.subr.mxu0 0.0
  %3665 = vmatpush1.msra.mxu0 %v3662
  %3666 = vmatprep.subr.mxu0 0.0
  %3667 = vmatpush1.msra.mxu0 0.0
  %3668 = vmatprep.subr.mxu0 0.0
  %3669 = vmatpush1.msra.mxu0 0.0
  %3670 = vmatprep.subr.mxu0 0.0
  %3671 = vmatpush1.msra.mxu0 0.0
  %3672 = vmatprep.subr.mxu0 0.0
  %3673 = vmatpush1.msra.mxu0 0.0
  %3674 = vmatprep.subr.mxu0 0.0
  %3675 = vmatpush1.msra.mxu0 0.0
  %3676 = vmatprep.subr.mxu0 0.0
  %3677 = vmatpush1.msra.mxu0 0.0
  %3678 = vmatprep.subr.mxu0 0.0
  %3679 = vmatpush1.msra.mxu0 0.0
  %3680 = vmatprep.subr.mxu0 0.0
  %3681 = vmatpush1.msra.mxu0 0.0
  %3682 = vmatprep.subr.mxu0 0.0
  %3683 = vmatpush1.msra.mxu0 0.0
  %3684 = vmatprep.subr.mxu0 0.0
  %3685 = vmatpush1.msra.mxu0 0.0
  %3686 = vmatprep.subr.mxu0 0.0
  %3687 = vmatpush1.msra.mxu0 0.0
  %3688 = vmatprep.subr.mxu0 0.0
  %3689 = vmatpush1.msra.mxu0 0.0
  %3690 = vmatprep.subr.mxu0 0.0
  %3691 = vmatpush1.msra.mxu0 0.0
  %3692 = vmatprep.subr.mxu0 0.0
  %3693 = vmatpush1.msra.mxu0 0.0
  %3694 = vmatprep.subr.mxu0 0.0
  %3695 = vmatpush1.msra.mxu0 0.0
  %3696 = vmatprep.subr.mxu0 0.0
  %3697 = vmatpush1.msra.mxu0 0.0
  %3698 = vmatprep.subr.mxu0 0.0
  %3699 = vmatpush1.msra.mxu0 0.0
  %3700 = vmatprep.subr.mxu0 0.0
  %3701 = vmatpush1.msra.mxu0 0.0
  %3702 = vmatprep.subr.mxu0 0.0
  %3703 = vmatpush1.msra.mxu0 0.0
  %3704 = vmatprep.subr.mxu0 0.0
  %3705 = vmatpush1.msra.mxu0 0.0
  %3706 = vmatprep.subr.mxu0 0.0
  %3707 = vmatpush1.msra.mxu0 0.0
  %3708 = vmatprep.subr.mxu0 0.0
  %3709 = vmatpush1.msra.mxu0 0.0
  %3710 = vmatprep.subr.mxu0 0.0
  %3711 = vmatpush1.msra.mxu0 0.0
  %3712 = vmatprep.subr.mxu0 0.0
  %3713 = vmatpush1.msra.mxu0 0.0
  %3714 = vmatprep.subr.mxu0 0.0
  %3715 = vmatpush1.msra.mxu0 0.0
  %3716 = vmatprep.subr.mxu0 0.0
  %3717 = vmatpush1.msra.mxu0 0.0
  %3718 = vmatprep.subr.mxu0 0.0
  %3719 = vmatpush1.msra.mxu0 0.0
  %3720 = vmatprep.subr.mxu0 0.0
  %3721 = vmatpush1.msra.mxu0 0.0
  %3722 = vmatprep.subr.mxu0 0.0
  %3723 = vmatpush1.msra.mxu0 0.0
  %3724 = vmatprep.subr.mxu0 0.0
  %3725 = vmatpush1.msra.mxu0 0.0
  %3726 = vmatprep.subr.mxu0 0.0
  %3727 = vmatpush1.msra.mxu0 0.0
  %3728 = vmatprep.mubr.f32.mxu0 0.0
  %3729 = vmatmul.mubr.f32.gmra.mrb[0].mxu0 %v1765
  %v3730 = vpop.f32.mrb[0].mxu0
  %v3731 = vadd.f32 0.0, %v3730
  %v3732 = vpop.f32.mrb[0].mxu0
  %3733 = vmatprep.mubr.f32.mxu0 0.0
  %3734 = vmatmul.mubr.f32.gmra.mrb[0].mxu0 %v1768
  %v3735 = vpop.f32.mrb[0].mxu0
  %v3736 = vadd.f32 0.0, %v3735
  %v3737 = vpop.f32.mrb[0].mxu0
  %3738 = vdwg.mxu0
  %v3739 = vmul.f32 %v3495, %v3731
  %v3740 = vmul.f32 %v3496, %v3736
  %v3741 = vld [vmem:[%s21] sm:$0xff]
  %v3742 = vld [vmem:[%s21 + $0x8] sm:$0xff]
  %v3743 = vld [vmem:[%s21 + $0x10] sm:$0xff]
  %v3744 = vld [vmem:[%s21 + $0x18] sm:$0xff]
  %v3745 = vld [vmem:[%s22] sm:$0x1]
  %v3747 = vlaneseq
  %v3748 = vshrl.u32 %v3747, 7
  %v3749 = vsub.s32 0, %v3748
  %v3750 = vrot.slane %v3745, %v3749
  %v3753 = vsel %vm84, %v3739, 0
  %v3756 = vsel %vm84, %v3740, 0
  %3758 = vmatprep.subr.mxu0 0.0
  %3759 = vmatpush1.msra.mxu0 %v3741
  %3760 = vmatprep.subr.mxu0 0.0
  %3761 = vmatpush1.msra.mxu0 %v3742
  %3762 = vmatprep.subr.mxu0 0.0
  %3763 = vmatpush1.msra.mxu0 %v3743
  %3764 = vmatprep.subr.mxu0 0.0
  %3765 = vmatpush1.msra.mxu0 %v3744
  %3766 = vmatprep.subr.mxu0 0.0
  %3767 = vmatpush1.msra.mxu0 0.0
  %3768 = vmatprep.subr.mxu0 0.0
  %3769 = vmatpush1.msra.mxu0 0.0
  %3770 = vmatprep.subr.mxu0 0.0
  %3771 = vmatpush1.msra.mxu0 0.0
  %3772 = vmatprep.subr.mxu0 0.0
  %3773 = vmatpush1.msra.mxu0 0.0
  %3774 = vmatprep.subr.mxu0 0.0
  %3775 = vmatpush1.msra.mxu0 0.0
  %3776 = vmatprep.subr.mxu0 0.0
  %3777 = vmatpush1.msra.mxu0 0.0
  %3778 = vmatprep.subr.mxu0 0.0
  %3779 = vmatpush1.msra.mxu0 0.0
  %3780 = vmatprep.subr.mxu0 0.0
  %3781 = vmatpush1.msra.mxu0 0.0
  %3782 = vmatprep.subr.mxu0 0.0
  %3783 = vmatpush1.msra.mxu0 0.0
  %3784 = vmatprep.subr.mxu0 0.0
  %3785 = vmatpush1.msra.mxu0 0.0
  %3786 = vmatprep.subr.mxu0 0.0
  %3787 = vmatpush1.msra.mxu0 0.0
  %3788 = vmatprep.subr.mxu0 0.0
  %3789 = vmatpush1.msra.mxu0 0.0
  %3790 = vmatprep.subr.mxu0 0.0
  %3791 = vmatpush1.msra.mxu0 0.0
  %3792 = vmatprep.subr.mxu0 0.0
  %3793 = vmatpush1.msra.mxu0 0.0
  %3794 = vmatprep.subr.mxu0 0.0
  %3795 = vmatpush1.msra.mxu0 0.0
  %3796 = vmatprep.subr.mxu0 0.0
  %3797 = vmatpush1.msra.mxu0 0.0
  %3798 = vmatprep.subr.mxu0 0.0
  %3799 = vmatpush1.msra.mxu0 0.0
  %3800 = vmatprep.subr.mxu0 0.0
  %3801 = vmatpush1.msra.mxu0 0.0
  %3802 = vmatprep.subr.mxu0 0.0
  %3803 = vmatpush1.msra.mxu0 0.0
  %3804 = vmatprep.subr.mxu0 0.0
  %3805 = vmatpush1.msra.mxu0 0.0
  %3806 = vmatprep.subr.mxu0 0.0
  %3807 = vmatpush1.msra.mxu0 0.0
  %3808 = vmatprep.subr.mxu0 0.0
  %3809 = vmatpush1.msra.mxu0 0.0
  %3810 = vmatprep.subr.mxu0 0.0
  %3811 = vmatpush1.msra.mxu0 0.0
  %3812 = vmatprep.subr.mxu0 0.0
  %3813 = vmatpush1.msra.mxu0 0.0
  %3814 = vmatprep.subr.mxu0 0.0
  %3815 = vmatpush1.msra.mxu0 0.0
  %3816 = vmatprep.subr.mxu0 0.0
  %3817 = vmatpush1.msra.mxu0 0.0
  %3818 = vmatprep.subr.mxu0 0.0
  %3819 = vmatpush1.msra.mxu0 0.0
  %3820 = vmatprep.subr.mxu0 0.0
  %3821 = vmatpush1.msra.mxu0 0.0
  %3822 = vmatprep.mubr.f32.mxu0 0.0
  %3823 = vmatmul.mubr.f32.gmra.mrb[0].mxu0 %v3753
  %v3824 = vpop.f32.mrb[0].mxu0
  %v3825 = vadd.f32 %v3750, %v3824
  %v3826 = vpop.f32.mrb[0].mxu0
  %3827 = vmatprep.mubr.f32.mxu0 0.0
  %3828 = vmatmul.mubr.f32.gmra.mrb[0].mxu0 %v3756
  %v3829 = vpop.f32.mrb[0].mxu0
  %v3830 = vadd.f32 %v3750, %v3829
  %v3831 = vpop.f32.mrb[0].mxu0
  %3832 = vdwg.mxu0
  %3833 = vst.msk [vmem:[%s23] sm:$0xff] %vm84, %v3825
  %3834 = vst.msk [vmem:[%s23 + $0x8] sm:$0xff] %vm84, %v3830
  // Predicated region
  $region94: #{net_forward.1} parent=0 // pred_check
    _
  $region95: #{net_forward.1} parent=0 // pred_check_branch
    %3836 = sbr.rel (0) target = $region97
  $region96: #{net_forward.1} parent=0 // pred_region
    _
  $region97: #{net_forward.1} parent=0 // pred_fallthru
    _
  // Predicated region
  $region98: #{net_forward.1} parent=0 // pred_check
    _
  $region99: #{net_forward.1} parent=0 // pred_check_branch
    %3838 = sbr.rel (0) target = $region101
  $region100: #{net_forward.1} parent=0 // pred_region
    _
  $region101: #{net_forward.1} parent=0 // pred_fallthru
    _

</llo_original>
